<compile_context>
chip_gen: v6e
topology: v6e:2x2x1
jax: 0.10.0
libtpu: 0.0.40
codegen_flags: <defaults>
</compile_context>

<pallas_src>
import functools
import math

import jax
import jax.numpy as jnp
from jax import lax
from jax.experimental import pallas as pl
from jax.experimental.pallas import tpu as pltpu


# ---------------------------------------------------------------------------
# Config (stands in for `args` of the PyTorch module)
# ---------------------------------------------------------------------------
class Config:
    num_stages = 2
    num_layers = 3
    num_f_maps = 32
    num_classes = 8
    feature_dim = 64
    num_seg = 4
    use_target = 'none'
    multi_adv = 'NN'
    DA_adv_video = 'rev_grad'
    ps_lb = 'soft'
    use_attn = 'none'
    pair_ssl = 'all'
    DA_ens = 'none'
    SS_video = 'none'
    method_centroid = 'none'


_DOM_PAD = 8   # pad the 2-way frame-domain head to a full f32 sublane tile


# ---------------------------------------------------------------------------
# Fused Pallas kernel: all stages + conv_out + softmax + frame-domain head
# ---------------------------------------------------------------------------
def _fused_kernel(num_layers, num_stages, T, *refs):
    """Inputs (all full-array VMEM blocks, batch folded into lanes):
         x:        (Cin0, B*T)              bf16
         ad_w1:    (C, C) bf16, ad_b1: (C, 1) f32
         ad_w2:    (8, C) bf16, ad_b2: (8, 1) f32   (rows 2..7 are zero pad)
         per stage s: w_in (C, Cin_s), b_in (C,1),
                      wd (L, C, 3C)  -- columns ordered [tap t-d | t | t+d],
                      bd (L, C, 1), w1 (L, C, C), b1 (L, C, 1),
                      w_out (K, C), b_out (K, 1)
       Outputs:
         feat  (S, C, B*T), logits (S, K, B*T), prob (S, K, B*T),
         dom   (S, 8, B*T)   (frame-level domain logits, padded to 8 rows)
    """
    n_in = 5 + 8 * num_stages
    x_ref, adw1_ref, adb1_ref, adw2_ref, adb2_ref = refs[:5]
    stage_refs = [refs[5 + 8 * s: 5 + 8 * (s + 1)] for s in range(num_stages)]
    feat_ref, logit_ref, prob_ref, dom_ref = refs[n_in:n_in + 4]

    BT = x_ref.shape[-1]
    # time index of every lane within its own video (batch folded into lanes)
    t_pos = lax.broadcasted_iota(jnp.int32, (1, BT), 1) % T

    adw1 = adw1_ref[...]
    adb1 = adb1_ref[...]
    adw2 = adw2_ref[...]
    adb2 = adb2_ref[...]

    cur = x_ref[...]                                             # bf16 (Cin0, BT)
    for s in range(num_stages):
        (w_in_ref, b_in_ref, wd_ref, bd_ref,
         w1_ref, b1_ref, w_out_ref, b_out_ref) = stage_refs[s]

        # conv_1x1 input projection
        f = jnp.dot(w_in_ref[...], cur,
                    preferred_element_type=jnp.float32) + b_in_ref[...]

        for l in range(num_layers):
            d = 2 ** l
            # dilated taps via XLU lane roll; mask cross-video leakage.
            back = jnp.where(t_pos >= d,
                             pltpu.roll(f, shift=d, axis=1), 0.0)        # f[:, t-d]
            fwd = jnp.where(t_pos < T - d,
                            pltpu.roll(f, shift=BT - d, axis=1), 0.0)    # f[:, t+d]
            # single (C,3C)x(3C,BT) matmul instead of three (C,C) matmuls
            stacked = jnp.concatenate([back, f, fwd],
                                      axis=0).astype(jnp.bfloat16)       # (3C, BT)
            h = jnp.dot(wd_ref[l], stacked,
                        preferred_element_type=jnp.float32) + bd_ref[l]
            h = jnp.maximum(h, 0.0)                                      # ReLU
            h = jnp.dot(w1_ref[l], h.astype(jnp.bfloat16),
                        preferred_element_type=jnp.float32) + b1_ref[l]
            # nn.Dropout() -> identity (eval semantics)
            f = f + h                                                    # residual

        feat_ref[s] = f
        f_b = f.astype(jnp.bfloat16)

        # conv_out + channel softmax (dim=1 in NCL layout == sublane axis here)
        logits = jnp.dot(w_out_ref[...], f_b,
                         preferred_element_type=jnp.float32) + b_out_ref[...]
        logit_ref[s] = logits
        m = jnp.max(logits, axis=0, keepdims=True)
        e = jnp.exp(logits - m)
        p = e * pl.reciprocal(jnp.sum(e, axis=0, keepdims=True), approx=True)
        prob_ref[s] = p

        # fused frame-level domain head (GradRevLayer forward == identity)
        hd = jnp.maximum(
            jnp.dot(adw1, f_b, preferred_element_type=jnp.float32) + adb1, 0.0)
        # nn.Dropout() -> identity (eval semantics)
        dom_ref[s] = jnp.dot(adw2, hd.astype(jnp.bfloat16),
                             preferred_element_type=jnp.float32) + adb2

        cur = p.astype(jnp.bfloat16)      # next stage consumes the softmax probs


# ---------------------------------------------------------------------------
# pallas_call wrapper
# ---------------------------------------------------------------------------
def run_fused(params, cfg, x_all):
    """x_all: (2B, Cin0, T) f32 (source and target batched). Returns
       feat (2B,S,C,T), logits (2B,S,K,T), prob (2B,S,K,T), dom (2B,S,2,T)."""
    Bt, D, T = x_all.shape
    S, L = cfg.num_stages, cfg.num_layers
    C, K = cfg.num_f_maps, cfg.num_classes
    BT = Bt * T

    # fold batch into the lane axis: (B, Cin, T) -> (Cin, B*T)
    x2d = jnp.transpose(x_all, (1, 0, 2)).reshape(D, BT).astype(jnp.bfloat16)

    # pad the 2-way domain classifier to 8 rows for sublane-dense stores
    ad_w2 = jnp.pad(params['ad_cls_w'], ((0, _DOM_PAD - 2), (0, 0)))
    ad_b2 = jnp.pad(params['ad_cls_b'], ((0, _DOM_PAD - 2), (0, 0)))

    stage_params = [params['stage1']] + params['stages']
    bf16 = jnp.bfloat16
    args = [x2d,
            params['ad_base_w1'].astype(bf16), params['ad_base_b1'],
            ad_w2.astype(bf16), ad_b2]
    for sp in stage_params:
        args += [sp['w_in'].astype(bf16), sp['b_in'],
                 sp['wd'].astype(bf16), sp['bd'],
                 sp['w1'].astype(bf16), sp['b1'],
                 sp['w_out'].astype(bf16), sp['b_out']]

    def full_spec(shape):
        n = len(shape)
        return pl.BlockSpec(shape, lambda i, n=n: (0,) * n)

    out_shapes = (
        jax.ShapeDtypeStruct((S, C, BT), jnp.float32),          # feat
        jax.ShapeDtypeStruct((S, K, BT), jnp.float32),          # logits
        jax.ShapeDtypeStruct((S, K, BT), jnp.float32),          # softmax probs
        jax.ShapeDtypeStruct((S, _DOM_PAD, BT), jnp.float32),   # domain logits
    )

    # advisory cost estimate so XLA can overlap the surrounding glue
    flops = 0
    for sp in stage_params:
        cin_s = sp['w_in'].shape[1]
        flops += 2 * BT * (C * cin_s + L * (C * 3 * C + C * C)
                           + K * C + C * C + _DOM_PAD * C)
    transcendentals = S * (K + 1) * BT
    bytes_accessed = (sum(int(a.size) * a.dtype.itemsize for a in args)
                      + sum(4 * math.prod(o.shape) for o in out_shapes))

    fn = pl.pallas_call(
        functools.partial(_fused_kernel, L, S, T),
        out_shape=out_shapes,
        grid_spec=pltpu.PrefetchScalarGridSpec(
            num_scalar_prefetch=0,
            grid=(1,),
            in_specs=[full_spec(a.shape) for a in args],
            out_specs=[full_spec(o.shape) for o in out_shapes],
        ),
        compiler_params=pltpu.CompilerParams(
            dimension_semantics=("arbitrary",)),
        cost_estimate=pl.CostEstimate(
            flops=int(flops), transcendentals=int(transcendentals),
            bytes_accessed=int(bytes_accessed)),
    )
    feat2d, logit2d, prob2d, dom2d = fn(*args)

    def unfold(a):                                  # (S, C, B*T) -> (B, S, C, T)
        s_, c_, _ = a.shape
        return jnp.transpose(a.reshape(s_, c_, Bt, T), (2, 0, 1, 3))

    return (unfold(feat2d), unfold(logit2d), unfold(prob2d),
            unfold(dom2d)[:, :, :2, :])


# ---------------------------------------------------------------------------
# Plain-JAX glue (dynamic / data-dependent pieces)
# ---------------------------------------------------------------------------
def aggregate_frames(feat, mask, num_seg):
    """Per-batch segment-wise temporal averaging over all stages at once."""
    B, S, C, T = feat.shape
    total = jnp.sum(mask[:, 0, :], axis=-1)                       # (B,)
    nfs = (total / num_seg).astype(jnp.int32)                     # frames / segment
    nfs = jnp.maximum(nfs, 1)     # guard nfs == 0 (degenerate all-masked input)
    t_idx = jnp.arange(T)
    seg_idx = jnp.arange(num_seg)
    lower = seg_idx[None, :, None] * nfs[:, None, None]           # (B, seg, 1)
    upper = lower + nfs[:, None, None]
    sel = ((t_idx[None, None, :] >= lower) &
           (t_idx[None, None, :] < upper)).astype(feat.dtype)     # (B, seg, T)
    sums = jnp.einsum('bsct,bqt->bscq', feat, sel)                # (B, S, C, seg)
    return sums / nfs[:, None, None, None].astype(feat.dtype)


def select_masked(dom, mask, num_seg, domain_GT):
    """Masked frame selection (data-dependent shape -> eager boolean indexing)."""
    # TODO(synk): dynamic output shape; not jittable as-is (keeps the PyTorch
    # boolean-indexing semantics). Replace with mask-weighted losses for jit.
    B, S, _, T = dom.shape
    out_d = jnp.transpose(dom, (0, 3, 1, 2))[:, :, :, None, :]    # (B, T, S, 1, 2)
    out_d = out_d.reshape(B * T, S, 1, 2)
    mask_frame = mask[:, 0, :].reshape(-1) > 0
    out_d = out_d[mask_frame]                                     # (Nmask, S, 1, 2)
    lb_d = jnp.full(out_d.shape[:3], float(domain_GT), dtype=jnp.float32)
    # Video-level prediction = first num_seg frames of the frame-level domain
    # logits; this is exactly the PyTorch path when use_target == 'none'.
    out_d_video = jnp.transpose(dom[:, :, :, :num_seg],
                                (0, 3, 1, 2)).reshape(B * num_seg, S, 2)
    lb_d_video = jnp.full((B * num_seg, S), float(domain_GT), dtype=jnp.float32)
    return out_d, out_d_video, lb_d, lb_d_video


def forward_domain_outputs(feat, out, prob, dom, mask, cfg, domain_GT):
    """Per-domain glue equivalent to PyTorch forward_domain's output stacking."""
    feat_video = aggregate_frames(feat, mask, cfg.num_seg)        # (B,S,C,seg)
    out_d, out_d_video, lb_d, lb_d_video = select_masked(
        dom, mask, cfg.num_seg, domain_GT)
    # DA_ens == 'none' -> out_2 = out.clone(), prob_2 = softmax(out_2) = prob
    return (out, prob, feat, feat_video, out_d, out_d_video,
            lb_d, lb_d_video, out, prob)


# ---------------------------------------------------------------------------
# Model forward
# ---------------------------------------------------------------------------
def multi_stage_forward(params, cfg, x_s, x_t, mask_s, mask_t, beta, reverse):
    B = x_s.shape[0]
    # batch source + target through ONE fused kernel launch
    x_all = jnp.concatenate([x_s, x_t], axis=0)
    feat, out, prob, dom = run_fused(params, cfg, x_all)

    sl_s, sl_t = slice(0, B), slice(B, 2 * B)
    (pred_s, prob_s, feat_s, _fv_s, pd_s, pdv_s, ld_s, ldv_s,
     pred_s2, prob_s2) = forward_domain_outputs(
        feat[sl_s], out[sl_s], prob[sl_s], dom[sl_s], mask_s, cfg, 0)
    (pred_t, prob_t, feat_t, _fv_t, pd_t, pdv_t, ld_t, ldv_t,
     pred_t2, prob_t2) = forward_domain_outputs(
        feat[sl_t], out[sl_t], prob[sl_t], dom[sl_t], mask_t, cfg, 1)

    pred_d = jnp.concatenate((pd_s, pd_t), axis=0)
    label_d = jnp.concatenate((ld_s, ld_t), axis=0).astype(jnp.int32)
    pred_d_video = jnp.concatenate((pdv_s, pdv_t), axis=0)
    label_d_video = jnp.concatenate((ldv_s, ldv_t), axis=0).astype(jnp.int32)

    # TODO(synk): 'rev_grad_ssl' / VCOP branches use torch.randperm (stochastic,
    # data-dependent shapes); disabled by config and not implemented.
    return (pred_s, prob_s, feat_s, pred_t, prob_t, feat_t,
            pred_d, pred_d_video, label_d, label_d_video,
            pred_s2, prob_s2, pred_t2, prob_t2)


# ---------------------------------------------------------------------------
# Deterministic parameter init
# ---------------------------------------------------------------------------
def init_params(key, cfg):
    C, K, D, L = cfg.num_f_maps, cfg.num_classes, cfg.feature_dim, cfg.num_layers
    keys = iter(jax.random.split(key, 128))

    def nrm(shape, scale=0.05):
        return (scale * jax.random.normal(next(keys), shape)).astype(jnp.float32)

    def stage_params(cin):
        return {
            'w_in': nrm((C, cin)), 'b_in': nrm((C, 1)),
            # dilated conv weights flattened to (C, 3C): cols [t-d | t | t+d]
            'wd': nrm((L, C, 3 * C)), 'bd': nrm((L, C, 1)),
            'w1': nrm((L, C, C)), 'b1': nrm((L, C, 1)),
            'w_out': nrm((K, C)), 'b_out': nrm((K, 1)),
        }

    return {
        'stage1': stage_params(D),
        'stages': [stage_params(K) for _ in range(cfg.num_stages - 1)],
        'ad_base_w1': nrm((C, C)), 'ad_base_b1': nrm((C, 1)),
        'ad_cls_w': nrm((2, C)), 'ad_cls_b': nrm((2, 1)),
    }


# ---------------------------------------------------------------------------
# Main
# ---------------------------------------------------------------------------
if __name__ == "__main__":
    cfg = Config()
    B, D, T = 2, cfg.feature_dim, 128

    key = jax.random.PRNGKey(0)
    k1, k2, kp = jax.random.split(key, 3)
    x_s = jax.random.normal(k1, (B, D, T), dtype=jnp.float32)
    x_t = jax.random.normal(k2, (B, D, T), dtype=jnp.float32)
    mask_s = jnp.ones((B, cfg.num_classes, T), dtype=jnp.float32)
    mask_t = jnp.ones((B, cfg.num_classes, T), dtype=jnp.float32)

    params = init_params(kp, cfg)
    outputs = multi_stage_forward(params, cfg, x_s, x_t, mask_s, mask_t,
                                  beta=[0.5, 0.5], reverse=False)
    jax.block_until_ready(outputs)
    print("KERNEL_OK")
</pallas_src>

<mosaic_0001>
module attributes {stable_mosaic.version = 11 : i64} {
  func.func @_fused_kernel(%arg0: i32, %arg1: memref<64x512xbf16, #tpu.memory_space<vmem>>, %arg2: memref<32x32xbf16, #tpu.memory_space<vmem>>, %arg3: memref<32x1xf32, #tpu.memory_space<vmem>>, %arg4: memref<8x32xbf16, #tpu.memory_space<vmem>>, %arg5: memref<8x1xf32, #tpu.memory_space<vmem>>, %arg6: memref<32x64xbf16, #tpu.memory_space<vmem>>, %arg7: memref<32x1xf32, #tpu.memory_space<vmem>>, %arg8: memref<3x32x96xbf16, #tpu.memory_space<vmem>>, %arg9: memref<3x32x1xf32, #tpu.memory_space<vmem>>, %arg10: memref<3x32x32xbf16, #tpu.memory_space<vmem>>, %arg11: memref<3x32x1xf32, #tpu.memory_space<vmem>>, %arg12: memref<8x32xbf16, #tpu.memory_space<vmem>>, %arg13: memref<8x1xf32, #tpu.memory_space<vmem>>, %arg14: memref<32x8xbf16, #tpu.memory_space<vmem>>, %arg15: memref<32x1xf32, #tpu.memory_space<vmem>>, %arg16: memref<3x32x96xbf16, #tpu.memory_space<vmem>>, %arg17: memref<3x32x1xf32, #tpu.memory_space<vmem>>, %arg18: memref<3x32x32xbf16, #tpu.memory_space<vmem>>, %arg19: memref<3x32x1xf32, #tpu.memory_space<vmem>>, %arg20: memref<8x32xbf16, #tpu.memory_space<vmem>>, %arg21: memref<8x1xf32, #tpu.memory_space<vmem>>, %arg22: memref<2x32x512xf32, #tpu.memory_space<vmem>>, %arg23: memref<2x8x512xf32, #tpu.memory_space<vmem>>, %arg24: memref<2x8x512xf32, #tpu.memory_space<vmem>>, %arg25: memref<2x8x512xf32, #tpu.memory_space<vmem>>) attributes {dimension_semantics = [#tpu.dimension_semantics<arbitrary>], iteration_bounds = array<i64: 1>, scalar_prefetch = 0 : i64, scratch_operands = 0 : i64, tpu.core_type = #tpu.core_type<tc>, window_params = [{pipeline_mode = #tpu.pipeline_mode<synchronous>, transform_indices = @transform_0, window_bounds = array<i64: 64, 512>}, {pipeline_mode = #tpu.pipeline_mode<synchronous>, transform_indices = @transform_1, window_bounds = array<i64: 32, 32>}, {pipeline_mode = #tpu.pipeline_mode<synchronous>, transform_indices = @transform_2, window_bounds = array<i64: 32, 1>}, {pipeline_mode = #tpu.pipeline_mode<synchronous>, transform_indices = @transform_3, window_bounds = array<i64: 8, 32>}, {pipeline_mode = #tpu.pipeline_mode<synchronous>, transform_indices = @transform_4, window_bounds = array<i64: 8, 1>}, {pipeline_mode = #tpu.pipeline_mode<synchronous>, transform_indices = @transform_5, window_bounds = array<i64: 32, 64>}, {pipeline_mode = #tpu.pipeline_mode<synchronous>, transform_indices = @transform_6, window_bounds = array<i64: 32, 1>}, {pipeline_mode = #tpu.pipeline_mode<synchronous>, transform_indices = @transform_7, window_bounds = array<i64: 3, 32, 96>}, {pipeline_mode = #tpu.pipeline_mode<synchronous>, transform_indices = @transform_8, window_bounds = array<i64: 3, 32, 1>}, {pipeline_mode = #tpu.pipeline_mode<synchronous>, transform_indices = @transform_9, window_bounds = array<i64: 3, 32, 32>}, {pipeline_mode = #tpu.pipeline_mode<synchronous>, transform_indices = @transform_10, window_bounds = array<i64: 3, 32, 1>}, {pipeline_mode = #tpu.pipeline_mode<synchronous>, transform_indices = @transform_11, window_bounds = array<i64: 8, 32>}, {pipeline_mode = #tpu.pipeline_mode<synchronous>, transform_indices = @transform_12, window_bounds = array<i64: 8, 1>}, {pipeline_mode = #tpu.pipeline_mode<synchronous>, transform_indices = @transform_13, window_bounds = array<i64: 32, 8>}, {pipeline_mode = #tpu.pipeline_mode<synchronous>, transform_indices = @transform_14, window_bounds = array<i64: 32, 1>}, {pipeline_mode = #tpu.pipeline_mode<synchronous>, transform_indices = @transform_15, window_bounds = array<i64: 3, 32, 96>}, {pipeline_mode = #tpu.pipeline_mode<synchronous>, transform_indices = @transform_16, window_bounds = array<i64: 3, 32, 1>}, {pipeline_mode = #tpu.pipeline_mode<synchronous>, transform_indices = @transform_17, window_bounds = array<i64: 3, 32, 32>}, {pipeline_mode = #tpu.pipeline_mode<synchronous>, transform_indices = @transform_18, window_bounds = array<i64: 3, 32, 1>}, {pipeline_mode = #tpu.pipeline_mode<synchronous>, transform_indices = @transform_19, window_bounds = array<i64: 8, 32>}, {pipeline_mode = #tpu.pipeline_mode<synchronous>, transform_indices = @transform_20, window_bounds = array<i64: 8, 1>}, {pipeline_mode = #tpu.pipeline_mode<synchronous>, transform_indices = @transform_21, window_bounds = array<i64: 2, 32, 512>}, {pipeline_mode = #tpu.pipeline_mode<synchronous>, transform_indices = @transform_22, window_bounds = array<i64: 2, 8, 512>}, {pipeline_mode = #tpu.pipeline_mode<synchronous>, transform_indices = @transform_23, window_bounds = array<i64: 2, 8, 512>}, {pipeline_mode = #tpu.pipeline_mode<synchronous>, transform_indices = @transform_24, window_bounds = array<i64: 2, 8, 512>}]} {
    %0 = tpu.iota {dimensions = array<i32: 1>} : vector<1x512xi32>
    %c128_i32 = arith.constant 128 : i32
    %c0_i32 = arith.constant 0 : i32
    %1 = arith.cmpi eq, %c128_i32, %c0_i32 : i32
    %c1_i32 = arith.constant 1 : i32
    %2 = arith.select %1, %c1_i32, %c128_i32 : i32
    %3 = vector.broadcast %2 : i32 to vector<1x512xi32>
    %4 = arith.remsi %0, %3 : vector<1x512xi32>
    %c0_i32_0 = arith.constant 0 : i32
    %5 = vector.broadcast %c0_i32_0 : i32 to vector<1x512xi32>
    %6 = arith.cmpi ne, %4, %5 : vector<1x512xi32>
    %c0_i32_1 = arith.constant 0 : i32
    %7 = vector.broadcast %c0_i32_1 : i32 to vector<1x512xi32>
    %8 = arith.cmpi slt, %4, %7 : vector<1x512xi32>
    %c0_i32_2 = arith.constant 0 : i32
    %9 = arith.cmpi slt, %2, %c0_i32_2 : i32
    %10 = vector.broadcast %9 : i1 to vector<1x512xi1>
    %11 = vector.broadcast %10 : vector<1x512xi1> to vector<1x512xi1>
    %12 = arith.xori %8, %11 : vector<1x512xi1>
    %13 = arith.andi %12, %6 : vector<1x512xi1>
    %14 = vector.broadcast %2 : i32 to vector<1x512xi32>
    %15 = arith.addi %4, %14 : vector<1x512xi32>
    %16 = arith.select %13, %15, %4 : vector<1x512xi1>, vector<1x512xi32>
    %c0 = arith.constant 0 : index
    %c0_3 = arith.constant 0 : index
    %17 = vector.load %arg2[%c0, %c0_3] : memref<32x32xbf16, #tpu.memory_space<vmem>>, vector<32x32xbf16>
    %c0_4 = arith.constant 0 : index
    %c0_5 = arith.constant 0 : index
    %18 = vector.load %arg3[%c0_4, %c0_5] : memref<32x1xf32, #tpu.memory_space<vmem>>, vector<32x1xf32>
    %c0_6 = arith.constant 0 : index
    %c0_7 = arith.constant 0 : index
    %19 = vector.load %arg4[%c0_6, %c0_7] : memref<8x32xbf16, #tpu.memory_space<vmem>>, vector<8x32xbf16>
    %c0_8 = arith.constant 0 : index
    %c0_9 = arith.constant 0 : index
    %20 = vector.load %arg5[%c0_8, %c0_9] : memref<8x1xf32, #tpu.memory_space<vmem>>, vector<8x1xf32>
    %c0_10 = arith.constant 0 : index
    %c0_11 = arith.constant 0 : index
    %21 = vector.load %arg1[%c0_10, %c0_11] : memref<64x512xbf16, #tpu.memory_space<vmem>>, vector<64x512xbf16>
    %c0_12 = arith.constant 0 : index
    %c0_13 = arith.constant 0 : index
    %22 = vector.load %arg6[%c0_12, %c0_13] : memref<32x64xbf16, #tpu.memory_space<vmem>>, vector<32x64xbf16>
    %cst = arith.constant dense<0.000000e+00> : vector<32x512xf32>
    %23 = tpu.matmul %22, %21, %cst {dimension_numbers = #tpu.dot_dimension_numbers<[1], [0], [0], [1], [0, 0, 1, 1], [], []>} : vector<32x64xbf16>, vector<64x512xbf16>, vector<32x512xf32> -> vector<32x512xf32>
    %c0_14 = arith.constant 0 : index
    %c0_15 = arith.constant 0 : index
    %24 = vector.load %arg7[%c0_14, %c0_15] : memref<32x1xf32, #tpu.memory_space<vmem>>, vector<32x1xf32>
    %25 = vector.broadcast %24 : vector<32x1xf32> to vector<32x512xf32>
    %26 = arith.addf %23, %25 : vector<32x512xf32>
    %c1_i32_16 = arith.constant 1 : i32
    %27 = vector.broadcast %c1_i32_16 : i32 to vector<1x512xi32>
    %28 = arith.cmpi sge, %16, %27 : vector<1x512xi32>
    %c1_i32_17 = arith.constant 1 : i32
    %29 = tpu.dynamic_rotate %26 by %c1_i32_17 dim 1 : vector<32x512xf32>, i32 -> vector<32x512xf32>
    %cst_18 = arith.constant 0.000000e+00 : f32
    %30 = vector.shape_cast %28 : vector<1x512xi1> to vector<1x512xi1>
    %31 = vector.broadcast %30 : vector<1x512xi1> to vector<32x512xi1>
    %32 = vector.broadcast %cst_18 : f32 to vector<32x512xf32>
    %33 = arith.select %31, %29, %32 : vector<32x512xi1>, vector<32x512xf32>
    %c127_i32 = arith.constant 127 : i32
    %34 = vector.broadcast %c127_i32 : i32 to vector<1x512xi32>
    %35 = arith.cmpi slt, %16, %34 : vector<1x512xi32>
    %c511_i32 = arith.constant 511 : i32
    %36 = tpu.dynamic_rotate %26 by %c511_i32 dim 1 : vector<32x512xf32>, i32 -> vector<32x512xf32>
    %cst_19 = arith.constant 0.000000e+00 : f32
    %37 = vector.shape_cast %35 : vector<1x512xi1> to vector<1x512xi1>
    %38 = vector.broadcast %37 : vector<1x512xi1> to vector<32x512xi1>
    %39 = vector.broadcast %cst_19 : f32 to vector<32x512xf32>
    %40 = arith.select %38, %36, %39 : vector<32x512xi1>, vector<32x512xf32>
    %41 = tpu.concatenate %33, %26, %40 in 0 : vector<32x512xf32>, vector<32x512xf32>, vector<32x512xf32> -> vector<96x512xf32>
    %42 = arith.truncf %41 : vector<96x512xf32> to vector<96x512xbf16>
    %c0_20 = arith.constant 0 : index
    %c0_21 = arith.constant 0 : index
    %c0_22 = arith.constant 0 : index
    %43 = vector.load %arg8[%c0_20, %c0_21, %c0_22] : memref<3x32x96xbf16, #tpu.memory_space<vmem>>, vector<1x32x96xbf16>
    %44 = vector.shape_cast %43 : vector<1x32x96xbf16> to vector<32x96xbf16>
    %cst_23 = arith.constant dense<0.000000e+00> : vector<32x512xf32>
    %45 = tpu.matmul %44, %42, %cst_23 {dimension_numbers = #tpu.dot_dimension_numbers<[1], [0], [0], [1], [0, 0, 1, 1], [], []>} : vector<32x96xbf16>, vector<96x512xbf16>, vector<32x512xf32> -> vector<32x512xf32>
    %c0_24 = arith.constant 0 : index
    %c0_25 = arith.constant 0 : index
    %c0_26 = arith.constant 0 : index
    %46 = vector.load %arg9[%c0_24, %c0_25, %c0_26] : memref<3x32x1xf32, #tpu.memory_space<vmem>>, vector<1x32x1xf32>
    %47 = vector.shape_cast %46 : vector<1x32x1xf32> to vector<32x1xf32>
    %48 = vector.broadcast %47 : vector<32x1xf32> to vector<32x512xf32>
    %49 = arith.addf %45, %48 : vector<32x512xf32>
    %cst_27 = arith.constant 0.000000e+00 : f32
    %50 = vector.broadcast %cst_27 : f32 to vector<32x512xf32>
    %51 = arith.maximumf %49, %50 : vector<32x512xf32>
    %c0_28 = arith.constant 0 : index
    %c0_29 = arith.constant 0 : index
    %c0_30 = arith.constant 0 : index
    %52 = vector.load %arg10[%c0_28, %c0_29, %c0_30] : memref<3x32x32xbf16, #tpu.memory_space<vmem>>, vector<1x32x32xbf16>
    %53 = vector.shape_cast %52 : vector<1x32x32xbf16> to vector<32x32xbf16>
    %54 = arith.truncf %51 : vector<32x512xf32> to vector<32x512xbf16>
    %cst_31 = arith.constant dense<0.000000e+00> : vector<32x512xf32>
    %55 = tpu.matmul %53, %54, %cst_31 {dimension_numbers = #tpu.dot_dimension_numbers<[1], [0], [0], [1], [0, 0, 1, 1], [], []>} : vector<32x32xbf16>, vector<32x512xbf16>, vector<32x512xf32> -> vector<32x512xf32>
    %c0_32 = arith.constant 0 : index
    %c0_33 = arith.constant 0 : index
    %c0_34 = arith.constant 0 : index
    %56 = vector.load %arg11[%c0_32, %c0_33, %c0_34] : memref<3x32x1xf32, #tpu.memory_space<vmem>>, vector<1x32x1xf32>
    %57 = vector.shape_cast %56 : vector<1x32x1xf32> to vector<32x1xf32>
    %58 = vector.broadcast %57 : vector<32x1xf32> to vector<32x512xf32>
    %59 = arith.addf %55, %58 : vector<32x512xf32>
    %60 = arith.addf %26, %59 : vector<32x512xf32>
    %c2_i32 = arith.constant 2 : i32
    %61 = vector.broadcast %c2_i32 : i32 to vector<1x512xi32>
    %62 = arith.cmpi sge, %16, %61 : vector<1x512xi32>
    %c2_i32_35 = arith.constant 2 : i32
    %63 = tpu.dynamic_rotate %60 by %c2_i32_35 dim 1 : vector<32x512xf32>, i32 -> vector<32x512xf32>
    %cst_36 = arith.constant 0.000000e+00 : f32
    %64 = vector.shape_cast %62 : vector<1x512xi1> to vector<1x512xi1>
    %65 = vector.broadcast %64 : vector<1x512xi1> to vector<32x512xi1>
    %66 = vector.broadcast %cst_36 : f32 to vector<32x512xf32>
    %67 = arith.select %65, %63, %66 : vector<32x512xi1>, vector<32x512xf32>
    %c126_i32 = arith.constant 126 : i32
    %68 = vector.broadcast %c126_i32 : i32 to vector<1x512xi32>
    %69 = arith.cmpi slt, %16, %68 : vector<1x512xi32>
    %c510_i32 = arith.constant 510 : i32
    %70 = tpu.dynamic_rotate %60 by %c510_i32 dim 1 : vector<32x512xf32>, i32 -> vector<32x512xf32>
    %cst_37 = arith.constant 0.000000e+00 : f32
    %71 = vector.shape_cast %69 : vector<1x512xi1> to vector<1x512xi1>
    %72 = vector.broadcast %71 : vector<1x512xi1> to vector<32x512xi1>
    %73 = vector.broadcast %cst_37 : f32 to vector<32x512xf32>
    %74 = arith.select %72, %70, %73 : vector<32x512xi1>, vector<32x512xf32>
    %75 = tpu.concatenate %67, %60, %74 in 0 : vector<32x512xf32>, vector<32x512xf32>, vector<32x512xf32> -> vector<96x512xf32>
    %76 = arith.truncf %75 : vector<96x512xf32> to vector<96x512xbf16>
    %c1 = arith.constant 1 : index
    %c0_38 = arith.constant 0 : index
    %c0_39 = arith.constant 0 : index
    %77 = vector.load %arg8[%c1, %c0_38, %c0_39] : memref<3x32x96xbf16, #tpu.memory_space<vmem>>, vector<1x32x96xbf16>
    %78 = vector.shape_cast %77 : vector<1x32x96xbf16> to vector<32x96xbf16>
    %cst_40 = arith.constant dense<0.000000e+00> : vector<32x512xf32>
    %79 = tpu.matmul %78, %76, %cst_40 {dimension_numbers = #tpu.dot_dimension_numbers<[1], [0], [0], [1], [0, 0, 1, 1], [], []>} : vector<32x96xbf16>, vector<96x512xbf16>, vector<32x512xf32> -> vector<32x512xf32>
    %c1_41 = arith.constant 1 : index
    %c0_42 = arith.constant 0 : index
    %c0_43 = arith.constant 0 : index
    %80 = vector.load %arg9[%c1_41, %c0_42, %c0_43] : memref<3x32x1xf32, #tpu.memory_space<vmem>>, vector<1x32x1xf32>
    %81 = vector.shape_cast %80 : vector<1x32x1xf32> to vector<32x1xf32>
    %82 = vector.broadcast %81 : vector<32x1xf32> to vector<32x512xf32>
    %83 = arith.addf %79, %82 : vector<32x512xf32>
    %cst_44 = arith.constant 0.000000e+00 : f32
    %84 = vector.broadcast %cst_44 : f32 to vector<32x512xf32>
    %85 = arith.maximumf %83, %84 : vector<32x512xf32>
    %c1_45 = arith.constant 1 : index
    %c0_46 = arith.constant 0 : index
    %c0_47 = arith.constant 0 : index
    %86 = vector.load %arg10[%c1_45, %c0_46, %c0_47] : memref<3x32x32xbf16, #tpu.memory_space<vmem>>, vector<1x32x32xbf16>
    %87 = vector.shape_cast %86 : vector<1x32x32xbf16> to vector<32x32xbf16>
    %88 = arith.truncf %85 : vector<32x512xf32> to vector<32x512xbf16>
    %cst_48 = arith.constant dense<0.000000e+00> : vector<32x512xf32>
    %89 = tpu.matmul %87, %88, %cst_48 {dimension_numbers = #tpu.dot_dimension_numbers<[1], [0], [0], [1], [0, 0, 1, 1], [], []>} : vector<32x32xbf16>, vector<32x512xbf16>, vector<32x512xf32> -> vector<32x512xf32>
    %c1_49 = arith.constant 1 : index
    %c0_50 = arith.constant 0 : index
    %c0_51 = arith.constant 0 : index
    %90 = vector.load %arg11[%c1_49, %c0_50, %c0_51] : memref<3x32x1xf32, #tpu.memory_space<vmem>>, vector<1x32x1xf32>
    %91 = vector.shape_cast %90 : vector<1x32x1xf32> to vector<32x1xf32>
    %92 = vector.broadcast %91 : vector<32x1xf32> to vector<32x512xf32>
    %93 = arith.addf %89, %92 : vector<32x512xf32>
    %94 = arith.addf %60, %93 : vector<32x512xf32>
    %c4_i32 = arith.constant 4 : i32
    %95 = vector.broadcast %c4_i32 : i32 to vector<1x512xi32>
    %96 = arith.cmpi sge, %16, %95 : vector<1x512xi32>
    %c4_i32_52 = arith.constant 4 : i32
    %97 = tpu.dynamic_rotate %94 by %c4_i32_52 dim 1 : vector<32x512xf32>, i32 -> vector<32x512xf32>
    %cst_53 = arith.constant 0.000000e+00 : f32
    %98 = vector.shape_cast %96 : vector<1x512xi1> to vector<1x512xi1>
    %99 = vector.broadcast %98 : vector<1x512xi1> to vector<32x512xi1>
    %100 = vector.broadcast %cst_53 : f32 to vector<32x512xf32>
    %101 = arith.select %99, %97, %100 : vector<32x512xi1>, vector<32x512xf32>
    %c124_i32 = arith.constant 124 : i32
    %102 = vector.broadcast %c124_i32 : i32 to vector<1x512xi32>
    %103 = arith.cmpi slt, %16, %102 : vector<1x512xi32>
    %c508_i32 = arith.constant 508 : i32
    %104 = tpu.dynamic_rotate %94 by %c508_i32 dim 1 : vector<32x512xf32>, i32 -> vector<32x512xf32>
    %cst_54 = arith.constant 0.000000e+00 : f32
    %105 = vector.shape_cast %103 : vector<1x512xi1> to vector<1x512xi1>
    %106 = vector.broadcast %105 : vector<1x512xi1> to vector<32x512xi1>
    %107 = vector.broadcast %cst_54 : f32 to vector<32x512xf32>
    %108 = arith.select %106, %104, %107 : vector<32x512xi1>, vector<32x512xf32>
    %109 = tpu.concatenate %101, %94, %108 in 0 : vector<32x512xf32>, vector<32x512xf32>, vector<32x512xf32> -> vector<96x512xf32>
    %110 = arith.truncf %109 : vector<96x512xf32> to vector<96x512xbf16>
    %c2 = arith.constant 2 : index
    %c0_55 = arith.constant 0 : index
    %c0_56 = arith.constant 0 : index
    %111 = vector.load %arg8[%c2, %c0_55, %c0_56] : memref<3x32x96xbf16, #tpu.memory_space<vmem>>, vector<1x32x96xbf16>
    %112 = vector.shape_cast %111 : vector<1x32x96xbf16> to vector<32x96xbf16>
    %cst_57 = arith.constant dense<0.000000e+00> : vector<32x512xf32>
    %113 = tpu.matmul %112, %110, %cst_57 {dimension_numbers = #tpu.dot_dimension_numbers<[1], [0], [0], [1], [0, 0, 1, 1], [], []>} : vector<32x96xbf16>, vector<96x512xbf16>, vector<32x512xf32> -> vector<32x512xf32>
    %c2_58 = arith.constant 2 : index
    %c0_59 = arith.constant 0 : index
    %c0_60 = arith.constant 0 : index
    %114 = vector.load %arg9[%c2_58, %c0_59, %c0_60] : memref<3x32x1xf32, #tpu.memory_space<vmem>>, vector<1x32x1xf32>
    %115 = vector.shape_cast %114 : vector<1x32x1xf32> to vector<32x1xf32>
    %116 = vector.broadcast %115 : vector<32x1xf32> to vector<32x512xf32>
    %117 = arith.addf %113, %116 : vector<32x512xf32>
    %cst_61 = arith.constant 0.000000e+00 : f32
    %118 = vector.broadcast %cst_61 : f32 to vector<32x512xf32>
    %119 = arith.maximumf %117, %118 : vector<32x512xf32>
    %c2_62 = arith.constant 2 : index
    %c0_63 = arith.constant 0 : index
    %c0_64 = arith.constant 0 : index
    %120 = vector.load %arg10[%c2_62, %c0_63, %c0_64] : memref<3x32x32xbf16, #tpu.memory_space<vmem>>, vector<1x32x32xbf16>
    %121 = vector.shape_cast %120 : vector<1x32x32xbf16> to vector<32x32xbf16>
    %122 = arith.truncf %119 : vector<32x512xf32> to vector<32x512xbf16>
    %cst_65 = arith.constant dense<0.000000e+00> : vector<32x512xf32>
    %123 = tpu.matmul %121, %122, %cst_65 {dimension_numbers = #tpu.dot_dimension_numbers<[1], [0], [0], [1], [0, 0, 1, 1], [], []>} : vector<32x32xbf16>, vector<32x512xbf16>, vector<32x512xf32> -> vector<32x512xf32>
    %c2_66 = arith.constant 2 : index
    %c0_67 = arith.constant 0 : index
    %c0_68 = arith.constant 0 : index
    %124 = vector.load %arg11[%c2_66, %c0_67, %c0_68] : memref<3x32x1xf32, #tpu.memory_space<vmem>>, vector<1x32x1xf32>
    %125 = vector.shape_cast %124 : vector<1x32x1xf32> to vector<32x1xf32>
    %126 = vector.broadcast %125 : vector<32x1xf32> to vector<32x512xf32>
    %127 = arith.addf %123, %126 : vector<32x512xf32>
    %128 = arith.addf %94, %127 : vector<32x512xf32>
    %c0_69 = arith.constant 0 : index
    %c0_70 = arith.constant 0 : index
    %c0_71 = arith.constant 0 : index
    %129 = vector.load %arg22[%c0_69, %c0_70, %c0_71] : memref<2x32x512xf32, #tpu.memory_space<vmem>>, vector<1x32x512xf32>
    %130 = vector.shape_cast %129 : vector<1x32x512xf32> to vector<32x512xf32>
    %131 = vector.shape_cast %128 : vector<32x512xf32> to vector<1x32x512xf32>
    tpu.vector_store %arg22[%c0_69, %c0_70, %c0_71], %131 {strides = array<i32>} : memref<2x32x512xf32, #tpu.memory_space<vmem>>, vector<1x32x512xf32>,
    %132 = arith.truncf %128 : vector<32x512xf32> to vector<32x512xbf16>
    %c0_72 = arith.constant 0 : index
    %c0_73 = arith.constant 0 : index
    %133 = vector.load %arg12[%c0_72, %c0_73] : memref<8x32xbf16, #tpu.memory_space<vmem>>, vector<8x32xbf16>
    %cst_74 = arith.constant dense<0.000000e+00> : vector<8x512xf32>
    %134 = tpu.matmul %133, %132, %cst_74 {dimension_numbers = #tpu.dot_dimension_numbers<[1], [0], [0], [1], [0, 0, 1, 1], [], []>} : vector<8x32xbf16>, vector<32x512xbf16>, vector<8x512xf32> -> vector<8x512xf32>
    %c0_75 = arith.constant 0 : index
    %c0_76 = arith.constant 0 : index
    %135 = vector.load %arg13[%c0_75, %c0_76] : memref<8x1xf32, #tpu.memory_space<vmem>>, vector<8x1xf32>
    %136 = vector.broadcast %135 : vector<8x1xf32> to vector<8x512xf32>
    %137 = arith.addf %134, %136 : vector<8x512xf32>
    %c0_77 = arith.constant 0 : index
    %c0_78 = arith.constant 0 : index
    %c0_79 = arith.constant 0 : index
    %138 = vector.load %arg23[%c0_77, %c0_78, %c0_79] : memref<2x8x512xf32, #tpu.memory_space<vmem>>, vector<1x8x512xf32>
    %139 = vector.shape_cast %138 : vector<1x8x512xf32> to vector<8x512xf32>
    %140 = vector.shape_cast %137 : vector<8x512xf32> to vector<1x8x512xf32>
    tpu.vector_store %arg23[%c0_77, %c0_78, %c0_79], %140 {strides = array<i32>} : memref<2x8x512xf32, #tpu.memory_space<vmem>>, vector<1x8x512xf32>,
    %cst_80 = arith.constant dense<0xFF800000> : vector<512xf32>
    %141 = vector.multi_reduction <maximumf>, %137, %cst_80 [0] : vector<8x512xf32> to vector<512xf32>
    %142 = vector.shape_cast %141 : vector<512xf32> to vector<1x512xf32>
    %143 = vector.broadcast %142 : vector<1x512xf32> to vector<8x512xf32>
    %144 = arith.subf %137, %143 : vector<8x512xf32>
    %145 = math.exp %144 : vector<8x512xf32>
    %cst_81 = arith.constant dense<0.000000e+00> : vector<512xf32>
    %146 = vector.multi_reduction <add>, %145, %cst_81 [0] : vector<8x512xf32> to vector<512xf32>
    %147 = vector.shape_cast %146 : vector<512xf32> to vector<1x512xf32>
    %148 = tpu.reciprocal %147 {approx = true} : vector<1x512xf32> -> vector<1x512xf32>
    %149 = vector.broadcast %148 : vector<1x512xf32> to vector<8x512xf32>
    %150 = arith.mulf %145, %149 : vector<8x512xf32>
    %c0_82 = arith.constant 0 : index
    %c0_83 = arith.constant 0 : index
    %c0_84 = arith.constant 0 : index
    %151 = vector.load %arg24[%c0_82, %c0_83, %c0_84] : memref<2x8x512xf32, #tpu.memory_space<vmem>>, vector<1x8x512xf32>
    %152 = vector.shape_cast %151 : vector<1x8x512xf32> to vector<8x512xf32>
    %153 = vector.shape_cast %150 : vector<8x512xf32> to vector<1x8x512xf32>
    tpu.vector_store %arg24[%c0_82, %c0_83, %c0_84], %153 {strides = array<i32>} : memref<2x8x512xf32, #tpu.memory_space<vmem>>, vector<1x8x512xf32>,
    %cst_85 = arith.constant dense<0.000000e+00> : vector<32x512xf32>
    %154 = tpu.matmul %17, %132, %cst_85 {dimension_numbers = #tpu.dot_dimension_numbers<[1], [0], [0], [1], [0, 0, 1, 1], [], []>} : vector<32x32xbf16>, vector<32x512xbf16>, vector<32x512xf32> -> vector<32x512xf32>
    %155 = vector.broadcast %18 : vector<32x1xf32> to vector<32x512xf32>
    %156 = arith.addf %154, %155 : vector<32x512xf32>
    %cst_86 = arith.constant 0.000000e+00 : f32
    %157 = vector.broadcast %cst_86 : f32 to vector<32x512xf32>
    %158 = arith.maximumf %156, %157 : vector<32x512xf32>
    %159 = arith.truncf %158 : vector<32x512xf32> to vector<32x512xbf16>
    %cst_87 = arith.constant dense<0.000000e+00> : vector<8x512xf32>
    %160 = tpu.matmul %19, %159, %cst_87 {dimension_numbers = #tpu.dot_dimension_numbers<[1], [0], [0], [1], [0, 0, 1, 1], [], []>} : vector<8x32xbf16>, vector<32x512xbf16>, vector<8x512xf32> -> vector<8x512xf32>
    %161 = vector.broadcast %20 : vector<8x1xf32> to vector<8x512xf32>
    %162 = arith.addf %160, %161 : vector<8x512xf32>
    %c0_88 = arith.constant 0 : index
    %c0_89 = arith.constant 0 : index
    %c0_90 = arith.constant 0 : index
    %163 = vector.load %arg25[%c0_88, %c0_89, %c0_90] : memref<2x8x512xf32, #tpu.memory_space<vmem>>, vector<1x8x512xf32>
    %164 = vector.shape_cast %163 : vector<1x8x512xf32> to vector<8x512xf32>
    %165 = vector.shape_cast %162 : vector<8x512xf32> to vector<1x8x512xf32>
    tpu.vector_store %arg25[%c0_88, %c0_89, %c0_90], %165 {strides = array<i32>} : memref<2x8x512xf32, #tpu.memory_space<vmem>>, vector<1x8x512xf32>,
    %166 = arith.truncf %150 : vector<8x512xf32> to vector<8x512xbf16>
    %c0_91 = arith.constant 0 : index
    %c0_92 = arith.constant 0 : index
    %167 = vector.load %arg14[%c0_91, %c0_92] : memref<32x8xbf16, #tpu.memory_space<vmem>>, vector<32x8xbf16>
    %cst_93 = arith.constant dense<0.000000e+00> : vector<32x512xf32>
    %168 = tpu.matmul %167, %166, %cst_93 {dimension_numbers = #tpu.dot_dimension_numbers<[1], [0], [0], [1], [0, 0, 1, 1], [], []>} : vector<32x8xbf16>, vector<8x512xbf16>, vector<32x512xf32> -> vector<32x512xf32>
    %c0_94 = arith.constant 0 : index
    %c0_95 = arith.constant 0 : index
    %169 = vector.load %arg15[%c0_94, %c0_95] : memref<32x1xf32, #tpu.memory_space<vmem>>, vector<32x1xf32>
    %170 = vector.broadcast %169 : vector<32x1xf32> to vector<32x512xf32>
    %171 = arith.addf %168, %170 : vector<32x512xf32>
    %c1_i32_96 = arith.constant 1 : i32
    %172 = vector.broadcast %c1_i32_96 : i32 to vector<1x512xi32>
    %173 = arith.cmpi sge, %16, %172 : vector<1x512xi32>
    %c1_i32_97 = arith.constant 1 : i32
    %174 = tpu.dynamic_rotate %171 by %c1_i32_97 dim 1 : vector<32x512xf32>, i32 -> vector<32x512xf32>
    %cst_98 = arith.constant 0.000000e+00 : f32
    %175 = vector.shape_cast %173 : vector<1x512xi1> to vector<1x512xi1>
    %176 = vector.broadcast %175 : vector<1x512xi1> to vector<32x512xi1>
    %177 = vector.broadcast %cst_98 : f32 to vector<32x512xf32>
    %178 = arith.select %176, %174, %177 : vector<32x512xi1>, vector<32x512xf32>
    %c127_i32_99 = arith.constant 127 : i32
    %179 = vector.broadcast %c127_i32_99 : i32 to vector<1x512xi32>
    %180 = arith.cmpi slt, %16, %179 : vector<1x512xi32>
    %c511_i32_100 = arith.constant 511 : i32
    %181 = tpu.dynamic_rotate %171 by %c511_i32_100 dim 1 : vector<32x512xf32>, i32 -> vector<32x512xf32>
    %cst_101 = arith.constant 0.000000e+00 : f32
    %182 = vector.shape_cast %180 : vector<1x512xi1> to vector<1x512xi1>
    %183 = vector.broadcast %182 : vector<1x512xi1> to vector<32x512xi1>
    %184 = vector.broadcast %cst_101 : f32 to vector<32x512xf32>
    %185 = arith.select %183, %181, %184 : vector<32x512xi1>, vector<32x512xf32>
    %186 = tpu.concatenate %178, %171, %185 in 0 : vector<32x512xf32>, vector<32x512xf32>, vector<32x512xf32> -> vector<96x512xf32>
    %187 = arith.truncf %186 : vector<96x512xf32> to vector<96x512xbf16>
    %c0_102 = arith.constant 0 : index
    %c0_103 = arith.constant 0 : index
    %c0_104 = arith.constant 0 : index
    %188 = vector.load %arg16[%c0_102, %c0_103, %c0_104] : memref<3x32x96xbf16, #tpu.memory_space<vmem>>, vector<1x32x96xbf16>
    %189 = vector.shape_cast %188 : vector<1x32x96xbf16> to vector<32x96xbf16>
    %cst_105 = arith.constant dense<0.000000e+00> : vector<32x512xf32>
    %190 = tpu.matmul %189, %187, %cst_105 {dimension_numbers = #tpu.dot_dimension_numbers<[1], [0], [0], [1], [0, 0, 1, 1], [], []>} : vector<32x96xbf16>, vector<96x512xbf16>, vector<32x512xf32> -> vector<32x512xf32>
    %c0_106 = arith.constant 0 : index
    %c0_107 = arith.constant 0 : index
    %c0_108 = arith.constant 0 : index
    %191 = vector.load %arg17[%c0_106, %c0_107, %c0_108] : memref<3x32x1xf32, #tpu.memory_space<vmem>>, vector<1x32x1xf32>
    %192 = vector.shape_cast %191 : vector<1x32x1xf32> to vector<32x1xf32>
    %193 = vector.broadcast %192 : vector<32x1xf32> to vector<32x512xf32>
    %194 = arith.addf %190, %193 : vector<32x512xf32>
    %cst_109 = arith.constant 0.000000e+00 : f32
    %195 = vector.broadcast %cst_109 : f32 to vector<32x512xf32>
    %196 = arith.maximumf %194, %195 : vector<32x512xf32>
    %c0_110 = arith.constant 0 : index
    %c0_111 = arith.constant 0 : index
    %c0_112 = arith.constant 0 : index
    %197 = vector.load %arg18[%c0_110, %c0_111, %c0_112] : memref<3x32x32xbf16, #tpu.memory_space<vmem>>, vector<1x32x32xbf16>
    %198 = vector.shape_cast %197 : vector<1x32x32xbf16> to vector<32x32xbf16>
    %199 = arith.truncf %196 : vector<32x512xf32> to vector<32x512xbf16>
    %cst_113 = arith.constant dense<0.000000e+00> : vector<32x512xf32>
    %200 = tpu.matmul %198, %199, %cst_113 {dimension_numbers = #tpu.dot_dimension_numbers<[1], [0], [0], [1], [0, 0, 1, 1], [], []>} : vector<32x32xbf16>, vector<32x512xbf16>, vector<32x512xf32> -> vector<32x512xf32>
    %c0_114 = arith.constant 0 : index
    %c0_115 = arith.constant 0 : index
    %c0_116 = arith.constant 0 : index
    %201 = vector.load %arg19[%c0_114, %c0_115, %c0_116] : memref<3x32x1xf32, #tpu.memory_space<vmem>>, vector<1x32x1xf32>
    %202 = vector.shape_cast %201 : vector<1x32x1xf32> to vector<32x1xf32>
    %203 = vector.broadcast %202 : vector<32x1xf32> to vector<32x512xf32>
    %204 = arith.addf %200, %203 : vector<32x512xf32>
    %205 = arith.addf %171, %204 : vector<32x512xf32>
    %c2_i32_117 = arith.constant 2 : i32
    %206 = vector.broadcast %c2_i32_117 : i32 to vector<1x512xi32>
    %207 = arith.cmpi sge, %16, %206 : vector<1x512xi32>
    %c2_i32_118 = arith.constant 2 : i32
    %208 = tpu.dynamic_rotate %205 by %c2_i32_118 dim 1 : vector<32x512xf32>, i32 -> vector<32x512xf32>
    %cst_119 = arith.constant 0.000000e+00 : f32
    %209 = vector.shape_cast %207 : vector<1x512xi1> to vector<1x512xi1>
    %210 = vector.broadcast %209 : vector<1x512xi1> to vector<32x512xi1>
    %211 = vector.broadcast %cst_119 : f32 to vector<32x512xf32>
    %212 = arith.select %210, %208, %211 : vector<32x512xi1>, vector<32x512xf32>
    %c126_i32_120 = arith.constant 126 : i32
    %213 = vector.broadcast %c126_i32_120 : i32 to vector<1x512xi32>
    %214 = arith.cmpi slt, %16, %213 : vector<1x512xi32>
    %c510_i32_121 = arith.constant 510 : i32
    %215 = tpu.dynamic_rotate %205 by %c510_i32_121 dim 1 : vector<32x512xf32>, i32 -> vector<32x512xf32>
    %cst_122 = arith.constant 0.000000e+00 : f32
    %216 = vector.shape_cast %214 : vector<1x512xi1> to vector<1x512xi1>
    %217 = vector.broadcast %216 : vector<1x512xi1> to vector<32x512xi1>
    %218 = vector.broadcast %cst_122 : f32 to vector<32x512xf32>
    %219 = arith.select %217, %215, %218 : vector<32x512xi1>, vector<32x512xf32>
    %220 = tpu.concatenate %212, %205, %219 in 0 : vector<32x512xf32>, vector<32x512xf32>, vector<32x512xf32> -> vector<96x512xf32>
    %221 = arith.truncf %220 : vector<96x512xf32> to vector<96x512xbf16>
    %c1_123 = arith.constant 1 : index
    %c0_124 = arith.constant 0 : index
    %c0_125 = arith.constant 0 : index
    %222 = vector.load %arg16[%c1_123, %c0_124, %c0_125] : memref<3x32x96xbf16, #tpu.memory_space<vmem>>, vector<1x32x96xbf16>
    %223 = vector.shape_cast %222 : vector<1x32x96xbf16> to vector<32x96xbf16>
    %cst_126 = arith.constant dense<0.000000e+00> : vector<32x512xf32>
    %224 = tpu.matmul %223, %221, %cst_126 {dimension_numbers = #tpu.dot_dimension_numbers<[1], [0], [0], [1], [0, 0, 1, 1], [], []>} : vector<32x96xbf16>, vector<96x512xbf16>, vector<32x512xf32> -> vector<32x512xf32>
    %c1_127 = arith.constant 1 : index
    %c0_128 = arith.constant 0 : index
    %c0_129 = arith.constant 0 : index
    %225 = vector.load %arg17[%c1_127, %c0_128, %c0_129] : memref<3x32x1xf32, #tpu.memory_space<vmem>>, vector<1x32x1xf32>
    %226 = vector.shape_cast %225 : vector<1x32x1xf32> to vector<32x1xf32>
    %227 = vector.broadcast %226 : vector<32x1xf32> to vector<32x512xf32>
    %228 = arith.addf %224, %227 : vector<32x512xf32>
    %cst_130 = arith.constant 0.000000e+00 : f32
    %229 = vector.broadcast %cst_130 : f32 to vector<32x512xf32>
    %230 = arith.maximumf %228, %229 : vector<32x512xf32>
    %c1_131 = arith.constant 1 : index
    %c0_132 = arith.constant 0 : index
    %c0_133 = arith.constant 0 : index
    %231 = vector.load %arg18[%c1_131, %c0_132, %c0_133] : memref<3x32x32xbf16, #tpu.memory_space<vmem>>, vector<1x32x32xbf16>
    %232 = vector.shape_cast %231 : vector<1x32x32xbf16> to vector<32x32xbf16>
    %233 = arith.truncf %230 : vector<32x512xf32> to vector<32x512xbf16>
    %cst_134 = arith.constant dense<0.000000e+00> : vector<32x512xf32>
    %234 = tpu.matmul %232, %233, %cst_134 {dimension_numbers = #tpu.dot_dimension_numbers<[1], [0], [0], [1], [0, 0, 1, 1], [], []>} : vector<32x32xbf16>, vector<32x512xbf16>, vector<32x512xf32> -> vector<32x512xf32>
    %c1_135 = arith.constant 1 : index
    %c0_136 = arith.constant 0 : index
    %c0_137 = arith.constant 0 : index
    %235 = vector.load %arg19[%c1_135, %c0_136, %c0_137] : memref<3x32x1xf32, #tpu.memory_space<vmem>>, vector<1x32x1xf32>
    %236 = vector.shape_cast %235 : vector<1x32x1xf32> to vector<32x1xf32>
    %237 = vector.broadcast %236 : vector<32x1xf32> to vector<32x512xf32>
    %238 = arith.addf %234, %237 : vector<32x512xf32>
    %239 = arith.addf %205, %238 : vector<32x512xf32>
    %c4_i32_138 = arith.constant 4 : i32
    %240 = vector.broadcast %c4_i32_138 : i32 to vector<1x512xi32>
    %241 = arith.cmpi sge, %16, %240 : vector<1x512xi32>
    %c4_i32_139 = arith.constant 4 : i32
    %242 = tpu.dynamic_rotate %239 by %c4_i32_139 dim 1 : vector<32x512xf32>, i32 -> vector<32x512xf32>
    %cst_140 = arith.constant 0.000000e+00 : f32
    %243 = vector.shape_cast %241 : vector<1x512xi1> to vector<1x512xi1>
    %244 = vector.broadcast %243 : vector<1x512xi1> to vector<32x512xi1>
    %245 = vector.broadcast %cst_140 : f32 to vector<32x512xf32>
    %246 = arith.select %244, %242, %245 : vector<32x512xi1>, vector<32x512xf32>
    %c124_i32_141 = arith.constant 124 : i32
    %247 = vector.broadcast %c124_i32_141 : i32 to vector<1x512xi32>
    %248 = arith.cmpi slt, %16, %247 : vector<1x512xi32>
    %c508_i32_142 = arith.constant 508 : i32
    %249 = tpu.dynamic_rotate %239 by %c508_i32_142 dim 1 : vector<32x512xf32>, i32 -> vector<32x512xf32>
    %cst_143 = arith.constant 0.000000e+00 : f32
    %250 = vector.shape_cast %248 : vector<1x512xi1> to vector<1x512xi1>
    %251 = vector.broadcast %250 : vector<1x512xi1> to vector<32x512xi1>
    %252 = vector.broadcast %cst_143 : f32 to vector<32x512xf32>
    %253 = arith.select %251, %249, %252 : vector<32x512xi1>, vector<32x512xf32>
    %254 = tpu.concatenate %246, %239, %253 in 0 : vector<32x512xf32>, vector<32x512xf32>, vector<32x512xf32> -> vector<96x512xf32>
    %255 = arith.truncf %254 : vector<96x512xf32> to vector<96x512xbf16>
    %c2_144 = arith.constant 2 : index
    %c0_145 = arith.constant 0 : index
    %c0_146 = arith.constant 0 : index
    %256 = vector.load %arg16[%c2_144, %c0_145, %c0_146] : memref<3x32x96xbf16, #tpu.memory_space<vmem>>, vector<1x32x96xbf16>
    %257 = vector.shape_cast %256 : vector<1x32x96xbf16> to vector<32x96xbf16>
    %cst_147 = arith.constant dense<0.000000e+00> : vector<32x512xf32>
    %258 = tpu.matmul %257, %255, %cst_147 {dimension_numbers = #tpu.dot_dimension_numbers<[1], [0], [0], [1], [0, 0, 1, 1], [], []>} : vector<32x96xbf16>, vector<96x512xbf16>, vector<32x512xf32> -> vector<32x512xf32>
    %c2_148 = arith.constant 2 : index
    %c0_149 = arith.constant 0 : index
    %c0_150 = arith.constant 0 : index
    %259 = vector.load %arg17[%c2_148, %c0_149, %c0_150] : memref<3x32x1xf32, #tpu.memory_space<vmem>>, vector<1x32x1xf32>
    %260 = vector.shape_cast %259 : vector<1x32x1xf32> to vector<32x1xf32>
    %261 = vector.broadcast %260 : vector<32x1xf32> to vector<32x512xf32>
    %262 = arith.addf %258, %261 : vector<32x512xf32>
    %cst_151 = arith.constant 0.000000e+00 : f32
    %263 = vector.broadcast %cst_151 : f32 to vector<32x512xf32>
    %264 = arith.maximumf %262, %263 : vector<32x512xf32>
    %c2_152 = arith.constant 2 : index
    %c0_153 = arith.constant 0 : index
    %c0_154 = arith.constant 0 : index
    %265 = vector.load %arg18[%c2_152, %c0_153, %c0_154] : memref<3x32x32xbf16, #tpu.memory_space<vmem>>, vector<1x32x32xbf16>
    %266 = vector.shape_cast %265 : vector<1x32x32xbf16> to vector<32x32xbf16>
    %267 = arith.truncf %264 : vector<32x512xf32> to vector<32x512xbf16>
    %cst_155 = arith.constant dense<0.000000e+00> : vector<32x512xf32>
    %268 = tpu.matmul %266, %267, %cst_155 {dimension_numbers = #tpu.dot_dimension_numbers<[1], [0], [0], [1], [0, 0, 1, 1], [], []>} : vector<32x32xbf16>, vector<32x512xbf16>, vector<32x512xf32> -> vector<32x512xf32>
    %c2_156 = arith.constant 2 : index
    %c0_157 = arith.constant 0 : index
    %c0_158 = arith.constant 0 : index
    %269 = vector.load %arg19[%c2_156, %c0_157, %c0_158] : memref<3x32x1xf32, #tpu.memory_space<vmem>>, vector<1x32x1xf32>
    %270 = vector.shape_cast %269 : vector<1x32x1xf32> to vector<32x1xf32>
    %271 = vector.broadcast %270 : vector<32x1xf32> to vector<32x512xf32>
    %272 = arith.addf %268, %271 : vector<32x512xf32>
    %273 = arith.addf %239, %272 : vector<32x512xf32>
    %c1_159 = arith.constant 1 : index
    %c0_160 = arith.constant 0 : index
    %c0_161 = arith.constant 0 : index
    %274 = vector.load %arg22[%c1_159, %c0_160, %c0_161] : memref<2x32x512xf32, #tpu.memory_space<vmem>>, vector<1x32x512xf32>
    %275 = vector.shape_cast %274 : vector<1x32x512xf32> to vector<32x512xf32>
    %276 = vector.shape_cast %273 : vector<32x512xf32> to vector<1x32x512xf32>
    tpu.vector_store %arg22[%c1_159, %c0_160, %c0_161], %276 {strides = array<i32>} : memref<2x32x512xf32, #tpu.memory_space<vmem>>, vector<1x32x512xf32>,
    %277 = arith.truncf %273 : vector<32x512xf32> to vector<32x512xbf16>
    %c0_162 = arith.constant 0 : index
    %c0_163 = arith.constant 0 : index
    %278 = vector.load %arg20[%c0_162, %c0_163] : memref<8x32xbf16, #tpu.memory_space<vmem>>, vector<8x32xbf16>
    %cst_164 = arith.constant dense<0.000000e+00> : vector<8x512xf32>
    %279 = tpu.matmul %278, %277, %cst_164 {dimension_numbers = #tpu.dot_dimension_numbers<[1], [0], [0], [1], [0, 0, 1, 1], [], []>} : vector<8x32xbf16>, vector<32x512xbf16>, vector<8x512xf32> -> vector<8x512xf32>
    %c0_165 = arith.constant 0 : index
    %c0_166 = arith.constant 0 : index
    %280 = vector.load %arg21[%c0_165, %c0_166] : memref<8x1xf32, #tpu.memory_space<vmem>>, vector<8x1xf32>
    %281 = vector.broadcast %280 : vector<8x1xf32> to vector<8x512xf32>
    %282 = arith.addf %279, %281 : vector<8x512xf32>
    %c1_167 = arith.constant 1 : index
    %c0_168 = arith.constant 0 : index
    %c0_169 = arith.constant 0 : index
    %283 = vector.load %arg23[%c1_167, %c0_168, %c0_169] : memref<2x8x512xf32, #tpu.memory_space<vmem>>, vector<1x8x512xf32>
    %284 = vector.shape_cast %283 : vector<1x8x512xf32> to vector<8x512xf32>
    %285 = vector.shape_cast %282 : vector<8x512xf32> to vector<1x8x512xf32>
    tpu.vector_store %arg23[%c1_167, %c0_168, %c0_169], %285 {strides = array<i32>} : memref<2x8x512xf32, #tpu.memory_space<vmem>>, vector<1x8x512xf32>,
    %cst_170 = arith.constant dense<0xFF800000> : vector<512xf32>
    %286 = vector.multi_reduction <maximumf>, %282, %cst_170 [0] : vector<8x512xf32> to vector<512xf32>
    %287 = vector.shape_cast %286 : vector<512xf32> to vector<1x512xf32>
    %288 = vector.broadcast %287 : vector<1x512xf32> to vector<8x512xf32>
    %289 = arith.subf %282, %288 : vector<8x512xf32>
    %290 = math.exp %289 : vector<8x512xf32>
    %cst_171 = arith.constant dense<0.000000e+00> : vector<512xf32>
    %291 = vector.multi_reduction <add>, %290, %cst_171 [0] : vector<8x512xf32> to vector<512xf32>
    %292 = vector.shape_cast %291 : vector<512xf32> to vector<1x512xf32>
    %293 = tpu.reciprocal %292 {approx = true} : vector<1x512xf32> -> vector<1x512xf32>
    %294 = vector.broadcast %293 : vector<1x512xf32> to vector<8x512xf32>
    %295 = arith.mulf %290, %294 : vector<8x512xf32>
    %c1_172 = arith.constant 1 : index
    %c0_173 = arith.constant 0 : index
    %c0_174 = arith.constant 0 : index
    %296 = vector.load %arg24[%c1_172, %c0_173, %c0_174] : memref<2x8x512xf32, #tpu.memory_space<vmem>>, vector<1x8x512xf32>
    %297 = vector.shape_cast %296 : vector<1x8x512xf32> to vector<8x512xf32>
    %298 = vector.shape_cast %295 : vector<8x512xf32> to vector<1x8x512xf32>
    tpu.vector_store %arg24[%c1_172, %c0_173, %c0_174], %298 {strides = array<i32>} : memref<2x8x512xf32, #tpu.memory_space<vmem>>, vector<1x8x512xf32>,
    %cst_175 = arith.constant dense<0.000000e+00> : vector<32x512xf32>
    %299 = tpu.matmul %17, %277, %cst_175 {dimension_numbers = #tpu.dot_dimension_numbers<[1], [0], [0], [1], [0, 0, 1, 1], [], []>} : vector<32x32xbf16>, vector<32x512xbf16>, vector<32x512xf32> -> vector<32x512xf32>
    %300 = vector.broadcast %18 : vector<32x1xf32> to vector<32x512xf32>
    %301 = arith.addf %299, %300 : vector<32x512xf32>
    %cst_176 = arith.constant 0.000000e+00 : f32
    %302 = vector.broadcast %cst_176 : f32 to vector<32x512xf32>
    %303 = arith.maximumf %301, %302 : vector<32x512xf32>
    %304 = arith.truncf %303 : vector<32x512xf32> to vector<32x512xbf16>
    %cst_177 = arith.constant dense<0.000000e+00> : vector<8x512xf32>
    %305 = tpu.matmul %19, %304, %cst_177 {dimension_numbers = #tpu.dot_dimension_numbers<[1], [0], [0], [1], [0, 0, 1, 1], [], []>} : vector<8x32xbf16>, vector<32x512xbf16>, vector<8x512xf32> -> vector<8x512xf32>
    %306 = vector.broadcast %20 : vector<8x1xf32> to vector<8x512xf32>
    %307 = arith.addf %305, %306 : vector<8x512xf32>
    %c1_178 = arith.constant 1 : index
    %c0_179 = arith.constant 0 : index
    %c0_180 = arith.constant 0 : index
    %308 = vector.load %arg25[%c1_178, %c0_179, %c0_180] : memref<2x8x512xf32, #tpu.memory_space<vmem>>, vector<1x8x512xf32>
    %309 = vector.shape_cast %308 : vector<1x8x512xf32> to vector<8x512xf32>
    %310 = vector.shape_cast %307 : vector<8x512xf32> to vector<1x8x512xf32>
    tpu.vector_store %arg25[%c1_178, %c0_179, %c0_180], %310 {strides = array<i32>} : memref<2x8x512xf32, #tpu.memory_space<vmem>>, vector<1x8x512xf32>,
    return
  }
  func.func @transform_0(%arg0: i32) -> (i32, i32) {
    %c0_i32 = arith.constant 0 : i32
    %c0_i32_0 = arith.constant 0 : i32
    %c0_i32_1 = arith.constant 0 : i32
    return %c0_i32, %c0_i32_0 : i32, i32
  }
  func.func @transform_1(%arg0: i32) -> (i32, i32) {
    %c0_i32 = arith.constant 0 : i32
    %c0_i32_0 = arith.constant 0 : i32
    %c0_i32_1 = arith.constant 0 : i32
    return %c0_i32, %c0_i32_0 : i32, i32
  }
  func.func @transform_2(%arg0: i32) -> (i32, i32) {
    %c0_i32 = arith.constant 0 : i32
    %c0_i32_0 = arith.constant 0 : i32
    %c0_i32_1 = arith.constant 0 : i32
    return %c0_i32, %c0_i32_0 : i32, i32
  }
  func.func @transform_3(%arg0: i32) -> (i32, i32) {
    %c0_i32 = arith.constant 0 : i32
    %c0_i32_0 = arith.constant 0 : i32
    %c0_i32_1 = arith.constant 0 : i32
    return %c0_i32, %c0_i32_0 : i32, i32
  }
  func.func @transform_4(%arg0: i32) -> (i32, i32) {
    %c0_i32 = arith.constant 0 : i32
    %c0_i32_0 = arith.constant 0 : i32
    %c0_i32_1 = arith.constant 0 : i32
    return %c0_i32, %c0_i32_0 : i32, i32
  }
  func.func @transform_5(%arg0: i32) -> (i32, i32) {
    %c0_i32 = arith.constant 0 : i32
    %c0_i32_0 = arith.constant 0 : i32
    %c0_i32_1 = arith.constant 0 : i32
    return %c0_i32, %c0_i32_0 : i32, i32
  }
  func.func @transform_6(%arg0: i32) -> (i32, i32) {
    %c0_i32 = arith.constant 0 : i32
    %c0_i32_0 = arith.constant 0 : i32
    %c0_i32_1 = arith.constant 0 : i32
    return %c0_i32, %c0_i32_0 : i32, i32
  }
  func.func @transform_7(%arg0: i32) -> (i32, i32, i32) {
    %c0_i32 = arith.constant 0 : i32
    %c0_i32_0 = arith.constant 0 : i32
    %c0_i32_1 = arith.constant 0 : i32
    %c0_i32_2 = arith.constant 0 : i32
    return %c0_i32, %c0_i32_0, %c0_i32_1 : i32, i32, i32
  }
  func.func @transform_8(%arg0: i32) -> (i32, i32, i32) {
    %c0_i32 = arith.constant 0 : i32
    %c0_i32_0 = arith.constant 0 : i32
    %c0_i32_1 = arith.constant 0 : i32
    %c0_i32_2 = arith.constant 0 : i32
    return %c0_i32, %c0_i32_0, %c0_i32_1 : i32, i32, i32
  }
  func.func @transform_9(%arg0: i32) -> (i32, i32, i32) {
    %c0_i32 = arith.constant 0 : i32
    %c0_i32_0 = arith.constant 0 : i32
    %c0_i32_1 = arith.constant 0 : i32
    %c0_i32_2 = arith.constant 0 : i32
    return %c0_i32, %c0_i32_0, %c0_i32_1 : i32, i32, i32
  }
  func.func @transform_10(%arg0: i32) -> (i32, i32, i32) {
    %c0_i32 = arith.constant 0 : i32
    %c0_i32_0 = arith.constant 0 : i32
    %c0_i32_1 = arith.constant 0 : i32
    %c0_i32_2 = arith.constant 0 : i32
    return %c0_i32, %c0_i32_0, %c0_i32_1 : i32, i32, i32
  }
  func.func @transform_11(%arg0: i32) -> (i32, i32) {
    %c0_i32 = arith.constant 0 : i32
    %c0_i32_0 = arith.constant 0 : i32
    %c0_i32_1 = arith.constant 0 : i32
    return %c0_i32, %c0_i32_0 : i32, i32
  }
  func.func @transform_12(%arg0: i32) -> (i32, i32) {
    %c0_i32 = arith.constant 0 : i32
    %c0_i32_0 = arith.constant 0 : i32
    %c0_i32_1 = arith.constant 0 : i32
    return %c0_i32, %c0_i32_0 : i32, i32
  }
  func.func @transform_13(%arg0: i32) -> (i32, i32) {
    %c0_i32 = arith.constant 0 : i32
    %c0_i32_0 = arith.constant 0 : i32
    %c0_i32_1 = arith.constant 0 : i32
    return %c0_i32, %c0_i32_0 : i32, i32
  }
  func.func @transform_14(%arg0: i32) -> (i32, i32) {
    %c0_i32 = arith.constant 0 : i32
    %c0_i32_0 = arith.constant 0 : i32
    %c0_i32_1 = arith.constant 0 : i32
    return %c0_i32, %c0_i32_0 : i32, i32
  }
  func.func @transform_15(%arg0: i32) -> (i32, i32, i32) {
    %c0_i32 = arith.constant 0 : i32
    %c0_i32_0 = arith.constant 0 : i32
    %c0_i32_1 = arith.constant 0 : i32
    %c0_i32_2 = arith.constant 0 : i32
    return %c0_i32, %c0_i32_0, %c0_i32_1 : i32, i32, i32
  }
  func.func @transform_16(%arg0: i32) -> (i32, i32, i32) {
    %c0_i32 = arith.constant 0 : i32
    %c0_i32_0 = arith.constant 0 : i32
    %c0_i32_1 = arith.constant 0 : i32
    %c0_i32_2 = arith.constant 0 : i32
    return %c0_i32, %c0_i32_0, %c0_i32_1 : i32, i32, i32
  }
  func.func @transform_17(%arg0: i32) -> (i32, i32, i32) {
    %c0_i32 = arith.constant 0 : i32
    %c0_i32_0 = arith.constant 0 : i32
    %c0_i32_1 = arith.constant 0 : i32
    %c0_i32_2 = arith.constant 0 : i32
    return %c0_i32, %c0_i32_0, %c0_i32_1 : i32, i32, i32
  }
  func.func @transform_18(%arg0: i32) -> (i32, i32, i32) {
    %c0_i32 = arith.constant 0 : i32
    %c0_i32_0 = arith.constant 0 : i32
    %c0_i32_1 = arith.constant 0 : i32
    %c0_i32_2 = arith.constant 0 : i32
    return %c0_i32, %c0_i32_0, %c0_i32_1 : i32, i32, i32
  }
  func.func @transform_19(%arg0: i32) -> (i32, i32) {
    %c0_i32 = arith.constant 0 : i32
    %c0_i32_0 = arith.constant 0 : i32
    %c0_i32_1 = arith.constant 0 : i32
    return %c0_i32, %c0_i32_0 : i32, i32
  }
  func.func @transform_20(%arg0: i32) -> (i32, i32) {
    %c0_i32 = arith.constant 0 : i32
    %c0_i32_0 = arith.constant 0 : i32
    %c0_i32_1 = arith.constant 0 : i32
    return %c0_i32, %c0_i32_0 : i32, i32
  }
  func.func @transform_21(%arg0: i32) -> (i32, i32, i32) {
    %c0_i32 = arith.constant 0 : i32
    %c0_i32_0 = arith.constant 0 : i32
    %c0_i32_1 = arith.constant 0 : i32
    %c0_i32_2 = arith.constant 0 : i32
    return %c0_i32, %c0_i32_0, %c0_i32_1 : i32, i32, i32
  }
  func.func @transform_22(%arg0: i32) -> (i32, i32, i32) {
    %c0_i32 = arith.constant 0 : i32
    %c0_i32_0 = arith.constant 0 : i32
    %c0_i32_1 = arith.constant 0 : i32
    %c0_i32_2 = arith.constant 0 : i32
    return %c0_i32, %c0_i32_0, %c0_i32_1 : i32, i32, i32
  }
  func.func @transform_23(%arg0: i32) -> (i32, i32, i32) {
    %c0_i32 = arith.constant 0 : i32
    %c0_i32_0 = arith.constant 0 : i32
    %c0_i32_1 = arith.constant 0 : i32
    %c0_i32_2 = arith.constant 0 : i32
    return %c0_i32, %c0_i32_0, %c0_i32_1 : i32, i32, i32
  }
  func.func @transform_24(%arg0: i32) -> (i32, i32, i32) {
    %c0_i32 = arith.constant 0 : i32
    %c0_i32_0 = arith.constant 0 : i32
    %c0_i32_1 = arith.constant 0 : i32
    %c0_i32_2 = arith.constant 0 : i32
    return %c0_i32, %c0_i32_0, %c0_i32_1 : i32, i32, i32
  }
}

</mosaic_0001>

<llo_original>
// kernel: tpu_custom_call.1
$region0: #{tpu_custom_call.1}
  #allocation0 [shape = 'u32[]', space=smem, size = 0x4, offset = 0x4, fixed_abs, tag = 'smem constant byte address 0x4 - core index']
  #allocation1 [shape = 'u32[144,128]{1,0:T(1,128)}', space=vmem, size = 0x12000, scoped, tag = 'internal scratch']
  %s0 = inlined_call_operand.vmem [shape: bf16[64,512], index: 0, kind: input, shape index: {}]
  %s1 = inlined_call_operand.vmem [shape: bf16[32,32], index: 1, kind: input, shape index: {}]
  %s2 = inlined_call_operand.vmem [shape: f32[32,1], index: 2, kind: input, shape index: {}]
  %s3 = inlined_call_operand.vmem [shape: bf16[8,32], index: 3, kind: input, shape index: {}]
  %s4 = inlined_call_operand.vmem [shape: f32[8,1], index: 4, kind: input, shape index: {}]
  %s5 = inlined_call_operand.vmem [shape: bf16[32,64], index: 5, kind: input, shape index: {}]
  %s6 = inlined_call_operand.vmem [shape: f32[32,1], index: 6, kind: input, shape index: {}]
  %s7 = inlined_call_operand.vmem [shape: bf16[3,32,96], index: 7, kind: input, shape index: {}]
  %s8 = inlined_call_operand.vmem [shape: f32[3,32,1], index: 8, kind: input, shape index: {}]
  %s9 = inlined_call_operand.vmem [shape: bf16[3,32,32], index: 9, kind: input, shape index: {}]
  %s10 = inlined_call_operand.vmem [shape: f32[3,32,1], index: 10, kind: input, shape index: {}]
  %s11 = inlined_call_operand.vmem [shape: bf16[8,32], index: 11, kind: input, shape index: {}]
  %s12 = inlined_call_operand.vmem [shape: f32[8,1], index: 12, kind: input, shape index: {}]
  %s13 = inlined_call_operand.vmem [shape: bf16[32,8], index: 13, kind: input, shape index: {}]
  %s14 = inlined_call_operand.vmem [shape: f32[32,1], index: 14, kind: input, shape index: {}]
  %s15 = inlined_call_operand.vmem [shape: bf16[3,32,96], index: 15, kind: input, shape index: {}]
  %s16 = inlined_call_operand.vmem [shape: f32[3,32,1], index: 16, kind: input, shape index: {}]
  %s17 = inlined_call_operand.vmem [shape: bf16[3,32,32], index: 17, kind: input, shape index: {}]
  %s18 = inlined_call_operand.vmem [shape: f32[3,32,1], index: 18, kind: input, shape index: {}]
  %s19 = inlined_call_operand.vmem [shape: bf16[8,32], index: 19, kind: input, shape index: {}]
  %s20 = inlined_call_operand.vmem [shape: f32[8,1], index: 20, kind: input, shape index: {}]
  %s21 = inlined_call_operand.hbm [shape: f32[2,32,512], index: 21, kind: output, shape index: {0}]
  %s22 = inlined_call_operand.hbm [shape: f32[2,8,512], index: 22, kind: output, shape index: {1}]
  %s23 = inlined_call_operand.hbm [shape: f32[2,8,512], index: 23, kind: output, shape index: {2}]
  %s24 = inlined_call_operand.hbm [shape: f32[2,8,512], index: 24, kind: output, shape index: {3}]
  %25 = xla_tuple %s21, %s22, %s23, %s24
  %s26 = sld [smem:[#allocation0]]
  $region118: #{tpu_custom_call.1} parent=0
    _
  %s28 = ssub.s32 1, %s26
  %s29 = scalar_select 0, %s28, %s26
  $region1: #{tpu_custom_call.1} parent=0
    #allocation2 [shape = 'u8[131072]{0}', space=vmem, size = 0x20000, scoped, tag = 'output window, operand 0, single buffered']
    #allocation3 [shape = 's32[1]{0}', space=sflag, size = 0x4, scoped, tag = 'scoped memory for tpu_custom_call.1']
    #allocation4 [shape = 'u8[32768]{0}', space=vmem, size = 0x8000, scoped, tag = 'output window, operand 1, single buffered']
    #allocation5 [shape = 's32[1]{0}', space=sflag, size = 0x4, scoped, tag = 'scoped memory for tpu_custom_call.1']
    #allocation6 [shape = 'u8[32768]{0}', space=vmem, size = 0x8000, scoped, tag = 'output window, operand 2, single buffered']
    #allocation7 [shape = 'u8[32768]{0}', space=vmem, size = 0x8000, scoped, tag = 'output window, operand 3, single buffered']
    #allocation8 [shape = 's32[1]{0}', space=sflag, size = 0x4, scoped, tag = 'scoped memory for tpu_custom_call.1']
    %30 = vsyncpa [#allocation3], 0
    %31 = vsyncpa [#allocation5], 0
    %32 = vsyncpa [#allocation8], 0
    // Predicated region
    $region2: #{tpu_custom_call.1} parent=1 // pred_check
      _
    $region3: #{tpu_custom_call.1} parent=1 // pred_check_branch
      %34 = sbr.rel (0) target = $region5
    $region4: #{tpu_custom_call.1} parent=1 // pred_region
      _
    $region5: #{tpu_custom_call.1} parent=1 // pred_fallthru
      _
    // Predicated region
    $region6: #{tpu_custom_call.1} parent=1 // pred_check
      _
    $region7: #{tpu_custom_call.1} parent=1 // pred_check_branch
      %36 = sbr.rel (0) target = $region9
    $region8: #{tpu_custom_call.1} parent=1 // pred_region
      _
    $region9: #{tpu_custom_call.1} parent=1 // pred_fallthru
      _
    // Predicated region
    $region10: #{tpu_custom_call.1} parent=1 // pred_check
      _
    $region11: #{tpu_custom_call.1} parent=1 // pred_check_branch
      %38 = sbr.rel (0) target = $region13
    $region12: #{tpu_custom_call.1} parent=1 // pred_region
      _
    $region13: #{tpu_custom_call.1} parent=1 // pred_fallthru
      _
    // Predicated region
    $region14: #{tpu_custom_call.1} parent=1 // pred_check
      _
    $region15: #{tpu_custom_call.1} parent=1 // pred_check_branch
      %40 = sbr.rel (0) target = $region17
    $region16: #{tpu_custom_call.1} parent=1 // pred_region
      _
    $region17: #{tpu_custom_call.1} parent=1 // pred_fallthru
      _
    // Predicated region
    $region18: #{tpu_custom_call.1} parent=1 // pred_check
      _
    $region19: #{tpu_custom_call.1} parent=1 // pred_check_branch
      %42 = sbr.rel (0) target = $region21
    $region20: #{tpu_custom_call.1} parent=1 // pred_region
      _
    $region21: #{tpu_custom_call.1} parent=1 // pred_fallthru
      _
    // Predicated region
    $region22: #{tpu_custom_call.1} parent=1 // pred_check
      _
    $region23: #{tpu_custom_call.1} parent=1 // pred_check_branch
      %44 = sbr.rel (0) target = $region25
    $region24: #{tpu_custom_call.1} parent=1 // pred_region
      _
    $region25: #{tpu_custom_call.1} parent=1 // pred_fallthru
      _
    // Predicated region
    $region26: #{tpu_custom_call.1} parent=1 // pred_check
      _
    $region27: #{tpu_custom_call.1} parent=1 // pred_check_branch
      %46 = sbr.rel (0) target = $region29
    $region28: #{tpu_custom_call.1} parent=1 // pred_region
      _
    $region29: #{tpu_custom_call.1} parent=1 // pred_fallthru
      _
    // Predicated region
    $region30: #{tpu_custom_call.1} parent=1 // pred_check
      _
    $region31: #{tpu_custom_call.1} parent=1 // pred_check_branch
      %48 = sbr.rel (0) target = $region33
    $region32: #{tpu_custom_call.1} parent=1 // pred_region
      _
    $region33: #{tpu_custom_call.1} parent=1 // pred_fallthru
      _
    // Predicated region
    $region34: #{tpu_custom_call.1} parent=1 // pred_check
      _
    $region35: #{tpu_custom_call.1} parent=1 // pred_check_branch
      %50 = sbr.rel (0) target = $region37
    $region36: #{tpu_custom_call.1} parent=1 // pred_region
      _
    $region37: #{tpu_custom_call.1} parent=1 // pred_fallthru
      _
    // Predicated region
    $region38: #{tpu_custom_call.1} parent=1 // pred_check
      _
    $region39: #{tpu_custom_call.1} parent=1 // pred_check_branch
      %52 = sbr.rel (0) target = $region41
    $region40: #{tpu_custom_call.1} parent=1 // pred_region
      _
    $region41: #{tpu_custom_call.1} parent=1 // pred_fallthru
      _
    // Predicated region
    $region42: #{tpu_custom_call.1} parent=1 // pred_check
      _
    $region43: #{tpu_custom_call.1} parent=1 // pred_check_branch
      %54 = sbr.rel (0) target = $region45
    $region44: #{tpu_custom_call.1} parent=1 // pred_region
      _
    $region45: #{tpu_custom_call.1} parent=1 // pred_fallthru
      _
    // Predicated region
    $region46: #{tpu_custom_call.1} parent=1 // pred_check
      _
    $region47: #{tpu_custom_call.1} parent=1 // pred_check_branch
      %56 = sbr.rel (0) target = $region49
    $region48: #{tpu_custom_call.1} parent=1 // pred_region
      _
    $region49: #{tpu_custom_call.1} parent=1 // pred_fallthru
      _
    // Predicated region
    $region50: #{tpu_custom_call.1} parent=1 // pred_check
      _
    $region51: #{tpu_custom_call.1} parent=1 // pred_check_branch
      %58 = sbr.rel (0) target = $region53
    $region52: #{tpu_custom_call.1} parent=1 // pred_region
      _
    $region53: #{tpu_custom_call.1} parent=1 // pred_fallthru
      _
    // Predicated region
    $region54: #{tpu_custom_call.1} parent=1 // pred_check
      _
    $region55: #{tpu_custom_call.1} parent=1 // pred_check_branch
      %60 = sbr.rel (0) target = $region57
    $region56: #{tpu_custom_call.1} parent=1 // pred_region
      _
    $region57: #{tpu_custom_call.1} parent=1 // pred_fallthru
      _
    // Predicated region
    $region58: #{tpu_custom_call.1} parent=1 // pred_check
      _
    $region59: #{tpu_custom_call.1} parent=1 // pred_check_branch
      %62 = sbr.rel (0) target = $region61
    $region60: #{tpu_custom_call.1} parent=1 // pred_region
      _
    $region61: #{tpu_custom_call.1} parent=1 // pred_fallthru
      _
    // Predicated region
    $region62: #{tpu_custom_call.1} parent=1 // pred_check
      _
    $region63: #{tpu_custom_call.1} parent=1 // pred_check_branch
      %64 = sbr.rel (0) target = $region65
    $region64: #{tpu_custom_call.1} parent=1 // pred_region
      _
    $region65: #{tpu_custom_call.1} parent=1 // pred_fallthru
      _
    // Predicated region
    $region66: #{tpu_custom_call.1} parent=1 // pred_check
      _
    $region67: #{tpu_custom_call.1} parent=1 // pred_check_branch
      %66 = sbr.rel (0) target = $region69
    $region68: #{tpu_custom_call.1} parent=1 // pred_region
      _
    $region69: #{tpu_custom_call.1} parent=1 // pred_fallthru
      _
    // Predicated region
    $region70: #{tpu_custom_call.1} parent=1 // pred_check
      _
    $region71: #{tpu_custom_call.1} parent=1 // pred_check_branch
      %68 = sbr.rel (0) target = $region73
    $region72: #{tpu_custom_call.1} parent=1 // pred_region
      _
    $region73: #{tpu_custom_call.1} parent=1 // pred_fallthru
      _
    // Predicated region
    $region74: #{tpu_custom_call.1} parent=1 // pred_check
      _
    $region75: #{tpu_custom_call.1} parent=1 // pred_check_branch
      %70 = sbr.rel (0) target = $region77
    $region76: #{tpu_custom_call.1} parent=1 // pred_region
      _
    $region77: #{tpu_custom_call.1} parent=1 // pred_fallthru
      _
    // Predicated region
    $region78: #{tpu_custom_call.1} parent=1 // pred_check
      _
    $region79: #{tpu_custom_call.1} parent=1 // pred_check_branch
      %72 = sbr.rel (0) target = $region81
    $region80: #{tpu_custom_call.1} parent=1 // pred_region
      _
    $region81: #{tpu_custom_call.1} parent=1 // pred_fallthru
      _
    // Predicated region
    $region82: #{tpu_custom_call.1} parent=1 // pred_check
      _
    $region83: #{tpu_custom_call.1} parent=1 // pred_check_branch
      %74 = sbr.rel (0) target = $region85
    $region84: #{tpu_custom_call.1} parent=1 // pred_region
      _
    $region85: #{tpu_custom_call.1} parent=1 // pred_fallthru
      _
    %v76 = vlaneseq
    %v77 = vand.u32 %v76, 127
    %v78 = vadd.s32 %v77, 128
    %v79 = vadd.s32 %v77, 256
    %v80 = vadd.s32 %v77, 384
    %vm81 = vcmp.lt.s32.totalorder %v77, 0
    %v82 = vsub.s32 0, %v77
    %v83 = vsel %vm81, %v82, %v77
    %v84 = vshrl.u32 %v83, 7
    %v85 = vand.u32 %v83, 127
    %v86 = vsub.s32 0, %v85
    %v87 = vsel %vm81, %v86, %v85
    %vm88 = vcmp.lt.s32.totalorder %v78, 0
    %v89 = vsub.s32 0, %v78
    %v90 = vsel %vm88, %v89, %v78
    %v91 = vshrl.u32 %v90, 7
    %v92 = vand.u32 %v90, 127
    %v93 = vsub.s32 0, %v92
    %v94 = vsel %vm88, %v93, %v92
    %vm95 = vcmp.lt.s32.totalorder %v79, 0
    %v96 = vsub.s32 0, %v79
    %v97 = vsel %vm95, %v96, %v79
    %v98 = vshrl.u32 %v97, 7
    %v99 = vand.u32 %v97, 127
    %v100 = vsub.s32 0, %v99
    %v101 = vsel %vm95, %v100, %v99
    %vm102 = vcmp.lt.s32.totalorder %v80, 0
    %v103 = vsub.s32 0, %v80
    %v104 = vsel %vm102, %v103, %v80
    %v105 = vshrl.u32 %v104, 7
    %v106 = vand.u32 %v104, 127
    %v107 = vsub.s32 0, %v106
    %v108 = vsel %vm102, %v107, %v106
    %vm109 = vcmp.ne.s32.totalorder %v87, 0
    %vm110 = vcmp.ne.s32.totalorder %v94, 0
    %vm111 = vcmp.ne.s32.totalorder %v101, 0
    %vm112 = vcmp.ne.s32.totalorder %v108, 0
    %vm113 = vcmp.lt.s32.totalorder %v87, 0
    %vm114 = vcmp.lt.s32.totalorder %v94, 0
    %vm115 = vcmp.lt.s32.totalorder %v101, 0
    %vm116 = vcmp.lt.s32.totalorder %v108, 0
    %vm117 = vmand %vm113, %vm109
    %vm118 = vmand %vm114, %vm110
    %vm119 = vmand %vm115, %vm111
    %vm120 = vmand %vm116, %vm112
    %v121 = vadd.s32 %v87, 128
    %v122 = vadd.s32 %v94, 128
    %v123 = vadd.s32 %v101, 128
    %v124 = vadd.s32 %v108, 128
    %v125 = vsel %vm117, %v121, %v87
    %v126 = vsel %vm118, %v122, %v94
    %v127 = vsel %vm119, %v123, %v101
    %v128 = vsel %vm120, %v124, %v108
    %v129 = vld [vmem:[%s1] sm:$0xf]
    %v130 = vld [vmem:[%s1 + $0x4] sm:$0xf]
    %v131 = vld [vmem:[%s1 + $0x8] sm:$0xf]
    %v132 = vld [vmem:[%s1 + $0xc] sm:$0xf]
    %v133 = vld [vmem:[%s2] sm:$0xff]
    %v134 = vld [vmem:[%s2 + $0x8] sm:$0xff]
    %v135 = vld [vmem:[%s2 + $0x10] sm:$0xff]
    %v136 = vld [vmem:[%s2 + $0x18] sm:$0xff]
    %v137 = vld [vmem:[%s3] sm:$0xf]
    %v138 = vld [vmem:[%s4] sm:$0xff]
    %v139 = vld [vmem:[%s0] sm:$0xff]
    %v140 = vld [vmem:[%s0 + $0x8] sm:$0xff]
    %v141 = vld [vmem:[%s0 + $0x10] sm:$0xff]
    %v142 = vld [vmem:[%s0 + $0x18] sm:$0xff]
    %v143 = vld [vmem:[%s0 + $0x20] sm:$0xff]
    %v144 = vld [vmem:[%s0 + $0x28] sm:$0xff]
    %v145 = vld [vmem:[%s0 + $0x30] sm:$0xff]
    %v146 = vld [vmem:[%s0 + $0x38] sm:$0xff]
    %v147 = vld [vmem:[%s0 + $0x40] sm:$0xff]
    %v148 = vld [vmem:[%s0 + $0x48] sm:$0xff]
    %v149 = vld [vmem:[%s0 + $0x50] sm:$0xff]
    %v150 = vld [vmem:[%s0 + $0x58] sm:$0xff]
    %v151 = vld [vmem:[%s0 + $0x60] sm:$0xff]
    %v152 = vld [vmem:[%s0 + $0x68] sm:$0xff]
    %v153 = vld [vmem:[%s0 + $0x70] sm:$0xff]
    %v154 = vld [vmem:[%s0 + $0x78] sm:$0xff]
    %v155 = vld [vmem:[%s5] sm:$0xf]
    %v156 = vld [vmem:[%s5 + $0x4] sm:$0xf]
    %v157 = vld [vmem:[%s5 + $0x8] sm:$0xf]
    %v158 = vld [vmem:[%s5 + $0xc] sm:$0xf]
    %v159 = vld [vmem:[%s6] sm:$0xff]
    %v160 = vld [vmem:[%s6 + $0x8] sm:$0xff]
    %v161 = vld [vmem:[%s6 + $0x10] sm:$0xff]
    %v162 = vld [vmem:[%s6 + $0x18] sm:$0xff]
    %164 = vset.pattern.permute.xlu0 0
    %165 = vperm.xlu0 %164, %v159
    %v166 = vpop.permute.xlu0 %165
    %169 = vset.pattern.permute.xlu0 0
    %170 = vperm.xlu0 %169, %v160
    %v171 = vpop.permute.xlu0 %170
    %174 = vset.pattern.permute.xlu0 0
    %175 = vperm.xlu0 %174, %v161
    %v176 = vpop.permute.xlu0 %175
    %179 = vset.pattern.permute.xlu0 0
    %180 = vperm.xlu0 %179, %v162
    %v181 = vpop.permute.xlu0 %180
    %v187 = vunpack.c.l.b16 %v155
    %v188 = vunpack.c.l.b16 %v156
    %v189 = vunpack.c.l.b16 %v157
    %v190 = vunpack.c.l.b16 %v158
    %v191 = vpack.c.b16 %v188, %v187
    %v192 = vpack.c.b16 %v190, %v189
    %v209 = vunpack.c.l.b16 %v139
    %v210 = vunpack.c.h.b16 %v139
    %v211 = vunpack.c.l.b16 %v140
    %v212 = vunpack.c.h.b16 %v140
    %v213 = vunpack.c.l.b16 %v141
    %v214 = vunpack.c.h.b16 %v141
    %v215 = vunpack.c.l.b16 %v142
    %v216 = vunpack.c.h.b16 %v142
    %v217 = vunpack.c.l.b16 %v143
    %v218 = vunpack.c.h.b16 %v143
    %v219 = vunpack.c.l.b16 %v144
    %v220 = vunpack.c.h.b16 %v144
    %v221 = vunpack.c.l.b16 %v145
    %v222 = vunpack.c.h.b16 %v145
    %v223 = vunpack.c.l.b16 %v146
    %v224 = vunpack.c.h.b16 %v146
    %v225 = vunpack.c.l.b16 %v147
    %v226 = vunpack.c.h.b16 %v147
    %v227 = vunpack.c.l.b16 %v148
    %v228 = vunpack.c.h.b16 %v148
    %v229 = vunpack.c.l.b16 %v149
    %v230 = vunpack.c.h.b16 %v149
    %v231 = vunpack.c.l.b16 %v150
    %v232 = vunpack.c.h.b16 %v150
    %v233 = vunpack.c.l.b16 %v151
    %v234 = vunpack.c.h.b16 %v151
    %v235 = vunpack.c.l.b16 %v152
    %v236 = vunpack.c.h.b16 %v152
    %v237 = vunpack.c.l.b16 %v153
    %v238 = vunpack.c.h.b16 %v153
    %v239 = vunpack.c.l.b16 %v154
    %v240 = vunpack.c.h.b16 %v154
    %v241 = vpack.c.b16 %v213, %v209
    %v242 = vpack.c.b16 %v214, %v210
    %v243 = vpack.c.b16 %v215, %v211
    %v244 = vpack.c.b16 %v216, %v212
    %v245 = vpack.c.b16 %v221, %v217
    %v246 = vpack.c.b16 %v222, %v218
    %v247 = vpack.c.b16 %v223, %v219
    %v248 = vpack.c.b16 %v224, %v220
    %v249 = vpack.c.b16 %v229, %v225
    %v250 = vpack.c.b16 %v230, %v226
    %v251 = vpack.c.b16 %v231, %v227
    %v252 = vpack.c.b16 %v232, %v228
    %v253 = vpack.c.b16 %v237, %v233
    %v254 = vpack.c.b16 %v238, %v234
    %v255 = vpack.c.b16 %v239, %v235
    %v256 = vpack.c.b16 %v240, %v236
    %vm273 = vcmask 523264
    %v275 = vsel %vm273, %v191, 0
    %v278 = vsel %vm273, %v192, 0
    %280 = vmatprep.subr.bf16.mxu0 0
    %281 = vmatpush1.bf16.msra.mxu0 0
    %282 = vmatprep.subr.bf16.mxu0 0
    %283 = vmatpush1.bf16.msra.mxu0 0
    %284 = vmatprep.subr.bf16.mxu0 0
    %285 = vmatpush1.bf16.msra.mxu0 0
    %286 = vmatprep.subr.bf16.mxu0 0
    %287 = vmatpush1.bf16.msra.mxu0 0
    %288 = vmatprep.subr.bf16.mxu0 %v254
    %289 = vmatpush1.bf16.msra.mxu0 %v253
    %290 = vmatprep.subr.bf16.mxu0 %v250
    %291 = vmatpush1.bf16.msra.mxu0 %v249
    %292 = vmatprep.subr.bf16.mxu0 %v246
    %293 = vmatpush1.bf16.msra.mxu0 %v245
    %294 = vmatprep.subr.bf16.mxu0 %v242
    %295 = vmatpush1.bf16.msra.mxu0 %v241
    %296 = vmatprep.subr.bf16.mxu0 0
    %297 = vmatpush2.bf16.msra.mxu0 0
    %298 = vmatprep.subr.bf16.mxu0 0
    %299 = vmatpush2.bf16.msra.mxu0 0
    %300 = vmatprep.subr.bf16.mxu0 0
    %301 = vmatpush2.bf16.msra.mxu0 0
    %302 = vmatprep.subr.bf16.mxu0 0
    %303 = vmatpush2.bf16.msra.mxu0 0
    %304 = vmatprep.subr.bf16.mxu0 0
    %305 = vmatpush2.bf16.msra.mxu0 0
    %306 = vmatprep.subr.bf16.mxu0 0
    %307 = vmatpush2.bf16.msra.mxu0 0
    %308 = vmatprep.subr.bf16.mxu0 0
    %309 = vmatpush2.bf16.msra.mxu0 0
    %310 = vmatprep.subr.bf16.mxu0 0
    %311 = vmatpush2.bf16.msra.mxu0 0
    %312 = vmatprep.mubr.bf16.mxu0 0
    %313 = vmatmul.mubr.bf16.gmra.mxu0 %v275
    %v314 = vpop.f32.mrf.mxu0
    %v315 = vadd.f32 %v166, %v314
    %v316 = vpop.f32.mrf.mxu0
    %v317 = vadd.f32 %v166, %v316
    %v318 = vpop.f32.mrf.mxu0
    %v319 = vadd.f32 %v171, %v318
    %v320 = vpop.f32.mrf.mxu0
    %v321 = vadd.f32 %v171, %v320
    %322 = vmatprep.mubr.bf16.mxu0 0
    %323 = vmatmul.mubr.bf16.gmra.mxu0 %v278
    %v324 = vpop.f32.mrf.mxu0
    %v325 = vadd.f32 %v176, %v324
    %v326 = vpop.f32.mrf.mxu0
    %v327 = vadd.f32 %v176, %v326
    %v328 = vpop.f32.mrf.mxu0
    %v329 = vadd.f32 %v181, %v328
    %v330 = vpop.f32.mrf.mxu0
    %v331 = vadd.f32 %v181, %v330
    %332 = vdwg.mxu0
    %333 = vmatprep.subr.bf16.mxu0 0
    %334 = vmatpush1.bf16.msra.mxu0 0
    %335 = vmatprep.subr.bf16.mxu0 0
    %336 = vmatpush1.bf16.msra.mxu0 0
    %337 = vmatprep.subr.bf16.mxu0 0
    %338 = vmatpush1.bf16.msra.mxu0 0
    %339 = vmatprep.subr.bf16.mxu0 0
    %340 = vmatpush1.bf16.msra.mxu0 0
    %341 = vmatprep.subr.bf16.mxu0 %v256
    %342 = vmatpush1.bf16.msra.mxu0 %v255
    %343 = vmatprep.subr.bf16.mxu0 %v252
    %344 = vmatpush1.bf16.msra.mxu0 %v251
    %345 = vmatprep.subr.bf16.mxu0 %v248
    %346 = vmatpush1.bf16.msra.mxu0 %v247
    %347 = vmatprep.subr.bf16.mxu0 %v244
    %348 = vmatpush1.bf16.msra.mxu0 %v243
    %349 = vmatprep.subr.bf16.mxu0 0
    %350 = vmatpush2.bf16.msra.mxu0 0
    %351 = vmatprep.subr.bf16.mxu0 0
    %352 = vmatpush2.bf16.msra.mxu0 0
    %353 = vmatprep.subr.bf16.mxu0 0
    %354 = vmatpush2.bf16.msra.mxu0 0
    %355 = vmatprep.subr.bf16.mxu0 0
    %356 = vmatpush2.bf16.msra.mxu0 0
    %357 = vmatprep.subr.bf16.mxu0 0
    %358 = vmatpush2.bf16.msra.mxu0 0
    %359 = vmatprep.subr.bf16.mxu0 0
    %360 = vmatpush2.bf16.msra.mxu0 0
    %361 = vmatprep.subr.bf16.mxu0 0
    %362 = vmatpush2.bf16.msra.mxu0 0
    %363 = vmatprep.subr.bf16.mxu0 0
    %364 = vmatpush2.bf16.msra.mxu0 0
    %365 = vmatprep.mubr.bf16.mxu0 0
    %366 = vmatmul.mubr.bf16.gmra.mxu0 %v275
    %v367 = vpop.f32.mrf.mxu0
    %v368 = vadd.f32 %v166, %v367
    %v369 = vpop.f32.mrf.mxu0
    %v370 = vadd.f32 %v166, %v369
    %v371 = vpop.f32.mrf.mxu0
    %v372 = vadd.f32 %v171, %v371
    %v373 = vpop.f32.mrf.mxu0
    %v374 = vadd.f32 %v171, %v373
    %375 = vmatprep.mubr.bf16.mxu0 0
    %376 = vmatmul.mubr.bf16.gmra.mxu0 %v278
    %v377 = vpop.f32.mrf.mxu0
    %v378 = vadd.f32 %v176, %v377
    %v379 = vpop.f32.mrf.mxu0
    %v380 = vadd.f32 %v176, %v379
    %v381 = vpop.f32.mrf.mxu0
    %v382 = vadd.f32 %v181, %v381
    %v383 = vpop.f32.mrf.mxu0
    %v384 = vadd.f32 %v181, %v383
    %385 = vdwg.mxu0
    %vm386 = vcmp.ge.s32.totalorder %v125, 1
    %vm387 = vcmp.ge.s32.totalorder %v126, 1
    %vm388 = vcmp.ge.s32.totalorder %v127, 1
    %vm389 = vcmp.ge.s32.totalorder %v128, 1
    %390 = vrot.lane.b32.xlu0 %v315, 1
    %v391 = vpop.permute.xlu0 %390
    %392 = vrot.lane.b32.xlu0 %v319, 1
    %v393 = vpop.permute.xlu0 %392
    %394 = vrot.lane.b32.xlu0 %v325, 1
    %v395 = vpop.permute.xlu0 %394
    %396 = vrot.lane.b32.xlu0 %v329, 1
    %v397 = vpop.permute.xlu0 %396
    %398 = vrot.lane.b32.xlu0 %v317, 1
    %v399 = vpop.permute.xlu0 %398
    %400 = vrot.lane.b32.xlu0 %v321, 1
    %v401 = vpop.permute.xlu0 %400
    %402 = vrot.lane.b32.xlu0 %v327, 1
    %v403 = vpop.permute.xlu0 %402
    %404 = vrot.lane.b32.xlu0 %v331, 1
    %v405 = vpop.permute.xlu0 %404
    %406 = vrot.lane.b32.xlu0 %v368, 1
    %v407 = vpop.permute.xlu0 %406
    %408 = vrot.lane.b32.xlu0 %v372, 1
    %v409 = vpop.permute.xlu0 %408
    %410 = vrot.lane.b32.xlu0 %v378, 1
    %v411 = vpop.permute.xlu0 %410
    %412 = vrot.lane.b32.xlu0 %v382, 1
    %v413 = vpop.permute.xlu0 %412
    %414 = vrot.lane.b32.xlu0 %v370, 1
    %v415 = vpop.permute.xlu0 %414
    %416 = vrot.lane.b32.xlu0 %v374, 1
    %v417 = vpop.permute.xlu0 %416
    %418 = vrot.lane.b32.xlu0 %v380, 1
    %v419 = vpop.permute.xlu0 %418
    %420 = vrot.lane.b32.xlu0 %v384, 1
    %v421 = vpop.permute.xlu0 %420
    %vm422 = vcmp.lt.s32.totalorder %v77, 1
    %v423 = vsel %vm422, %v407, %v415
    %v424 = vsel %vm422, %v409, %v417
    %v425 = vsel %vm422, %v411, %v419
    %v426 = vsel %vm422, %v413, %v421
    %v427 = vsel %vm422, %v399, %v407
    %v428 = vsel %vm422, %v401, %v409
    %v429 = vsel %vm422, %v403, %v411
    %v430 = vsel %vm422, %v405, %v413
    %v431 = vsel %vm422, %v391, %v399
    %v432 = vsel %vm422, %v393, %v401
    %v433 = vsel %vm422, %v395, %v403
    %v434 = vsel %vm422, %v397, %v405
    %v435 = vsel %vm422, %v415, %v391
    %v436 = vsel %vm422, %v417, %v393
    %v437 = vsel %vm422, %v419, %v395
    %v438 = vsel %vm422, %v421, %v397
    %v439 = vsel %vm386, 1, 0
    %v440 = vsel %vm387, 1, 0
    %v441 = vsel %vm388, 1, 0
    %v442 = vsel %vm389, 1, 0
    %vm443 = vcmp.eq.s32.totalorder %v439, 1
    %vm444 = vcmp.eq.s32.totalorder %v440, 1
    %vm445 = vcmp.eq.s32.totalorder %v441, 1
    %vm446 = vcmp.eq.s32.totalorder %v442, 1
    %v447 = vsel %vm443, %v435, 0.0
    %v448 = vsel %vm444, %v431, 0.0
    %v449 = vsel %vm445, %v427, 0.0
    %v450 = vsel %vm446, %v423, 0.0
    %v451 = vsel %vm443, %v436, 0.0
    %v452 = vsel %vm444, %v432, 0.0
    %v453 = vsel %vm445, %v428, 0.0
    %v454 = vsel %vm446, %v424, 0.0
    %v455 = vsel %vm443, %v437, 0.0
    %v456 = vsel %vm444, %v433, 0.0
    %v457 = vsel %vm445, %v429, 0.0
    %v458 = vsel %vm446, %v425, 0.0
    %v459 = vsel %vm443, %v438, 0.0
    %v460 = vsel %vm444, %v434, 0.0
    %v461 = vsel %vm445, %v430, 0.0
    %v462 = vsel %vm446, %v426, 0.0
    %vm463 = vcmp.lt.s32.totalorder %v125, 127
    %vm464 = vcmp.lt.s32.totalorder %v126, 127
    %vm465 = vcmp.lt.s32.totalorder %v127, 127
    %vm466 = vcmp.lt.s32.totalorder %v128, 127
    %467 = vrot.lane.b32.xlu0 %v315, 127
    %v468 = vpop.permute.xlu0 %467
    %469 = vrot.lane.b32.xlu0 %v319, 127
    %v470 = vpop.permute.xlu0 %469
    %471 = vrot.lane.b32.xlu0 %v325, 127
    %v472 = vpop.permute.xlu0 %471
    %473 = vrot.lane.b32.xlu0 %v329, 127
    %v474 = vpop.permute.xlu0 %473
    %475 = vrot.lane.b32.xlu0 %v317, 127
    %v476 = vpop.permute.xlu0 %475
    %477 = vrot.lane.b32.xlu0 %v321, 127
    %v478 = vpop.permute.xlu0 %477
    %479 = vrot.lane.b32.xlu0 %v327, 127
    %v480 = vpop.permute.xlu0 %479
    %481 = vrot.lane.b32.xlu0 %v331, 127
    %v482 = vpop.permute.xlu0 %481
    %483 = vrot.lane.b32.xlu0 %v368, 127
    %v484 = vpop.permute.xlu0 %483
    %485 = vrot.lane.b32.xlu0 %v372, 127
    %v486 = vpop.permute.xlu0 %485
    %487 = vrot.lane.b32.xlu0 %v378, 127
    %v488 = vpop.permute.xlu0 %487
    %489 = vrot.lane.b32.xlu0 %v382, 127
    %v490 = vpop.permute.xlu0 %489
    %491 = vrot.lane.b32.xlu0 %v370, 127
    %v492 = vpop.permute.xlu0 %491
    %493 = vrot.lane.b32.xlu0 %v374, 127
    %v494 = vpop.permute.xlu0 %493
    %495 = vrot.lane.b32.xlu0 %v380, 127
    %v496 = vpop.permute.xlu0 %495
    %497 = vrot.lane.b32.xlu0 %v384, 127
    %v498 = vpop.permute.xlu0 %497
    %vm499 = vcmp.lt.s32.totalorder %v77, 127
    %v500 = vsel %vm499, %v484, %v492
    %v501 = vsel %vm499, %v486, %v494
    %v502 = vsel %vm499, %v488, %v496
    %v503 = vsel %vm499, %v490, %v498
    %v504 = vsel %vm499, %v476, %v484
    %v505 = vsel %vm499, %v478, %v486
    %v506 = vsel %vm499, %v480, %v488
    %v507 = vsel %vm499, %v482, %v490
    %v508 = vsel %vm499, %v468, %v476
    %v509 = vsel %vm499, %v470, %v478
    %v510 = vsel %vm499, %v472, %v480
    %v511 = vsel %vm499, %v474, %v482
    %v512 = vsel %vm499, %v492, %v468
    %v513 = vsel %vm499, %v494, %v470
    %v514 = vsel %vm499, %v496, %v472
    %v515 = vsel %vm499, %v498, %v474
    %v516 = vsel %vm463, 1, 0
    %v517 = vsel %vm464, 1, 0
    %v518 = vsel %vm465, 1, 0
    %v519 = vsel %vm466, 1, 0
    %vm520 = vcmp.eq.s32.totalorder %v516, 1
    %vm521 = vcmp.eq.s32.totalorder %v517, 1
    %vm522 = vcmp.eq.s32.totalorder %v518, 1
    %vm523 = vcmp.eq.s32.totalorder %v519, 1
    %v524 = vsel %vm520, %v508, 0.0
    %v525 = vsel %vm521, %v504, 0.0
    %v526 = vsel %vm522, %v500, 0.0
    %v527 = vsel %vm523, %v512, 0.0
    %v528 = vsel %vm520, %v509, 0.0
    %v529 = vsel %vm521, %v505, 0.0
    %v530 = vsel %vm522, %v501, 0.0
    %v531 = vsel %vm523, %v513, 0.0
    %v532 = vsel %vm520, %v510, 0.0
    %v533 = vsel %vm521, %v506, 0.0
    %v534 = vsel %vm522, %v502, 0.0
    %v535 = vsel %vm523, %v514, 0.0
    %v536 = vsel %vm520, %v511, 0.0
    %v537 = vsel %vm521, %v507, 0.0
    %v538 = vsel %vm522, %v503, 0.0
    %v539 = vsel %vm523, %v515, 0.0
    %v540 = vpack.c.bf16 %v451, %v447
    %v541 = vpack.c.bf16 %v452, %v448
    %v542 = vpack.c.bf16 %v453, %v449
    %v543 = vpack.c.bf16 %v454, %v450
    %v544 = vpack.c.bf16 %v459, %v455
    %v545 = vpack.c.bf16 %v460, %v456
    %v546 = vpack.c.bf16 %v461, %v457
    %v547 = vpack.c.bf16 %v462, %v458
    %v548 = vpack.c.bf16 %v319, %v315
    %v549 = vpack.c.bf16 %v321, %v317
    %v550 = vpack.c.bf16 %v372, %v368
    %v551 = vpack.c.bf16 %v374, %v370
    %v552 = vpack.c.bf16 %v329, %v325
    %v553 = vpack.c.bf16 %v331, %v327
    %v554 = vpack.c.bf16 %v382, %v378
    %v555 = vpack.c.bf16 %v384, %v380
    %v556 = vpack.c.bf16 %v528, %v524
    %v557 = vpack.c.bf16 %v529, %v525
    %v558 = vpack.c.bf16 %v530, %v526
    %v559 = vpack.c.bf16 %v531, %v527
    %v560 = vpack.c.bf16 %v536, %v532
    %v561 = vpack.c.bf16 %v537, %v533
    %v562 = vpack.c.bf16 %v538, %v534
    %v563 = vpack.c.bf16 %v539, %v535
    %v564 = vld [vmem:[%s7] sm:$0xf]
    %v565 = vld [vmem:[%s7 + $0x4] sm:$0xf]
    %v566 = vld [vmem:[%s7 + $0x8] sm:$0xf]
    %v567 = vld [vmem:[%s7 + $0xc] sm:$0xf]
    %v568 = vld [vmem:[%s8] sm:$0xff]
    %v569 = vld [vmem:[%s8 + $0x8] sm:$0xff]
    %v570 = vld [vmem:[%s8 + $0x10] sm:$0xff]
    %v571 = vld [vmem:[%s8 + $0x18] sm:$0xff]
    %573 = vset.pattern.permute.xlu0 0
    %574 = vperm.xlu0 %573, %v568
    %v575 = vpop.permute.xlu0 %574
    %578 = vset.pattern.permute.xlu0 0
    %579 = vperm.xlu0 %578, %v569
    %v580 = vpop.permute.xlu0 %579
    %583 = vset.pattern.permute.xlu0 0
    %584 = vperm.xlu0 %583, %v570
    %v585 = vpop.permute.xlu0 %584
    %588 = vset.pattern.permute.xlu0 0
    %589 = vperm.xlu0 %588, %v571
    %v590 = vpop.permute.xlu0 %589
    %v596 = vunpack.c.l.b16 %v564
    %v597 = vunpack.c.l.b16 %v565
    %v598 = vunpack.c.l.b16 %v566
    %v599 = vunpack.c.l.b16 %v567
    %v600 = vpack.c.b16 %v597, %v596
    %v601 = vpack.c.b16 %v599, %v598
    %vm602 = vcmask 785408
    %v604 = vsel %vm602, %v600, 0
    %v607 = vsel %vm602, %v601, 0
    %609 = vmatprep.subr.bf16.mxu0 0
    %610 = vmatpush1.bf16.msra.mxu0 0
    %611 = vmatprep.subr.bf16.mxu0 0
    %612 = vmatpush1.bf16.msra.mxu0 0
    %613 = vmatprep.subr.bf16.mxu0 %v561
    %614 = vmatpush1.bf16.msra.mxu0 %v560
    %615 = vmatprep.subr.bf16.mxu0 %v557
    %616 = vmatpush1.bf16.msra.mxu0 %v556
    %617 = vmatprep.subr.bf16.mxu0 %v553
    %618 = vmatpush1.bf16.msra.mxu0 %v552
    %619 = vmatprep.subr.bf16.mxu0 %v549
    %620 = vmatpush1.bf16.msra.mxu0 %v548
    %621 = vmatprep.subr.bf16.mxu0 %v545
    %622 = vmatpush1.bf16.msra.mxu0 %v544
    %623 = vmatprep.subr.bf16.mxu0 %v541
    %624 = vmatpush1.bf16.msra.mxu0 %v540
    %625 = vmatprep.subr.bf16.mxu0 0
    %626 = vmatpush2.bf16.msra.mxu0 0
    %627 = vmatprep.subr.bf16.mxu0 0
    %628 = vmatpush2.bf16.msra.mxu0 0
    %629 = vmatprep.subr.bf16.mxu0 0
    %630 = vmatpush2.bf16.msra.mxu0 0
    %631 = vmatprep.subr.bf16.mxu0 0
    %632 = vmatpush2.bf16.msra.mxu0 0
    %633 = vmatprep.subr.bf16.mxu0 0
    %634 = vmatpush2.bf16.msra.mxu0 0
    %635 = vmatprep.subr.bf16.mxu0 0
    %636 = vmatpush2.bf16.msra.mxu0 0
    %637 = vmatprep.subr.bf16.mxu0 0
    %638 = vmatpush2.bf16.msra.mxu0 0
    %639 = vmatprep.subr.bf16.mxu0 0
    %640 = vmatpush2.bf16.msra.mxu0 0
    %641 = vmatprep.mubr.bf16.mxu0 0
    %642 = vmatmul.mubr.bf16.gmra.mxu0 %v604
    %v643 = vpop.f32.mrf.mxu0
    %v644 = vadd.f32 %v575, %v643
    %v645 = vpop.f32.mrf.mxu0
    %v646 = vadd.f32 %v575, %v645
    %v647 = vpop.f32.mrf.mxu0
    %v648 = vadd.f32 %v580, %v647
    %v649 = vpop.f32.mrf.mxu0
    %v650 = vadd.f32 %v580, %v649
    %651 = vmatprep.mubr.bf16.mxu0 0
    %652 = vmatmul.mubr.bf16.gmra.mxu0 %v607
    %v653 = vpop.f32.mrf.mxu0
    %v654 = vadd.f32 %v585, %v653
    %v655 = vpop.f32.mrf.mxu0
    %v656 = vadd.f32 %v585, %v655
    %v657 = vpop.f32.mrf.mxu0
    %v658 = vadd.f32 %v590, %v657
    %v659 = vpop.f32.mrf.mxu0
    %v660 = vadd.f32 %v590, %v659
    %661 = vdwg.mxu0
    %662 = vmatprep.subr.bf16.mxu0 0
    %663 = vmatpush1.bf16.msra.mxu0 0
    %664 = vmatprep.subr.bf16.mxu0 0
    %665 = vmatpush1.bf16.msra.mxu0 0
    %666 = vmatprep.subr.bf16.mxu0 %v563
    %667 = vmatpush1.bf16.msra.mxu0 %v562
    %668 = vmatprep.subr.bf16.mxu0 %v559
    %669 = vmatpush1.bf16.msra.mxu0 %v558
    %670 = vmatprep.subr.bf16.mxu0 %v555
    %671 = vmatpush1.bf16.msra.mxu0 %v554
    %672 = vmatprep.subr.bf16.mxu0 %v551
    %673 = vmatpush1.bf16.msra.mxu0 %v550
    %674 = vmatprep.subr.bf16.mxu0 %v547
    %675 = vmatpush1.bf16.msra.mxu0 %v546
    %676 = vmatprep.subr.bf16.mxu0 %v543
    %677 = vmatpush1.bf16.msra.mxu0 %v542
    %678 = vmatprep.subr.bf16.mxu0 0
    %679 = vmatpush2.bf16.msra.mxu0 0
    %680 = vmatprep.subr.bf16.mxu0 0
    %681 = vmatpush2.bf16.msra.mxu0 0
    %682 = vmatprep.subr.bf16.mxu0 0
    %683 = vmatpush2.bf16.msra.mxu0 0
    %684 = vmatprep.subr.bf16.mxu0 0
    %685 = vmatpush2.bf16.msra.mxu0 0
    %686 = vmatprep.subr.bf16.mxu0 0
    %687 = vmatpush2.bf16.msra.mxu0 0
    %688 = vmatprep.subr.bf16.mxu0 0
    %689 = vmatpush2.bf16.msra.mxu0 0
    %690 = vmatprep.subr.bf16.mxu0 0
    %691 = vmatpush2.bf16.msra.mxu0 0
    %692 = vmatprep.subr.bf16.mxu0 0
    %693 = vmatpush2.bf16.msra.mxu0 0
    %694 = vmatprep.mubr.bf16.mxu0 0
    %695 = vmatmul.mubr.bf16.gmra.mxu0 %v604
    %v696 = vpop.f32.mrf.mxu0
    %v697 = vadd.f32 %v575, %v696
    %v698 = vpop.f32.mrf.mxu0
    %v699 = vadd.f32 %v575, %v698
    %v700 = vpop.f32.mrf.mxu0
    %v701 = vadd.f32 %v580, %v700
    %v702 = vpop.f32.mrf.mxu0
    %v703 = vadd.f32 %v580, %v702
    %704 = vmatprep.mubr.bf16.mxu0 0
    %705 = vmatmul.mubr.bf16.gmra.mxu0 %v607
    %v706 = vpop.f32.mrf.mxu0
    %v707 = vadd.f32 %v585, %v706
    %v708 = vpop.f32.mrf.mxu0
    %v709 = vadd.f32 %v585, %v708
    %v710 = vpop.f32.mrf.mxu0
    %v711 = vadd.f32 %v590, %v710
    %v712 = vpop.f32.mrf.mxu0
    %v713 = vadd.f32 %v590, %v712
    %714 = vdwg.mxu0
    %v715 = vmax.f32 %v644, 0.0
    %v716 = vmax.f32 %v646, 0.0
    %v717 = vmax.f32 %v697, 0.0
    %v718 = vmax.f32 %v699, 0.0
    %v719 = vmax.f32 %v648, 0.0
    %v720 = vmax.f32 %v650, 0.0
    %v721 = vmax.f32 %v701, 0.0
    %v722 = vmax.f32 %v703, 0.0
    %v723 = vmax.f32 %v654, 0.0
    %v724 = vmax.f32 %v656, 0.0
    %v725 = vmax.f32 %v707, 0.0
    %v726 = vmax.f32 %v709, 0.0
    %v727 = vmax.f32 %v658, 0.0
    %v728 = vmax.f32 %v660, 0.0
    %v729 = vmax.f32 %v711, 0.0
    %v730 = vmax.f32 %v713, 0.0
    %v731 = vld [vmem:[%s9] sm:$0xf]
    %v732 = vld [vmem:[%s9 + $0x4] sm:$0xf]
    %v733 = vld [vmem:[%s9 + $0x8] sm:$0xf]
    %v734 = vld [vmem:[%s9 + $0xc] sm:$0xf]
    %v735 = vpack.c.bf16 %v719, %v715
    %v736 = vpack.c.bf16 %v720, %v716
    %v737 = vpack.c.bf16 %v721, %v717
    %v738 = vpack.c.bf16 %v722, %v718
    %v739 = vpack.c.bf16 %v727, %v723
    %v740 = vpack.c.bf16 %v728, %v724
    %v741 = vpack.c.bf16 %v729, %v725
    %v742 = vpack.c.bf16 %v730, %v726
    %v743 = vld [vmem:[%s10] sm:$0xff]
    %v744 = vld [vmem:[%s10 + $0x8] sm:$0xff]
    %v745 = vld [vmem:[%s10 + $0x10] sm:$0xff]
    %v746 = vld [vmem:[%s10 + $0x18] sm:$0xff]
    %748 = vset.pattern.permute.xlu0 0
    %749 = vperm.xlu0 %748, %v743
    %v750 = vpop.permute.xlu0 %749
    %753 = vset.pattern.permute.xlu0 0
    %754 = vperm.xlu0 %753, %v744
    %v755 = vpop.permute.xlu0 %754
    %758 = vset.pattern.permute.xlu0 0
    %759 = vperm.xlu0 %758, %v745
    %v760 = vpop.permute.xlu0 %759
    %763 = vset.pattern.permute.xlu0 0
    %764 = vperm.xlu0 %763, %v746
    %v765 = vpop.permute.xlu0 %764
    %v771 = vunpack.c.l.b16 %v731
    %v772 = vunpack.c.l.b16 %v732
    %v773 = vunpack.c.l.b16 %v733
    %v774 = vunpack.c.l.b16 %v734
    %v775 = vpack.c.b16 %v772, %v771
    %v776 = vpack.c.b16 %v774, %v773
    %vm777 = vcmask 261120
    %v779 = vsel %vm777, %v775, 0
    %v782 = vsel %vm777, %v776, 0
    %784 = vmatprep.subr.bf16.mxu0 0
    %785 = vmatpush1.bf16.msra.mxu0 0
    %786 = vmatprep.subr.bf16.mxu0 0
    %787 = vmatpush1.bf16.msra.mxu0 0
    %788 = vmatprep.subr.bf16.mxu0 0
    %789 = vmatpush1.bf16.msra.mxu0 0
    %790 = vmatprep.subr.bf16.mxu0 0
    %791 = vmatpush1.bf16.msra.mxu0 0
    %792 = vmatprep.subr.bf16.mxu0 0
    %793 = vmatpush1.bf16.msra.mxu0 0
    %794 = vmatprep.subr.bf16.mxu0 0
    %795 = vmatpush1.bf16.msra.mxu0 0
    %796 = vmatprep.subr.bf16.mxu0 %v740
    %797 = vmatpush1.bf16.msra.mxu0 %v739
    %798 = vmatprep.subr.bf16.mxu0 %v736
    %799 = vmatpush1.bf16.msra.mxu0 %v735
    %800 = vmatprep.subr.bf16.mxu0 0
    %801 = vmatpush2.bf16.msra.mxu0 0
    %802 = vmatprep.subr.bf16.mxu0 0
    %803 = vmatpush2.bf16.msra.mxu0 0
    %804 = vmatprep.subr.bf16.mxu0 0
    %805 = vmatpush2.bf16.msra.mxu0 0
    %806 = vmatprep.subr.bf16.mxu0 0
    %807 = vmatpush2.bf16.msra.mxu0 0
    %808 = vmatprep.subr.bf16.mxu0 0
    %809 = vmatpush2.bf16.msra.mxu0 0
    %810 = vmatprep.subr.bf16.mxu0 0
    %811 = vmatpush2.bf16.msra.mxu0 0
    %812 = vmatprep.subr.bf16.mxu0 0
    %813 = vmatpush2.bf16.msra.mxu0 0
    %814 = vmatprep.subr.bf16.mxu0 0
    %815 = vmatpush2.bf16.msra.mxu0 0
    %816 = vmatprep.mubr.bf16.mxu0 0
    %817 = vmatmul.mubr.bf16.gmra.mxu0 %v779
    %v818 = vpop.f32.mrf.mxu0
    %v819 = vadd.f32 %v750, %v818
    %v820 = vpop.f32.mrf.mxu0
    %v821 = vadd.f32 %v750, %v820
    %v822 = vpop.f32.mrf.mxu0
    %v823 = vadd.f32 %v755, %v822
    %v824 = vpop.f32.mrf.mxu0
    %v825 = vadd.f32 %v755, %v824
    %826 = vmatprep.mubr.bf16.mxu0 0
    %827 = vmatmul.mubr.bf16.gmra.mxu0 %v782
    %v828 = vpop.f32.mrf.mxu0
    %v829 = vadd.f32 %v760, %v828
    %v830 = vpop.f32.mrf.mxu0
    %v831 = vadd.f32 %v760, %v830
    %v832 = vpop.f32.mrf.mxu0
    %v833 = vadd.f32 %v765, %v832
    %v834 = vpop.f32.mrf.mxu0
    %v835 = vadd.f32 %v765, %v834
    %836 = vdwg.mxu0
    %837 = vmatprep.subr.bf16.mxu0 0
    %838 = vmatpush1.bf16.msra.mxu0 0
    %839 = vmatprep.subr.bf16.mxu0 0
    %840 = vmatpush1.bf16.msra.mxu0 0
    %841 = vmatprep.subr.bf16.mxu0 0
    %842 = vmatpush1.bf16.msra.mxu0 0
    %843 = vmatprep.subr.bf16.mxu0 0
    %844 = vmatpush1.bf16.msra.mxu0 0
    %845 = vmatprep.subr.bf16.mxu0 0
    %846 = vmatpush1.bf16.msra.mxu0 0
    %847 = vmatprep.subr.bf16.mxu0 0
    %848 = vmatpush1.bf16.msra.mxu0 0
    %849 = vmatprep.subr.bf16.mxu0 %v742
    %850 = vmatpush1.bf16.msra.mxu0 %v741
    %851 = vmatprep.subr.bf16.mxu0 %v738
    %852 = vmatpush1.bf16.msra.mxu0 %v737
    %853 = vmatprep.subr.bf16.mxu0 0
    %854 = vmatpush2.bf16.msra.mxu0 0
    %855 = vmatprep.subr.bf16.mxu0 0
    %856 = vmatpush2.bf16.msra.mxu0 0
    %857 = vmatprep.subr.bf16.mxu0 0
    %858 = vmatpush2.bf16.msra.mxu0 0
    %859 = vmatprep.subr.bf16.mxu0 0
    %860 = vmatpush2.bf16.msra.mxu0 0
    %861 = vmatprep.subr.bf16.mxu0 0
    %862 = vmatpush2.bf16.msra.mxu0 0
    %863 = vmatprep.subr.bf16.mxu0 0
    %864 = vmatpush2.bf16.msra.mxu0 0
    %865 = vmatprep.subr.bf16.mxu0 0
    %866 = vmatpush2.bf16.msra.mxu0 0
    %867 = vmatprep.subr.bf16.mxu0 0
    %868 = vmatpush2.bf16.msra.mxu0 0
    %869 = vmatprep.mubr.bf16.mxu0 0
    %870 = vmatmul.mubr.bf16.gmra.mxu0 %v779
    %v871 = vpop.f32.mrf.mxu0
    %v872 = vadd.f32 %v750, %v871
    %v873 = vpop.f32.mrf.mxu0
    %v874 = vadd.f32 %v750, %v873
    %v875 = vpop.f32.mrf.mxu0
    %v876 = vadd.f32 %v755, %v875
    %v877 = vpop.f32.mrf.mxu0
    %v878 = vadd.f32 %v755, %v877
    %879 = vmatprep.mubr.bf16.mxu0 0
    %880 = vmatmul.mubr.bf16.gmra.mxu0 %v782
    %v881 = vpop.f32.mrf.mxu0
    %v882 = vadd.f32 %v760, %v881
    %v883 = vpop.f32.mrf.mxu0
    %v884 = vadd.f32 %v760, %v883
    %v885 = vpop.f32.mrf.mxu0
    %v886 = vadd.f32 %v765, %v885
    %v887 = vpop.f32.mrf.mxu0
    %v888 = vadd.f32 %v765, %v887
    %889 = vdwg.mxu0
    %v890 = vadd.f32 %v315, %v819
    %v891 = vadd.f32 %v317, %v821
    %v892 = vadd.f32 %v368, %v872
    %v893 = vadd.f32 %v370, %v874
    %v894 = vadd.f32 %v319, %v823
    %v895 = vadd.f32 %v321, %v825
    %v896 = vadd.f32 %v372, %v876
    %v897 = vadd.f32 %v374, %v878
    %v898 = vadd.f32 %v325, %v829
    %v899 = vadd.f32 %v327, %v831
    %v900 = vadd.f32 %v378, %v882
    %v901 = vadd.f32 %v380, %v884
    %v902 = vadd.f32 %v329, %v833
    %v903 = vadd.f32 %v331, %v835
    %v904 = vadd.f32 %v382, %v886
    %v905 = vadd.f32 %v384, %v888
    %vm906 = vcmp.ge.s32.totalorder %v125, 2
    %vm907 = vcmp.ge.s32.totalorder %v126, 2
    %vm908 = vcmp.ge.s32.totalorder %v127, 2
    %vm909 = vcmp.ge.s32.totalorder %v128, 2
    %910 = vrot.lane.b32.xlu0 %v890, 2
    %v911 = vpop.permute.xlu0 %910
    %912 = vrot.lane.b32.xlu0 %v894, 2
    %v913 = vpop.permute.xlu0 %912
    %914 = vrot.lane.b32.xlu0 %v898, 2
    %v915 = vpop.permute.xlu0 %914
    %916 = vrot.lane.b32.xlu0 %v902, 2
    %v917 = vpop.permute.xlu0 %916
    %918 = vrot.lane.b32.xlu0 %v891, 2
    %v919 = vpop.permute.xlu0 %918
    %920 = vrot.lane.b32.xlu0 %v895, 2
    %v921 = vpop.permute.xlu0 %920
    %922 = vrot.lane.b32.xlu0 %v899, 2
    %v923 = vpop.permute.xlu0 %922
    %924 = vrot.lane.b32.xlu0 %v903, 2
    %v925 = vpop.permute.xlu0 %924
    %926 = vrot.lane.b32.xlu0 %v892, 2
    %v927 = vpop.permute.xlu0 %926
    %928 = vrot.lane.b32.xlu0 %v896, 2
    %v929 = vpop.permute.xlu0 %928
    %930 = vrot.lane.b32.xlu0 %v900, 2
    %v931 = vpop.permute.xlu0 %930
    %932 = vrot.lane.b32.xlu0 %v904, 2
    %v933 = vpop.permute.xlu0 %932
    %934 = vrot.lane.b32.xlu0 %v893, 2
    %v935 = vpop.permute.xlu0 %934
    %936 = vrot.lane.b32.xlu0 %v897, 2
    %v937 = vpop.permute.xlu0 %936
    %938 = vrot.lane.b32.xlu0 %v901, 2
    %v939 = vpop.permute.xlu0 %938
    %940 = vrot.lane.b32.xlu0 %v905, 2
    %v941 = vpop.permute.xlu0 %940
    %vm942 = vcmp.lt.s32.totalorder %v77, 2
    %v943 = vsel %vm942, %v927, %v935
    %v944 = vsel %vm942, %v929, %v937
    %v945 = vsel %vm942, %v931, %v939
    %v946 = vsel %vm942, %v933, %v941
    %v947 = vsel %vm942, %v919, %v927
    %v948 = vsel %vm942, %v921, %v929
    %v949 = vsel %vm942, %v923, %v931
    %v950 = vsel %vm942, %v925, %v933
    %v951 = vsel %vm942, %v911, %v919
    %v952 = vsel %vm942, %v913, %v921
    %v953 = vsel %vm942, %v915, %v923
    %v954 = vsel %vm942, %v917, %v925
    %v955 = vsel %vm942, %v935, %v911
    %v956 = vsel %vm942, %v937, %v913
    %v957 = vsel %vm942, %v939, %v915
    %v958 = vsel %vm942, %v941, %v917
    %v959 = vsel %vm906, 1, 0
    %v960 = vsel %vm907, 1, 0
    %v961 = vsel %vm908, 1, 0
    %v962 = vsel %vm909, 1, 0
    %vm963 = vcmp.eq.s32.totalorder %v959, 1
    %vm964 = vcmp.eq.s32.totalorder %v960, 1
    %vm965 = vcmp.eq.s32.totalorder %v961, 1
    %vm966 = vcmp.eq.s32.totalorder %v962, 1
    %v967 = vsel %vm963, %v955, 0.0
    %v968 = vsel %vm964, %v951, 0.0
    %v969 = vsel %vm965, %v947, 0.0
    %v970 = vsel %vm966, %v943, 0.0
    %v971 = vsel %vm963, %v956, 0.0
    %v972 = vsel %vm964, %v952, 0.0
    %v973 = vsel %vm965, %v948, 0.0
    %v974 = vsel %vm966, %v944, 0.0
    %v975 = vsel %vm963, %v957, 0.0
    %v976 = vsel %vm964, %v953, 0.0
    %v977 = vsel %vm965, %v949, 0.0
    %v978 = vsel %vm966, %v945, 0.0
    %v979 = vsel %vm963, %v958, 0.0
    %v980 = vsel %vm964, %v954, 0.0
    %v981 = vsel %vm965, %v950, 0.0
    %v982 = vsel %vm966, %v946, 0.0
    %vm983 = vcmp.lt.s32.totalorder %v125, 126
    %vm984 = vcmp.lt.s32.totalorder %v126, 126
    %vm985 = vcmp.lt.s32.totalorder %v127, 126
    %vm986 = vcmp.lt.s32.totalorder %v128, 126
    %987 = vrot.lane.b32.xlu0 %v890, 126
    %v988 = vpop.permute.xlu0 %987
    %989 = vrot.lane.b32.xlu0 %v894, 126
    %v990 = vpop.permute.xlu0 %989
    %991 = vrot.lane.b32.xlu0 %v898, 126
    %v992 = vpop.permute.xlu0 %991
    %993 = vrot.lane.b32.xlu0 %v902, 126
    %v994 = vpop.permute.xlu0 %993
    %995 = vrot.lane.b32.xlu0 %v891, 126
    %v996 = vpop.permute.xlu0 %995
    %997 = vrot.lane.b32.xlu0 %v895, 126
    %v998 = vpop.permute.xlu0 %997
    %999 = vrot.lane.b32.xlu0 %v899, 126
    %v1000 = vpop.permute.xlu0 %999
    %1001 = vrot.lane.b32.xlu0 %v903, 126
    %v1002 = vpop.permute.xlu0 %1001
    %1003 = vrot.lane.b32.xlu0 %v892, 126
    %v1004 = vpop.permute.xlu0 %1003
    %1005 = vrot.lane.b32.xlu0 %v896, 126
    %v1006 = vpop.permute.xlu0 %1005
    %1007 = vrot.lane.b32.xlu0 %v900, 126
    %v1008 = vpop.permute.xlu0 %1007
    %1009 = vrot.lane.b32.xlu0 %v904, 126
    %v1010 = vpop.permute.xlu0 %1009
    %1011 = vrot.lane.b32.xlu0 %v893, 126
    %v1012 = vpop.permute.xlu0 %1011
    %1013 = vrot.lane.b32.xlu0 %v897, 126
    %v1014 = vpop.permute.xlu0 %1013
    %1015 = vrot.lane.b32.xlu0 %v901, 126
    %v1016 = vpop.permute.xlu0 %1015
    %1017 = vrot.lane.b32.xlu0 %v905, 126
    %v1018 = vpop.permute.xlu0 %1017
    %vm1019 = vcmp.lt.s32.totalorder %v77, 126
    %v1020 = vsel %vm1019, %v1004, %v1012
    %v1021 = vsel %vm1019, %v1006, %v1014
    %v1022 = vsel %vm1019, %v1008, %v1016
    %v1023 = vsel %vm1019, %v1010, %v1018
    %v1024 = vsel %vm1019, %v996, %v1004
    %v1025 = vsel %vm1019, %v998, %v1006
    %v1026 = vsel %vm1019, %v1000, %v1008
    %v1027 = vsel %vm1019, %v1002, %v1010
    %v1028 = vsel %vm1019, %v988, %v996
    %v1029 = vsel %vm1019, %v990, %v998
    %v1030 = vsel %vm1019, %v992, %v1000
    %v1031 = vsel %vm1019, %v994, %v1002
    %v1032 = vsel %vm1019, %v1012, %v988
    %v1033 = vsel %vm1019, %v1014, %v990
    %v1034 = vsel %vm1019, %v1016, %v992
    %v1035 = vsel %vm1019, %v1018, %v994
    %v1036 = vsel %vm983, 1, 0
    %v1037 = vsel %vm984, 1, 0
    %v1038 = vsel %vm985, 1, 0
    %v1039 = vsel %vm986, 1, 0
    %vm1040 = vcmp.eq.s32.totalorder %v1036, 1
    %vm1041 = vcmp.eq.s32.totalorder %v1037, 1
    %vm1042 = vcmp.eq.s32.totalorder %v1038, 1
    %vm1043 = vcmp.eq.s32.totalorder %v1039, 1
    %v1044 = vsel %vm1040, %v1028, 0.0
    %v1045 = vsel %vm1041, %v1024, 0.0
    %v1046 = vsel %vm1042, %v1020, 0.0
    %v1047 = vsel %vm1043, %v1032, 0.0
    %v1048 = vsel %vm1040, %v1029, 0.0
    %v1049 = vsel %vm1041, %v1025, 0.0
    %v1050 = vsel %vm1042, %v1021, 0.0
    %v1051 = vsel %vm1043, %v1033, 0.0
    %v1052 = vsel %vm1040, %v1030, 0.0
    %v1053 = vsel %vm1041, %v1026, 0.0
    %v1054 = vsel %vm1042, %v1022, 0.0
    %v1055 = vsel %vm1043, %v1034, 0.0
    %v1056 = vsel %vm1040, %v1031, 0.0
    %v1057 = vsel %vm1041, %v1027, 0.0
    %v1058 = vsel %vm1042, %v1023, 0.0
    %v1059 = vsel %vm1043, %v1035, 0.0
    %v1060 = vpack.c.bf16 %v971, %v967
    %v1061 = vpack.c.bf16 %v972, %v968
    %v1062 = vpack.c.bf16 %v973, %v969
    %v1063 = vpack.c.bf16 %v974, %v970
    %v1064 = vpack.c.bf16 %v979, %v975
    %v1065 = vpack.c.bf16 %v980, %v976
    %v1066 = vpack.c.bf16 %v981, %v977
    %v1067 = vpack.c.bf16 %v982, %v978
    %v1068 = vpack.c.bf16 %v894, %v890
    %v1069 = vpack.c.bf16 %v895, %v891
    %v1070 = vpack.c.bf16 %v896, %v892
    %v1071 = vpack.c.bf16 %v897, %v893
    %v1072 = vpack.c.bf16 %v902, %v898
    %v1073 = vpack.c.bf16 %v903, %v899
    %v1074 = vpack.c.bf16 %v904, %v900
    %v1075 = vpack.c.bf16 %v905, %v901
    %v1076 = vpack.c.bf16 %v1048, %v1044
    %v1077 = vpack.c.bf16 %v1049, %v1045
    %v1078 = vpack.c.bf16 %v1050, %v1046
    %v1079 = vpack.c.bf16 %v1051, %v1047
    %v1080 = vpack.c.bf16 %v1056, %v1052
    %v1081 = vpack.c.bf16 %v1057, %v1053
    %v1082 = vpack.c.bf16 %v1058, %v1054
    %v1083 = vpack.c.bf16 %v1059, %v1055
    %s1084 = scalar_lea.vmem %s7, 16
    %v1085 = vld [vmem:[%s1084] sm:$0xf]
    %v1086 = vld [vmem:[%s1084 + $0x4] sm:$0xf]
    %v1087 = vld [vmem:[%s1084 + $0x8] sm:$0xf]
    %v1088 = vld [vmem:[%s1084 + $0xc] sm:$0xf]
    %s1089 = scalar_lea.vmem %s8, 32
    %v1090 = vld [vmem:[%s1089] sm:$0xff]
    %v1091 = vld [vmem:[%s1089 + $0x8] sm:$0xff]
    %v1092 = vld [vmem:[%s1089 + $0x10] sm:$0xff]
    %v1093 = vld [vmem:[%s1089 + $0x18] sm:$0xff]
    %1095 = vset.pattern.permute.xlu0 0
    %1096 = vperm.xlu0 %1095, %v1090
    %v1097 = vpop.permute.xlu0 %1096
    %1100 = vset.pattern.permute.xlu0 0
    %1101 = vperm.xlu0 %1100, %v1091
    %v1102 = vpop.permute.xlu0 %1101
    %1105 = vset.pattern.permute.xlu0 0
    %1106 = vperm.xlu0 %1105, %v1092
    %v1107 = vpop.permute.xlu0 %1106
    %1110 = vset.pattern.permute.xlu0 0
    %1111 = vperm.xlu0 %1110, %v1093
    %v1112 = vpop.permute.xlu0 %1111
    %v1118 = vunpack.c.l.b16 %v1085
    %v1119 = vunpack.c.l.b16 %v1086
    %v1120 = vunpack.c.l.b16 %v1087
    %v1121 = vunpack.c.l.b16 %v1088
    %v1122 = vpack.c.b16 %v1119, %v1118
    %v1123 = vpack.c.b16 %v1121, %v1120
    %v1125 = vsel %vm602, %v1122, 0
    %v1128 = vsel %vm602, %v1123, 0
    %1130 = vmatprep.subr.bf16.mxu0 0
    %1131 = vmatpush1.bf16.msra.mxu0 0
    %1132 = vmatprep.subr.bf16.mxu0 0
    %1133 = vmatpush1.bf16.msra.mxu0 0
    %1134 = vmatprep.subr.bf16.mxu0 %v1081
    %1135 = vmatpush1.bf16.msra.mxu0 %v1080
    %1136 = vmatprep.subr.bf16.mxu0 %v1077
    %1137 = vmatpush1.bf16.msra.mxu0 %v1076
    %1138 = vmatprep.subr.bf16.mxu0 %v1073
    %1139 = vmatpush1.bf16.msra.mxu0 %v1072
    %1140 = vmatprep.subr.bf16.mxu0 %v1069
    %1141 = vmatpush1.bf16.msra.mxu0 %v1068
    %1142 = vmatprep.subr.bf16.mxu0 %v1065
    %1143 = vmatpush1.bf16.msra.mxu0 %v1064
    %1144 = vmatprep.subr.bf16.mxu0 %v1061
    %1145 = vmatpush1.bf16.msra.mxu0 %v1060
    %1146 = vmatprep.subr.bf16.mxu0 0
    %1147 = vmatpush2.bf16.msra.mxu0 0
    %1148 = vmatprep.subr.bf16.mxu0 0
    %1149 = vmatpush2.bf16.msra.mxu0 0
    %1150 = vmatprep.subr.bf16.mxu0 0
    %1151 = vmatpush2.bf16.msra.mxu0 0
    %1152 = vmatprep.subr.bf16.mxu0 0
    %1153 = vmatpush2.bf16.msra.mxu0 0
    %1154 = vmatprep.subr.bf16.mxu0 0
    %1155 = vmatpush2.bf16.msra.mxu0 0
    %1156 = vmatprep.subr.bf16.mxu0 0
    %1157 = vmatpush2.bf16.msra.mxu0 0
    %1158 = vmatprep.subr.bf16.mxu0 0
    %1159 = vmatpush2.bf16.msra.mxu0 0
    %1160 = vmatprep.subr.bf16.mxu0 0
    %1161 = vmatpush2.bf16.msra.mxu0 0
    %1162 = vmatprep.mubr.bf16.mxu0 0
    %1163 = vmatmul.mubr.bf16.gmra.mxu0 %v1125
    %v1164 = vpop.f32.mrf.mxu0
    %v1165 = vadd.f32 %v1097, %v1164
    %v1166 = vpop.f32.mrf.mxu0
    %v1167 = vadd.f32 %v1097, %v1166
    %v1168 = vpop.f32.mrf.mxu0
    %v1169 = vadd.f32 %v1102, %v1168
    %v1170 = vpop.f32.mrf.mxu0
    %v1171 = vadd.f32 %v1102, %v1170
    %1172 = vmatprep.mubr.bf16.mxu0 0
    %1173 = vmatmul.mubr.bf16.gmra.mxu0 %v1128
    %v1174 = vpop.f32.mrf.mxu0
    %v1175 = vadd.f32 %v1107, %v1174
    %v1176 = vpop.f32.mrf.mxu0
    %v1177 = vadd.f32 %v1107, %v1176
    %v1178 = vpop.f32.mrf.mxu0
    %v1179 = vadd.f32 %v1112, %v1178
    %v1180 = vpop.f32.mrf.mxu0
    %v1181 = vadd.f32 %v1112, %v1180
    %1182 = vdwg.mxu0
    %1183 = vmatprep.subr.bf16.mxu0 0
    %1184 = vmatpush1.bf16.msra.mxu0 0
    %1185 = vmatprep.subr.bf16.mxu0 0
    %1186 = vmatpush1.bf16.msra.mxu0 0
    %1187 = vmatprep.subr.bf16.mxu0 %v1083
    %1188 = vmatpush1.bf16.msra.mxu0 %v1082
    %1189 = vmatprep.subr.bf16.mxu0 %v1079
    %1190 = vmatpush1.bf16.msra.mxu0 %v1078
    %1191 = vmatprep.subr.bf16.mxu0 %v1075
    %1192 = vmatpush1.bf16.msra.mxu0 %v1074
    %1193 = vmatprep.subr.bf16.mxu0 %v1071
    %1194 = vmatpush1.bf16.msra.mxu0 %v1070
    %1195 = vmatprep.subr.bf16.mxu0 %v1067
    %1196 = vmatpush1.bf16.msra.mxu0 %v1066
    %1197 = vmatprep.subr.bf16.mxu0 %v1063
    %1198 = vmatpush1.bf16.msra.mxu0 %v1062
    %1199 = vmatprep.subr.bf16.mxu0 0
    %1200 = vmatpush2.bf16.msra.mxu0 0
    %1201 = vmatprep.subr.bf16.mxu0 0
    %1202 = vmatpush2.bf16.msra.mxu0 0
    %1203 = vmatprep.subr.bf16.mxu0 0
    %1204 = vmatpush2.bf16.msra.mxu0 0
    %1205 = vmatprep.subr.bf16.mxu0 0
    %1206 = vmatpush2.bf16.msra.mxu0 0
    %1207 = vmatprep.subr.bf16.mxu0 0
    %1208 = vmatpush2.bf16.msra.mxu0 0
    %1209 = vmatprep.subr.bf16.mxu0 0
    %1210 = vmatpush2.bf16.msra.mxu0 0
    %1211 = vmatprep.subr.bf16.mxu0 0
    %1212 = vmatpush2.bf16.msra.mxu0 0
    %1213 = vmatprep.subr.bf16.mxu0 0
    %1214 = vmatpush2.bf16.msra.mxu0 0
    %1215 = vmatprep.mubr.bf16.mxu0 0
    %1216 = vmatmul.mubr.bf16.gmra.mxu0 %v1125
    %v1217 = vpop.f32.mrf.mxu0
    %v1218 = vadd.f32 %v1097, %v1217
    %v1219 = vpop.f32.mrf.mxu0
    %v1220 = vadd.f32 %v1097, %v1219
    %v1221 = vpop.f32.mrf.mxu0
    %v1222 = vadd.f32 %v1102, %v1221
    %v1223 = vpop.f32.mrf.mxu0
    %v1224 = vadd.f32 %v1102, %v1223
    %1225 = vmatprep.mubr.bf16.mxu0 0
    %1226 = vmatmul.mubr.bf16.gmra.mxu0 %v1128
    %v1227 = vpop.f32.mrf.mxu0
    %v1228 = vadd.f32 %v1107, %v1227
    %v1229 = vpop.f32.mrf.mxu0
    %v1230 = vadd.f32 %v1107, %v1229
    %v1231 = vpop.f32.mrf.mxu0
    %v1232 = vadd.f32 %v1112, %v1231
    %v1233 = vpop.f32.mrf.mxu0
    %v1234 = vadd.f32 %v1112, %v1233
    %1235 = vdwg.mxu0
    %v1236 = vmax.f32 %v1165, 0.0
    %v1237 = vmax.f32 %v1167, 0.0
    %v1238 = vmax.f32 %v1218, 0.0
    %v1239 = vmax.f32 %v1220, 0.0
    %v1240 = vmax.f32 %v1169, 0.0
    %v1241 = vmax.f32 %v1171, 0.0
    %v1242 = vmax.f32 %v1222, 0.0
    %v1243 = vmax.f32 %v1224, 0.0
    %v1244 = vmax.f32 %v1175, 0.0
    %v1245 = vmax.f32 %v1177, 0.0
    %v1246 = vmax.f32 %v1228, 0.0
    %v1247 = vmax.f32 %v1230, 0.0
    %v1248 = vmax.f32 %v1179, 0.0
    %v1249 = vmax.f32 %v1181, 0.0
    %v1250 = vmax.f32 %v1232, 0.0
    %v1251 = vmax.f32 %v1234, 0.0
    %s1252 = scalar_lea.vmem %s9, 16
    %v1253 = vld [vmem:[%s1252] sm:$0xf]
    %v1254 = vld [vmem:[%s1252 + $0x4] sm:$0xf]
    %v1255 = vld [vmem:[%s1252 + $0x8] sm:$0xf]
    %v1256 = vld [vmem:[%s1252 + $0xc] sm:$0xf]
    %v1257 = vpack.c.bf16 %v1240, %v1236
    %v1258 = vpack.c.bf16 %v1241, %v1237
    %v1259 = vpack.c.bf16 %v1242, %v1238
    %v1260 = vpack.c.bf16 %v1243, %v1239
    %v1261 = vpack.c.bf16 %v1248, %v1244
    %v1262 = vpack.c.bf16 %v1249, %v1245
    %v1263 = vpack.c.bf16 %v1250, %v1246
    %v1264 = vpack.c.bf16 %v1251, %v1247
    %s1265 = scalar_lea.vmem %s10, 32
    %v1266 = vld [vmem:[%s1265] sm:$0xff]
    %v1267 = vld [vmem:[%s1265 + $0x8] sm:$0xff]
    %v1268 = vld [vmem:[%s1265 + $0x10] sm:$0xff]
    %v1269 = vld [vmem:[%s1265 + $0x18] sm:$0xff]
    %1271 = vset.pattern.permute.xlu0 0
    %1272 = vperm.xlu0 %1271, %v1266
    %v1273 = vpop.permute.xlu0 %1272
    %1276 = vset.pattern.permute.xlu0 0
    %1277 = vperm.xlu0 %1276, %v1267
    %v1278 = vpop.permute.xlu0 %1277
    %1281 = vset.pattern.permute.xlu0 0
    %1282 = vperm.xlu0 %1281, %v1268
    %v1283 = vpop.permute.xlu0 %1282
    %1286 = vset.pattern.permute.xlu0 0
    %1287 = vperm.xlu0 %1286, %v1269
    %v1288 = vpop.permute.xlu0 %1287
    %v1294 = vunpack.c.l.b16 %v1253
    %v1295 = vunpack.c.l.b16 %v1254
    %v1296 = vunpack.c.l.b16 %v1255
    %v1297 = vunpack.c.l.b16 %v1256
    %v1298 = vpack.c.b16 %v1295, %v1294
    %v1299 = vpack.c.b16 %v1297, %v1296
    %v1301 = vsel %vm777, %v1298, 0
    %v1304 = vsel %vm777, %v1299, 0
    %1306 = vmatprep.subr.bf16.mxu0 0
    %1307 = vmatpush1.bf16.msra.mxu0 0
    %1308 = vmatprep.subr.bf16.mxu0 0
    %1309 = vmatpush1.bf16.msra.mxu0 0
    %1310 = vmatprep.subr.bf16.mxu0 0
    %1311 = vmatpush1.bf16.msra.mxu0 0
    %1312 = vmatprep.subr.bf16.mxu0 0
    %1313 = vmatpush1.bf16.msra.mxu0 0
    %1314 = vmatprep.subr.bf16.mxu0 0
    %1315 = vmatpush1.bf16.msra.mxu0 0
    %1316 = vmatprep.subr.bf16.mxu0 0
    %1317 = vmatpush1.bf16.msra.mxu0 0
    %1318 = vmatprep.subr.bf16.mxu0 %v1262
    %1319 = vmatpush1.bf16.msra.mxu0 %v1261
    %1320 = vmatprep.subr.bf16.mxu0 %v1258
    %1321 = vmatpush1.bf16.msra.mxu0 %v1257
    %1322 = vmatprep.subr.bf16.mxu0 0
    %1323 = vmatpush2.bf16.msra.mxu0 0
    %1324 = vmatprep.subr.bf16.mxu0 0
    %1325 = vmatpush2.bf16.msra.mxu0 0
    %1326 = vmatprep.subr.bf16.mxu0 0
    %1327 = vmatpush2.bf16.msra.mxu0 0
    %1328 = vmatprep.subr.bf16.mxu0 0
    %1329 = vmatpush2.bf16.msra.mxu0 0
    %1330 = vmatprep.subr.bf16.mxu0 0
    %1331 = vmatpush2.bf16.msra.mxu0 0
    %1332 = vmatprep.subr.bf16.mxu0 0
    %1333 = vmatpush2.bf16.msra.mxu0 0
    %1334 = vmatprep.subr.bf16.mxu0 0
    %1335 = vmatpush2.bf16.msra.mxu0 0
    %1336 = vmatprep.subr.bf16.mxu0 0
    %1337 = vmatpush2.bf16.msra.mxu0 0
    %1338 = vmatprep.mubr.bf16.mxu0 0
    %1339 = vmatmul.mubr.bf16.gmra.mxu0 %v1301
    %v1340 = vpop.f32.mrf.mxu0
    %v1341 = vadd.f32 %v1273, %v1340
    %v1342 = vpop.f32.mrf.mxu0
    %v1343 = vadd.f32 %v1273, %v1342
    %v1344 = vpop.f32.mrf.mxu0
    %v1345 = vadd.f32 %v1278, %v1344
    %v1346 = vpop.f32.mrf.mxu0
    %v1347 = vadd.f32 %v1278, %v1346
    %1348 = vmatprep.mubr.bf16.mxu0 0
    %1349 = vmatmul.mubr.bf16.gmra.mxu0 %v1304
    %v1350 = vpop.f32.mrf.mxu0
    %v1351 = vadd.f32 %v1283, %v1350
    %v1352 = vpop.f32.mrf.mxu0
    %v1353 = vadd.f32 %v1283, %v1352
    %v1354 = vpop.f32.mrf.mxu0
    %v1355 = vadd.f32 %v1288, %v1354
    %v1356 = vpop.f32.mrf.mxu0
    %v1357 = vadd.f32 %v1288, %v1356
    %1358 = vdwg.mxu0
    %1359 = vmatprep.subr.bf16.mxu0 0
    %1360 = vmatpush1.bf16.msra.mxu0 0
    %1361 = vmatprep.subr.bf16.mxu0 0
    %1362 = vmatpush1.bf16.msra.mxu0 0
    %1363 = vmatprep.subr.bf16.mxu0 0
    %1364 = vmatpush1.bf16.msra.mxu0 0
    %1365 = vmatprep.subr.bf16.mxu0 0
    %1366 = vmatpush1.bf16.msra.mxu0 0
    %1367 = vmatprep.subr.bf16.mxu0 0
    %1368 = vmatpush1.bf16.msra.mxu0 0
    %1369 = vmatprep.subr.bf16.mxu0 0
    %1370 = vmatpush1.bf16.msra.mxu0 0
    %1371 = vmatprep.subr.bf16.mxu0 %v1264
    %1372 = vmatpush1.bf16.msra.mxu0 %v1263
    %1373 = vmatprep.subr.bf16.mxu0 %v1260
    %1374 = vmatpush1.bf16.msra.mxu0 %v1259
    %1375 = vmatprep.subr.bf16.mxu0 0
    %1376 = vmatpush2.bf16.msra.mxu0 0
    %1377 = vmatprep.subr.bf16.mxu0 0
    %1378 = vmatpush2.bf16.msra.mxu0 0
    %1379 = vmatprep.subr.bf16.mxu0 0
    %1380 = vmatpush2.bf16.msra.mxu0 0
    %1381 = vmatprep.subr.bf16.mxu0 0
    %1382 = vmatpush2.bf16.msra.mxu0 0
    %1383 = vmatprep.subr.bf16.mxu0 0
    %1384 = vmatpush2.bf16.msra.mxu0 0
    %1385 = vmatprep.subr.bf16.mxu0 0
    %1386 = vmatpush2.bf16.msra.mxu0 0
    %1387 = vmatprep.subr.bf16.mxu0 0
    %1388 = vmatpush2.bf16.msra.mxu0 0
    %1389 = vmatprep.subr.bf16.mxu0 0
    %1390 = vmatpush2.bf16.msra.mxu0 0
    %1391 = vmatprep.mubr.bf16.mxu0 0
    %1392 = vmatmul.mubr.bf16.gmra.mxu0 %v1301
    %v1393 = vpop.f32.mrf.mxu0
    %v1394 = vadd.f32 %v1273, %v1393
    %v1395 = vpop.f32.mrf.mxu0
    %v1396 = vadd.f32 %v1273, %v1395
    %v1397 = vpop.f32.mrf.mxu0
    %v1398 = vadd.f32 %v1278, %v1397
    %v1399 = vpop.f32.mrf.mxu0
    %v1400 = vadd.f32 %v1278, %v1399
    %1401 = vmatprep.mubr.bf16.mxu0 0
    %1402 = vmatmul.mubr.bf16.gmra.mxu0 %v1304
    %v1403 = vpop.f32.mrf.mxu0
    %v1404 = vadd.f32 %v1283, %v1403
    %v1405 = vpop.f32.mrf.mxu0
    %v1406 = vadd.f32 %v1283, %v1405
    %v1407 = vpop.f32.mrf.mxu0
    %v1408 = vadd.f32 %v1288, %v1407
    %v1409 = vpop.f32.mrf.mxu0
    %v1410 = vadd.f32 %v1288, %v1409
    %1411 = vdwg.mxu0
    %v1412 = vadd.f32 %v890, %v1341
    %v1413 = vadd.f32 %v891, %v1343
    %v1414 = vadd.f32 %v892, %v1394
    %v1415 = vadd.f32 %v893, %v1396
    %v1416 = vadd.f32 %v894, %v1345
    %v1417 = vadd.f32 %v895, %v1347
    %v1418 = vadd.f32 %v896, %v1398
    %v1419 = vadd.f32 %v897, %v1400
    %v1420 = vadd.f32 %v898, %v1351
    %v1421 = vadd.f32 %v899, %v1353
    %v1422 = vadd.f32 %v900, %v1404
    %v1423 = vadd.f32 %v901, %v1406
    %v1424 = vadd.f32 %v902, %v1355
    %v1425 = vadd.f32 %v903, %v1357
    %v1426 = vadd.f32 %v904, %v1408
    %v1427 = vadd.f32 %v905, %v1410
    %vm1428 = vcmp.ge.s32.totalorder %v125, 4
    %vm1429 = vcmp.ge.s32.totalorder %v126, 4
    %vm1430 = vcmp.ge.s32.totalorder %v127, 4
    %vm1431 = vcmp.ge.s32.totalorder %v128, 4
    %1432 = vrot.lane.b32.xlu0 %v1412, 4
    %v1433 = vpop.permute.xlu0 %1432
    %1434 = vrot.lane.b32.xlu0 %v1416, 4
    %v1435 = vpop.permute.xlu0 %1434
    %1436 = vrot.lane.b32.xlu0 %v1420, 4
    %v1437 = vpop.permute.xlu0 %1436
    %1438 = vrot.lane.b32.xlu0 %v1424, 4
    %v1439 = vpop.permute.xlu0 %1438
    %1440 = vrot.lane.b32.xlu0 %v1413, 4
    %v1441 = vpop.permute.xlu0 %1440
    %1442 = vrot.lane.b32.xlu0 %v1417, 4
    %v1443 = vpop.permute.xlu0 %1442
    %1444 = vrot.lane.b32.xlu0 %v1421, 4
    %v1445 = vpop.permute.xlu0 %1444
    %1446 = vrot.lane.b32.xlu0 %v1425, 4
    %v1447 = vpop.permute.xlu0 %1446
    %1448 = vrot.lane.b32.xlu0 %v1414, 4
    %v1449 = vpop.permute.xlu0 %1448
    %1450 = vrot.lane.b32.xlu0 %v1418, 4
    %v1451 = vpop.permute.xlu0 %1450
    %1452 = vrot.lane.b32.xlu0 %v1422, 4
    %v1453 = vpop.permute.xlu0 %1452
    %1454 = vrot.lane.b32.xlu0 %v1426, 4
    %v1455 = vpop.permute.xlu0 %1454
    %1456 = vrot.lane.b32.xlu0 %v1415, 4
    %v1457 = vpop.permute.xlu0 %1456
    %1458 = vrot.lane.b32.xlu0 %v1419, 4
    %v1459 = vpop.permute.xlu0 %1458
    %1460 = vrot.lane.b32.xlu0 %v1423, 4
    %v1461 = vpop.permute.xlu0 %1460
    %1462 = vrot.lane.b32.xlu0 %v1427, 4
    %v1463 = vpop.permute.xlu0 %1462
    %vm1464 = vcmp.lt.s32.totalorder %v77, 4
    %v1465 = vsel %vm1464, %v1449, %v1457
    %v1466 = vsel %vm1464, %v1451, %v1459
    %v1467 = vsel %vm1464, %v1453, %v1461
    %v1468 = vsel %vm1464, %v1455, %v1463
    %v1469 = vsel %vm1464, %v1441, %v1449
    %v1470 = vsel %vm1464, %v1443, %v1451
    %v1471 = vsel %vm1464, %v1445, %v1453
    %v1472 = vsel %vm1464, %v1447, %v1455
    %v1473 = vsel %vm1464, %v1433, %v1441
    %v1474 = vsel %vm1464, %v1435, %v1443
    %v1475 = vsel %vm1464, %v1437, %v1445
    %v1476 = vsel %vm1464, %v1439, %v1447
    %v1477 = vsel %vm1464, %v1457, %v1433
    %v1478 = vsel %vm1464, %v1459, %v1435
    %v1479 = vsel %vm1464, %v1461, %v1437
    %v1480 = vsel %vm1464, %v1463, %v1439
    %v1481 = vsel %vm1428, 1, 0
    %v1482 = vsel %vm1429, 1, 0
    %v1483 = vsel %vm1430, 1, 0
    %v1484 = vsel %vm1431, 1, 0
    %vm1485 = vcmp.eq.s32.totalorder %v1481, 1
    %vm1486 = vcmp.eq.s32.totalorder %v1482, 1
    %vm1487 = vcmp.eq.s32.totalorder %v1483, 1
    %vm1488 = vcmp.eq.s32.totalorder %v1484, 1
    %v1489 = vsel %vm1485, %v1477, 0.0
    %v1490 = vsel %vm1486, %v1473, 0.0
    %v1491 = vsel %vm1487, %v1469, 0.0
    %v1492 = vsel %vm1488, %v1465, 0.0
    %v1493 = vsel %vm1485, %v1478, 0.0
    %v1494 = vsel %vm1486, %v1474, 0.0
    %v1495 = vsel %vm1487, %v1470, 0.0
    %v1496 = vsel %vm1488, %v1466, 0.0
    %v1497 = vsel %vm1485, %v1479, 0.0
    %v1498 = vsel %vm1486, %v1475, 0.0
    %v1499 = vsel %vm1487, %v1471, 0.0
    %v1500 = vsel %vm1488, %v1467, 0.0
    %v1501 = vsel %vm1485, %v1480, 0.0
    %v1502 = vsel %vm1486, %v1476, 0.0
    %v1503 = vsel %vm1487, %v1472, 0.0
    %v1504 = vsel %vm1488, %v1468, 0.0
    %vm1505 = vcmp.lt.s32.totalorder %v125, 124
    %vm1506 = vcmp.lt.s32.totalorder %v126, 124
    %vm1507 = vcmp.lt.s32.totalorder %v127, 124
    %vm1508 = vcmp.lt.s32.totalorder %v128, 124
    %1509 = vrot.lane.b32.xlu0 %v1412, 124
    %v1510 = vpop.permute.xlu0 %1509
    %1511 = vrot.lane.b32.xlu0 %v1416, 124
    %v1512 = vpop.permute.xlu0 %1511
    %1513 = vrot.lane.b32.xlu0 %v1420, 124
    %v1514 = vpop.permute.xlu0 %1513
    %1515 = vrot.lane.b32.xlu0 %v1424, 124
    %v1516 = vpop.permute.xlu0 %1515
    %1517 = vrot.lane.b32.xlu0 %v1413, 124
    %v1518 = vpop.permute.xlu0 %1517
    %1519 = vrot.lane.b32.xlu0 %v1417, 124
    %v1520 = vpop.permute.xlu0 %1519
    %1521 = vrot.lane.b32.xlu0 %v1421, 124
    %v1522 = vpop.permute.xlu0 %1521
    %1523 = vrot.lane.b32.xlu0 %v1425, 124
    %v1524 = vpop.permute.xlu0 %1523
    %1525 = vrot.lane.b32.xlu0 %v1414, 124
    %v1526 = vpop.permute.xlu0 %1525
    %1527 = vrot.lane.b32.xlu0 %v1418, 124
    %v1528 = vpop.permute.xlu0 %1527
    %1529 = vrot.lane.b32.xlu0 %v1422, 124
    %v1530 = vpop.permute.xlu0 %1529
    %1531 = vrot.lane.b32.xlu0 %v1426, 124
    %v1532 = vpop.permute.xlu0 %1531
    %1533 = vrot.lane.b32.xlu0 %v1415, 124
    %v1534 = vpop.permute.xlu0 %1533
    %1535 = vrot.lane.b32.xlu0 %v1419, 124
    %v1536 = vpop.permute.xlu0 %1535
    %1537 = vrot.lane.b32.xlu0 %v1423, 124
    %v1538 = vpop.permute.xlu0 %1537
    %1539 = vrot.lane.b32.xlu0 %v1427, 124
    %v1540 = vpop.permute.xlu0 %1539
    %vm1541 = vcmp.lt.s32.totalorder %v77, 124
    %v1542 = vsel %vm1541, %v1526, %v1534
    %v1543 = vsel %vm1541, %v1528, %v1536
    %v1544 = vsel %vm1541, %v1530, %v1538
    %v1545 = vsel %vm1541, %v1532, %v1540
    %v1546 = vsel %vm1541, %v1518, %v1526
    %v1547 = vsel %vm1541, %v1520, %v1528
    %v1548 = vsel %vm1541, %v1522, %v1530
    %v1549 = vsel %vm1541, %v1524, %v1532
    %v1550 = vsel %vm1541, %v1510, %v1518
    %v1551 = vsel %vm1541, %v1512, %v1520
    %v1552 = vsel %vm1541, %v1514, %v1522
    %v1553 = vsel %vm1541, %v1516, %v1524
    %v1554 = vsel %vm1541, %v1534, %v1510
    %v1555 = vsel %vm1541, %v1536, %v1512
    %v1556 = vsel %vm1541, %v1538, %v1514
    %v1557 = vsel %vm1541, %v1540, %v1516
    %v1558 = vsel %vm1505, 1, 0
    %v1559 = vsel %vm1506, 1, 0
    %v1560 = vsel %vm1507, 1, 0
    %v1561 = vsel %vm1508, 1, 0
    %vm1562 = vcmp.eq.s32.totalorder %v1558, 1
    %vm1563 = vcmp.eq.s32.totalorder %v1559, 1
    %vm1564 = vcmp.eq.s32.totalorder %v1560, 1
    %vm1565 = vcmp.eq.s32.totalorder %v1561, 1
    %v1566 = vsel %vm1562, %v1550, 0.0
    %v1567 = vsel %vm1563, %v1546, 0.0
    %v1568 = vsel %vm1564, %v1542, 0.0
    %v1569 = vsel %vm1565, %v1554, 0.0
    %v1570 = vsel %vm1562, %v1551, 0.0
    %v1571 = vsel %vm1563, %v1547, 0.0
    %v1572 = vsel %vm1564, %v1543, 0.0
    %v1573 = vsel %vm1565, %v1555, 0.0
    %v1574 = vsel %vm1562, %v1552, 0.0
    %v1575 = vsel %vm1563, %v1548, 0.0
    %v1576 = vsel %vm1564, %v1544, 0.0
    %v1577 = vsel %vm1565, %v1556, 0.0
    %v1578 = vsel %vm1562, %v1553, 0.0
    %v1579 = vsel %vm1563, %v1549, 0.0
    %v1580 = vsel %vm1564, %v1545, 0.0
    %v1581 = vsel %vm1565, %v1557, 0.0
    %v1582 = vpack.c.bf16 %v1493, %v1489
    %v1583 = vpack.c.bf16 %v1494, %v1490
    %v1584 = vpack.c.bf16 %v1495, %v1491
    %v1585 = vpack.c.bf16 %v1496, %v1492
    %v1586 = vpack.c.bf16 %v1501, %v1497
    %v1587 = vpack.c.bf16 %v1502, %v1498
    %v1588 = vpack.c.bf16 %v1503, %v1499
    %v1589 = vpack.c.bf16 %v1504, %v1500
    %v1590 = vpack.c.bf16 %v1416, %v1412
    %v1591 = vpack.c.bf16 %v1417, %v1413
    %v1592 = vpack.c.bf16 %v1418, %v1414
    %v1593 = vpack.c.bf16 %v1419, %v1415
    %v1594 = vpack.c.bf16 %v1424, %v1420
    %v1595 = vpack.c.bf16 %v1425, %v1421
    %v1596 = vpack.c.bf16 %v1426, %v1422
    %v1597 = vpack.c.bf16 %v1427, %v1423
    %v1598 = vpack.c.bf16 %v1570, %v1566
    %v1599 = vpack.c.bf16 %v1571, %v1567
    %v1600 = vpack.c.bf16 %v1572, %v1568
    %v1601 = vpack.c.bf16 %v1573, %v1569
    %v1602 = vpack.c.bf16 %v1578, %v1574
    %v1603 = vpack.c.bf16 %v1579, %v1575
    %v1604 = vpack.c.bf16 %v1580, %v1576
    %v1605 = vpack.c.bf16 %v1581, %v1577
    %s1606 = scalar_lea.vmem %s7, 32
    %v1607 = vld [vmem:[%s1606] sm:$0xf]
    %v1608 = vld [vmem:[%s1606 + $0x4] sm:$0xf]
    %v1609 = vld [vmem:[%s1606 + $0x8] sm:$0xf]
    %v1610 = vld [vmem:[%s1606 + $0xc] sm:$0xf]
    %s1611 = scalar_lea.vmem %s8, 64
    %v1612 = vld [vmem:[%s1611] sm:$0xff]
    %v1613 = vld [vmem:[%s1611 + $0x8] sm:$0xff]
    %v1614 = vld [vmem:[%s1611 + $0x10] sm:$0xff]
    %v1615 = vld [vmem:[%s1611 + $0x18] sm:$0xff]
    %1617 = vset.pattern.permute.xlu0 0
    %1618 = vperm.xlu0 %1617, %v1612
    %v1619 = vpop.permute.xlu0 %1618
    %1622 = vset.pattern.permute.xlu0 0
    %1623 = vperm.xlu0 %1622, %v1613
    %v1624 = vpop.permute.xlu0 %1623
    %1627 = vset.pattern.permute.xlu0 0
    %1628 = vperm.xlu0 %1627, %v1614
    %v1629 = vpop.permute.xlu0 %1628
    %1632 = vset.pattern.permute.xlu0 0
    %1633 = vperm.xlu0 %1632, %v1615
    %v1634 = vpop.permute.xlu0 %1633
    %v1640 = vunpack.c.l.b16 %v1607
    %v1641 = vunpack.c.l.b16 %v1608
    %v1642 = vunpack.c.l.b16 %v1609
    %v1643 = vunpack.c.l.b16 %v1610
    %v1644 = vpack.c.b16 %v1641, %v1640
    %v1645 = vpack.c.b16 %v1643, %v1642
    %v1647 = vsel %vm602, %v1644, 0
    %v1650 = vsel %vm602, %v1645, 0
    %1652 = vmatprep.subr.bf16.mxu0 0
    %1653 = vmatpush1.bf16.msra.mxu0 0
    %1654 = vmatprep.subr.bf16.mxu0 0
    %1655 = vmatpush1.bf16.msra.mxu0 0
    %1656 = vmatprep.subr.bf16.mxu0 %v1603
    %1657 = vmatpush1.bf16.msra.mxu0 %v1602
    %1658 = vmatprep.subr.bf16.mxu0 %v1599
    %1659 = vmatpush1.bf16.msra.mxu0 %v1598
    %1660 = vmatprep.subr.bf16.mxu0 %v1595
    %1661 = vmatpush1.bf16.msra.mxu0 %v1594
    %1662 = vmatprep.subr.bf16.mxu0 %v1591
    %1663 = vmatpush1.bf16.msra.mxu0 %v1590
    %1664 = vmatprep.subr.bf16.mxu0 %v1587
    %1665 = vmatpush1.bf16.msra.mxu0 %v1586
    %1666 = vmatprep.subr.bf16.mxu0 %v1583
    %1667 = vmatpush1.bf16.msra.mxu0 %v1582
    %1668 = vmatprep.subr.bf16.mxu0 0
    %1669 = vmatpush2.bf16.msra.mxu0 0
    %1670 = vmatprep.subr.bf16.mxu0 0
    %1671 = vmatpush2.bf16.msra.mxu0 0
    %1672 = vmatprep.subr.bf16.mxu0 0
    %1673 = vmatpush2.bf16.msra.mxu0 0
    %1674 = vmatprep.subr.bf16.mxu0 0
    %1675 = vmatpush2.bf16.msra.mxu0 0
    %1676 = vmatprep.subr.bf16.mxu0 0
    %1677 = vmatpush2.bf16.msra.mxu0 0
    %1678 = vmatprep.subr.bf16.mxu0 0
    %1679 = vmatpush2.bf16.msra.mxu0 0
    %1680 = vmatprep.subr.bf16.mxu0 0
    %1681 = vmatpush2.bf16.msra.mxu0 0
    %1682 = vmatprep.subr.bf16.mxu0 0
    %1683 = vmatpush2.bf16.msra.mxu0 0
    %1684 = vmatprep.mubr.bf16.mxu0 0
    %1685 = vmatmul.mubr.bf16.gmra.mxu0 %v1647
    %v1686 = vpop.f32.mrf.mxu0
    %v1687 = vadd.f32 %v1619, %v1686
    %v1688 = vpop.f32.mrf.mxu0
    %v1689 = vadd.f32 %v1619, %v1688
    %v1690 = vpop.f32.mrf.mxu0
    %v1691 = vadd.f32 %v1624, %v1690
    %v1692 = vpop.f32.mrf.mxu0
    %v1693 = vadd.f32 %v1624, %v1692
    %1694 = vmatprep.mubr.bf16.mxu0 0
    %1695 = vmatmul.mubr.bf16.gmra.mxu0 %v1650
    %v1696 = vpop.f32.mrf.mxu0
    %v1697 = vadd.f32 %v1629, %v1696
    %v1698 = vpop.f32.mrf.mxu0
    %v1699 = vadd.f32 %v1629, %v1698
    %v1700 = vpop.f32.mrf.mxu0
    %v1701 = vadd.f32 %v1634, %v1700
    %v1702 = vpop.f32.mrf.mxu0
    %v1703 = vadd.f32 %v1634, %v1702
    %1704 = vdwg.mxu0
    %1705 = vmatprep.subr.bf16.mxu0 0
    %1706 = vmatpush1.bf16.msra.mxu0 0
    %1707 = vmatprep.subr.bf16.mxu0 0
    %1708 = vmatpush1.bf16.msra.mxu0 0
    %1709 = vmatprep.subr.bf16.mxu0 %v1605
    %1710 = vmatpush1.bf16.msra.mxu0 %v1604
    %1711 = vmatprep.subr.bf16.mxu0 %v1601
    %1712 = vmatpush1.bf16.msra.mxu0 %v1600
    %1713 = vmatprep.subr.bf16.mxu0 %v1597
    %1714 = vmatpush1.bf16.msra.mxu0 %v1596
    %1715 = vmatprep.subr.bf16.mxu0 %v1593
    %1716 = vmatpush1.bf16.msra.mxu0 %v1592
    %1717 = vmatprep.subr.bf16.mxu0 %v1589
    %1718 = vmatpush1.bf16.msra.mxu0 %v1588
    %1719 = vmatprep.subr.bf16.mxu0 %v1585
    %1720 = vmatpush1.bf16.msra.mxu0 %v1584
    %1721 = vmatprep.subr.bf16.mxu0 0
    %1722 = vmatpush2.bf16.msra.mxu0 0
    %1723 = vmatprep.subr.bf16.mxu0 0
    %1724 = vmatpush2.bf16.msra.mxu0 0
    %1725 = vmatprep.subr.bf16.mxu0 0
    %1726 = vmatpush2.bf16.msra.mxu0 0
    %1727 = vmatprep.subr.bf16.mxu0 0
    %1728 = vmatpush2.bf16.msra.mxu0 0
    %1729 = vmatprep.subr.bf16.mxu0 0
    %1730 = vmatpush2.bf16.msra.mxu0 0
    %1731 = vmatprep.subr.bf16.mxu0 0
    %1732 = vmatpush2.bf16.msra.mxu0 0
    %1733 = vmatprep.subr.bf16.mxu0 0
    %1734 = vmatpush2.bf16.msra.mxu0 0
    %1735 = vmatprep.subr.bf16.mxu0 0
    %1736 = vmatpush2.bf16.msra.mxu0 0
    %1737 = vmatprep.mubr.bf16.mxu0 0
    %1738 = vmatmul.mubr.bf16.gmra.mxu0 %v1647
    %v1739 = vpop.f32.mrf.mxu0
    %v1740 = vadd.f32 %v1619, %v1739
    %v1741 = vpop.f32.mrf.mxu0
    %v1742 = vadd.f32 %v1619, %v1741
    %v1743 = vpop.f32.mrf.mxu0
    %v1744 = vadd.f32 %v1624, %v1743
    %v1745 = vpop.f32.mrf.mxu0
    %v1746 = vadd.f32 %v1624, %v1745
    %1747 = vmatprep.mubr.bf16.mxu0 0
    %1748 = vmatmul.mubr.bf16.gmra.mxu0 %v1650
    %v1749 = vpop.f32.mrf.mxu0
    %v1750 = vadd.f32 %v1629, %v1749
    %v1751 = vpop.f32.mrf.mxu0
    %v1752 = vadd.f32 %v1629, %v1751
    %v1753 = vpop.f32.mrf.mxu0
    %v1754 = vadd.f32 %v1634, %v1753
    %v1755 = vpop.f32.mrf.mxu0
    %v1756 = vadd.f32 %v1634, %v1755
    %1757 = vdwg.mxu0
    %v1758 = vmax.f32 %v1687, 0.0
    %v1759 = vmax.f32 %v1689, 0.0
    %v1760 = vmax.f32 %v1740, 0.0
    %v1761 = vmax.f32 %v1742, 0.0
    %v1762 = vmax.f32 %v1691, 0.0
    %v1763 = vmax.f32 %v1693, 0.0
    %v1764 = vmax.f32 %v1744, 0.0
    %v1765 = vmax.f32 %v1746, 0.0
    %v1766 = vmax.f32 %v1697, 0.0
    %v1767 = vmax.f32 %v1699, 0.0
    %v1768 = vmax.f32 %v1750, 0.0
    %v1769 = vmax.f32 %v1752, 0.0
    %v1770 = vmax.f32 %v1701, 0.0
    %v1771 = vmax.f32 %v1703, 0.0
    %v1772 = vmax.f32 %v1754, 0.0
    %v1773 = vmax.f32 %v1756, 0.0
    %s1774 = scalar_lea.vmem %s9, 32
    %v1775 = vld [vmem:[%s1774] sm:$0xf]
    %v1776 = vld [vmem:[%s1774 + $0x4] sm:$0xf]
    %v1777 = vld [vmem:[%s1774 + $0x8] sm:$0xf]
    %v1778 = vld [vmem:[%s1774 + $0xc] sm:$0xf]
    %v1779 = vpack.c.bf16 %v1762, %v1758
    %v1780 = vpack.c.bf16 %v1763, %v1759
    %v1781 = vpack.c.bf16 %v1764, %v1760
    %v1782 = vpack.c.bf16 %v1765, %v1761
    %v1783 = vpack.c.bf16 %v1770, %v1766
    %v1784 = vpack.c.bf16 %v1771, %v1767
    %v1785 = vpack.c.bf16 %v1772, %v1768
    %v1786 = vpack.c.bf16 %v1773, %v1769
    %s1787 = scalar_lea.vmem %s10, 64
    %v1788 = vld [vmem:[%s1787] sm:$0xff]
    %v1789 = vld [vmem:[%s1787 + $0x8] sm:$0xff]
    %v1790 = vld [vmem:[%s1787 + $0x10] sm:$0xff]
    %v1791 = vld [vmem:[%s1787 + $0x18] sm:$0xff]
    %1793 = vset.pattern.permute.xlu0 0
    %1794 = vperm.xlu0 %1793, %v1788
    %v1795 = vpop.permute.xlu0 %1794
    %1798 = vset.pattern.permute.xlu0 0
    %1799 = vperm.xlu0 %1798, %v1789
    %v1800 = vpop.permute.xlu0 %1799
    %1803 = vset.pattern.permute.xlu0 0
    %1804 = vperm.xlu0 %1803, %v1790
    %v1805 = vpop.permute.xlu0 %1804
    %1808 = vset.pattern.permute.xlu0 0
    %1809 = vperm.xlu0 %1808, %v1791
    %v1810 = vpop.permute.xlu0 %1809
    %v1816 = vunpack.c.l.b16 %v1775
    %v1817 = vunpack.c.l.b16 %v1776
    %v1818 = vunpack.c.l.b16 %v1777
    %v1819 = vunpack.c.l.b16 %v1778
    %v1820 = vpack.c.b16 %v1817, %v1816
    %v1821 = vpack.c.b16 %v1819, %v1818
    %v1823 = vsel %vm777, %v1820, 0
    %v1826 = vsel %vm777, %v1821, 0
    %1828 = vmatprep.subr.bf16.mxu0 0
    %1829 = vmatpush1.bf16.msra.mxu0 0
    %1830 = vmatprep.subr.bf16.mxu0 0
    %1831 = vmatpush1.bf16.msra.mxu0 0
    %1832 = vmatprep.subr.bf16.mxu0 0
    %1833 = vmatpush1.bf16.msra.mxu0 0
    %1834 = vmatprep.subr.bf16.mxu0 0
    %1835 = vmatpush1.bf16.msra.mxu0 0
    %1836 = vmatprep.subr.bf16.mxu0 0
    %1837 = vmatpush1.bf16.msra.mxu0 0
    %1838 = vmatprep.subr.bf16.mxu0 0
    %1839 = vmatpush1.bf16.msra.mxu0 0
    %1840 = vmatprep.subr.bf16.mxu0 %v1784
    %1841 = vmatpush1.bf16.msra.mxu0 %v1783
    %1842 = vmatprep.subr.bf16.mxu0 %v1780
    %1843 = vmatpush1.bf16.msra.mxu0 %v1779
    %1844 = vmatprep.subr.bf16.mxu0 0
    %1845 = vmatpush2.bf16.msra.mxu0 0
    %1846 = vmatprep.subr.bf16.mxu0 0
    %1847 = vmatpush2.bf16.msra.mxu0 0
    %1848 = vmatprep.subr.bf16.mxu0 0
    %1849 = vmatpush2.bf16.msra.mxu0 0
    %1850 = vmatprep.subr.bf16.mxu0 0
    %1851 = vmatpush2.bf16.msra.mxu0 0
    %1852 = vmatprep.subr.bf16.mxu0 0
    %1853 = vmatpush2.bf16.msra.mxu0 0
    %1854 = vmatprep.subr.bf16.mxu0 0
    %1855 = vmatpush2.bf16.msra.mxu0 0
    %1856 = vmatprep.subr.bf16.mxu0 0
    %1857 = vmatpush2.bf16.msra.mxu0 0
    %1858 = vmatprep.subr.bf16.mxu0 0
    %1859 = vmatpush2.bf16.msra.mxu0 0
    %1860 = vmatprep.mubr.bf16.mxu0 0
    %1861 = vmatmul.mubr.bf16.gmra.mxu0 %v1823
    %v1862 = vpop.f32.mrf.mxu0
    %v1863 = vadd.f32 %v1795, %v1862
    %v1864 = vpop.f32.mrf.mxu0
    %v1865 = vadd.f32 %v1795, %v1864
    %v1866 = vpop.f32.mrf.mxu0
    %v1867 = vadd.f32 %v1800, %v1866
    %v1868 = vpop.f32.mrf.mxu0
    %v1869 = vadd.f32 %v1800, %v1868
    %1870 = vmatprep.mubr.bf16.mxu0 0
    %1871 = vmatmul.mubr.bf16.gmra.mxu0 %v1826
    %v1872 = vpop.f32.mrf.mxu0
    %v1873 = vadd.f32 %v1805, %v1872
    %v1874 = vpop.f32.mrf.mxu0
    %v1875 = vadd.f32 %v1805, %v1874
    %v1876 = vpop.f32.mrf.mxu0
    %v1877 = vadd.f32 %v1810, %v1876
    %v1878 = vpop.f32.mrf.mxu0
    %v1879 = vadd.f32 %v1810, %v1878
    %1880 = vdwg.mxu0
    %1881 = vmatprep.subr.bf16.mxu0 0
    %1882 = vmatpush1.bf16.msra.mxu0 0
    %1883 = vmatprep.subr.bf16.mxu0 0
    %1884 = vmatpush1.bf16.msra.mxu0 0
    %1885 = vmatprep.subr.bf16.mxu0 0
    %1886 = vmatpush1.bf16.msra.mxu0 0
    %1887 = vmatprep.subr.bf16.mxu0 0
    %1888 = vmatpush1.bf16.msra.mxu0 0
    %1889 = vmatprep.subr.bf16.mxu0 0
    %1890 = vmatpush1.bf16.msra.mxu0 0
    %1891 = vmatprep.subr.bf16.mxu0 0
    %1892 = vmatpush1.bf16.msra.mxu0 0
    %1893 = vmatprep.subr.bf16.mxu0 %v1786
    %1894 = vmatpush1.bf16.msra.mxu0 %v1785
    %1895 = vmatprep.subr.bf16.mxu0 %v1782
    %1896 = vmatpush1.bf16.msra.mxu0 %v1781
    %1897 = vmatprep.subr.bf16.mxu0 0
    %1898 = vmatpush2.bf16.msra.mxu0 0
    %1899 = vmatprep.subr.bf16.mxu0 0
    %1900 = vmatpush2.bf16.msra.mxu0 0
    %1901 = vmatprep.subr.bf16.mxu0 0
    %1902 = vmatpush2.bf16.msra.mxu0 0
    %1903 = vmatprep.subr.bf16.mxu0 0
    %1904 = vmatpush2.bf16.msra.mxu0 0
    %1905 = vmatprep.subr.bf16.mxu0 0
    %1906 = vmatpush2.bf16.msra.mxu0 0
    %1907 = vmatprep.subr.bf16.mxu0 0
    %1908 = vmatpush2.bf16.msra.mxu0 0
    %1909 = vmatprep.subr.bf16.mxu0 0
    %1910 = vmatpush2.bf16.msra.mxu0 0
    %1911 = vmatprep.subr.bf16.mxu0 0
    %1912 = vmatpush2.bf16.msra.mxu0 0
    %1913 = vmatprep.mubr.bf16.mxu0 0
    %1914 = vmatmul.mubr.bf16.gmra.mxu0 %v1823
    %v1915 = vpop.f32.mrf.mxu0
    %v1916 = vadd.f32 %v1795, %v1915
    %v1917 = vpop.f32.mrf.mxu0
    %v1918 = vadd.f32 %v1795, %v1917
    %v1919 = vpop.f32.mrf.mxu0
    %v1920 = vadd.f32 %v1800, %v1919
    %v1921 = vpop.f32.mrf.mxu0
    %v1922 = vadd.f32 %v1800, %v1921
    %1923 = vmatprep.mubr.bf16.mxu0 0
    %1924 = vmatmul.mubr.bf16.gmra.mxu0 %v1826
    %v1925 = vpop.f32.mrf.mxu0
    %v1926 = vadd.f32 %v1805, %v1925
    %v1927 = vpop.f32.mrf.mxu0
    %v1928 = vadd.f32 %v1805, %v1927
    %v1929 = vpop.f32.mrf.mxu0
    %v1930 = vadd.f32 %v1810, %v1929
    %v1931 = vpop.f32.mrf.mxu0
    %v1932 = vadd.f32 %v1810, %v1931
    %1933 = vdwg.mxu0
    %v1934 = vadd.f32 %v1412, %v1863
    %v1935 = vadd.f32 %v1413, %v1865
    %v1936 = vadd.f32 %v1414, %v1916
    %v1937 = vadd.f32 %v1415, %v1918
    %v1938 = vadd.f32 %v1416, %v1867
    %v1939 = vadd.f32 %v1417, %v1869
    %v1940 = vadd.f32 %v1418, %v1920
    %v1941 = vadd.f32 %v1419, %v1922
    %v1942 = vadd.f32 %v1420, %v1873
    %v1943 = vadd.f32 %v1421, %v1875
    %v1944 = vadd.f32 %v1422, %v1926
    %v1945 = vadd.f32 %v1423, %v1928
    %v1946 = vadd.f32 %v1424, %v1877
    %v1947 = vadd.f32 %v1425, %v1879
    %v1948 = vadd.f32 %v1426, %v1930
    %v1949 = vadd.f32 %v1427, %v1932
    %1950 = vst [vmem:[#allocation2] sm:$0xff] %v1934
    %1951 = vst [vmem:[#allocation2 + $0x8] sm:$0xff] %v1935
    %1952 = vst [vmem:[#allocation2 + $0x10] sm:$0xff] %v1936
    %1953 = vst [vmem:[#allocation2 + $0x18] sm:$0xff] %v1937
    %1954 = vst [vmem:[#allocation2 + $0x20] sm:$0xff] %v1938
    %1955 = vst [vmem:[#allocation2 + $0x28] sm:$0xff] %v1939
    %1956 = vst [vmem:[#allocation2 + $0x30] sm:$0xff] %v1940
    %1957 = vst [vmem:[#allocation2 + $0x38] sm:$0xff] %v1941
    %1958 = vst [vmem:[#allocation2 + $0x40] sm:$0xff] %v1942
    %1959 = vst [vmem:[#allocation2 + $0x48] sm:$0xff] %v1943
    %1960 = vst [vmem:[#allocation2 + $0x50] sm:$0xff] %v1944
    %1961 = vst [vmem:[#allocation2 + $0x58] sm:$0xff] %v1945
    %1962 = vst [vmem:[#allocation2 + $0x60] sm:$0xff] %v1946
    %1963 = vst [vmem:[#allocation2 + $0x68] sm:$0xff] %v1947
    %1964 = vst [vmem:[#allocation2 + $0x70] sm:$0xff] %v1948
    %1965 = vst [vmem:[#allocation2 + $0x78] sm:$0xff] %v1949
    %v1966 = vpack.c.bf16 %v1938, %v1934
    %v1967 = vpack.c.bf16 %v1939, %v1935
    %v1968 = vpack.c.bf16 %v1940, %v1936
    %v1969 = vpack.c.bf16 %v1941, %v1937
    %v1970 = vpack.c.bf16 %v1946, %v1942
    %v1971 = vpack.c.bf16 %v1947, %v1943
    %v1972 = vpack.c.bf16 %v1948, %v1944
    %v1973 = vpack.c.bf16 %v1949, %v1945
    %v1974 = vld [vmem:[%s11] sm:$0xf]
    %v1975 = vld [vmem:[%s12] sm:$0xff]
    %1977 = vset.pattern.permute.xlu0 0
    %1978 = vperm.xlu0 %1977, %v1975
    %v1979 = vpop.permute.xlu0 %1978
    %v1982 = vsel %vm777, %v1974, 0
    %1984 = vmatprep.subr.bf16.mxu0 0
    %1985 = vmatpush1.bf16.msra.mxu0 0
    %1986 = vmatprep.subr.bf16.mxu0 0
    %1987 = vmatpush1.bf16.msra.mxu0 0
    %1988 = vmatprep.subr.bf16.mxu0 0
    %1989 = vmatpush1.bf16.msra.mxu0 0
    %1990 = vmatprep.subr.bf16.mxu0 0
    %1991 = vmatpush1.bf16.msra.mxu0 0
    %1992 = vmatprep.subr.bf16.mxu0 0
    %1993 = vmatpush1.bf16.msra.mxu0 0
    %1994 = vmatprep.subr.bf16.mxu0 0
    %1995 = vmatpush1.bf16.msra.mxu0 0
    %1996 = vmatprep.subr.bf16.mxu0 %v1971
    %1997 = vmatpush1.bf16.msra.mxu0 %v1970
    %1998 = vmatprep.subr.bf16.mxu0 %v1967
    %1999 = vmatpush1.bf16.msra.mxu0 %v1966
    %2000 = vmatprep.subr.bf16.mxu0 0
    %2001 = vmatpush2.bf16.msra.mxu0 0
    %2002 = vmatprep.subr.bf16.mxu0 0
    %2003 = vmatpush2.bf16.msra.mxu0 0
    %2004 = vmatprep.subr.bf16.mxu0 0
    %2005 = vmatpush2.bf16.msra.mxu0 0
    %2006 = vmatprep.subr.bf16.mxu0 0
    %2007 = vmatpush2.bf16.msra.mxu0 0
    %2008 = vmatprep.subr.bf16.mxu0 0
    %2009 = vmatpush2.bf16.msra.mxu0 0
    %2010 = vmatprep.subr.bf16.mxu0 0
    %2011 = vmatpush2.bf16.msra.mxu0 0
    %2012 = vmatprep.subr.bf16.mxu0 0
    %2013 = vmatpush2.bf16.msra.mxu0 0
    %2014 = vmatprep.subr.bf16.mxu0 0
    %2015 = vmatpush2.bf16.msra.mxu0 0
    %2016 = vmatprep.mubr.bf16.mxu0 0
    %2017 = vmatmul.mubr.bf16.gmra.mxu0 %v1982
    %v2018 = vpop.f32.mrf.mxu0
    %v2019 = vadd.f32 %v1979, %v2018
    %v2020 = vpop.f32.mrf.mxu0
    %v2021 = vadd.f32 %v1979, %v2020
    %v2022 = vpop.f32.mrf.mxu0
    %v2023 = vpop.f32.mrf.mxu0
    %2024 = vdwg.mxu0
    %2025 = vmatprep.subr.bf16.mxu0 0
    %2026 = vmatpush1.bf16.msra.mxu0 0
    %2027 = vmatprep.subr.bf16.mxu0 0
    %2028 = vmatpush1.bf16.msra.mxu0 0
    %2029 = vmatprep.subr.bf16.mxu0 0
    %2030 = vmatpush1.bf16.msra.mxu0 0
    %2031 = vmatprep.subr.bf16.mxu0 0
    %2032 = vmatpush1.bf16.msra.mxu0 0
    %2033 = vmatprep.subr.bf16.mxu0 0
    %2034 = vmatpush1.bf16.msra.mxu0 0
    %2035 = vmatprep.subr.bf16.mxu0 0
    %2036 = vmatpush1.bf16.msra.mxu0 0
    %2037 = vmatprep.subr.bf16.mxu0 %v1973
    %2038 = vmatpush1.bf16.msra.mxu0 %v1972
    %2039 = vmatprep.subr.bf16.mxu0 %v1969
    %2040 = vmatpush1.bf16.msra.mxu0 %v1968
    %2041 = vmatprep.subr.bf16.mxu0 0
    %2042 = vmatpush2.bf16.msra.mxu0 0
    %2043 = vmatprep.subr.bf16.mxu0 0
    %2044 = vmatpush2.bf16.msra.mxu0 0
    %2045 = vmatprep.subr.bf16.mxu0 0
    %2046 = vmatpush2.bf16.msra.mxu0 0
    %2047 = vmatprep.subr.bf16.mxu0 0
    %2048 = vmatpush2.bf16.msra.mxu0 0
    %2049 = vmatprep.subr.bf16.mxu0 0
    %2050 = vmatpush2.bf16.msra.mxu0 0
    %2051 = vmatprep.subr.bf16.mxu0 0
    %2052 = vmatpush2.bf16.msra.mxu0 0
    %2053 = vmatprep.subr.bf16.mxu0 0
    %2054 = vmatpush2.bf16.msra.mxu0 0
    %2055 = vmatprep.subr.bf16.mxu0 0
    %2056 = vmatpush2.bf16.msra.mxu0 0
    %2057 = vmatprep.mubr.bf16.mxu0 0
    %2058 = vmatmul.mubr.bf16.gmra.mxu0 %v1982
    %v2059 = vpop.f32.mrf.mxu0
    %v2060 = vadd.f32 %v1979, %v2059
    %v2061 = vpop.f32.mrf.mxu0
    %v2062 = vadd.f32 %v1979, %v2061
    %v2063 = vpop.f32.mrf.mxu0
    %v2064 = vpop.f32.mrf.mxu0
    %2065 = vdwg.mxu0
    %2066 = vst [vmem:[#allocation4] sm:$0xff] %v2019
    %2067 = vst [vmem:[#allocation4 + $0x8] sm:$0xff] %v2021
    %2068 = vst [vmem:[#allocation4 + $0x10] sm:$0xff] %v2060
    %2069 = vst [vmem:[#allocation4 + $0x18] sm:$0xff] %v2062
    %v2070 = vrot.slane %v2019, 4
    %v2071 = vmax.f32 %v2019, %v2070
    %v2072 = vrot.slane %v2071, 2
    %v2073 = vmax.f32 %v2071, %v2072
    %v2074 = vrot.slane %v2073, 1
    %v2075 = vmax.f32 %v2073, %v2074
    %v2076 = vrot.slane %v2021, 4
    %v2077 = vmax.f32 %v2021, %v2076
    %v2078 = vrot.slane %v2077, 2
    %v2079 = vmax.f32 %v2077, %v2078
    %v2080 = vrot.slane %v2079, 1
    %v2081 = vmax.f32 %v2079, %v2080
    %v2082 = vrot.slane %v2060, 4
    %v2083 = vmax.f32 %v2060, %v2082
    %v2084 = vrot.slane %v2083, 2
    %v2085 = vmax.f32 %v2083, %v2084
    %v2086 = vrot.slane %v2085, 1
    %v2087 = vmax.f32 %v2085, %v2086
    %v2088 = vrot.slane %v2062, 4
    %v2089 = vmax.f32 %v2062, %v2088
    %v2090 = vrot.slane %v2089, 2
    %v2091 = vmax.f32 %v2089, %v2090
    %v2092 = vrot.slane %v2091, 1
    %v2093 = vmax.f32 %v2091, %v2092
    %v2094 = vsub.f32 %v2019, %v2075
    %v2095 = vsub.f32 %v2021, %v2081
    %v2096 = vsub.f32 %v2060, %v2087
    %v2097 = vsub.f32 %v2062, %v2093
    %v2098 = vmul.f32 %v2094, 1.442695
    %v2099 = vpow.pop %v2098
    %v2100 = vmul.f32 %v2095, 1.442695
    %v2101 = vpow.pop %v2100
    %v2102 = vmul.f32 %v2096, 1.442695
    %v2103 = vpow.pop %v2102
    %v2104 = vmul.f32 %v2097, 1.442695
    %v2105 = vpow.pop %v2104
    %v2106 = vrot.slane %v2099, 4
    %v2107 = vadd.f32 %v2099, %v2106
    %v2108 = vrot.slane %v2107, 2
    %v2109 = vadd.f32 %v2107, %v2108
    %v2110 = vrot.slane %v2109, 1
    %v2111 = vadd.f32 %v2109, %v2110
    %v2112 = vrot.slane %v2101, 4
    %v2113 = vadd.f32 %v2101, %v2112
    %v2114 = vrot.slane %v2113, 2
    %v2115 = vadd.f32 %v2113, %v2114
    %v2116 = vrot.slane %v2115, 1
    %v2117 = vadd.f32 %v2115, %v2116
    %v2118 = vrot.slane %v2103, 4
    %v2119 = vadd.f32 %v2103, %v2118
    %v2120 = vrot.slane %v2119, 2
    %v2121 = vadd.f32 %v2119, %v2120
    %v2122 = vrot.slane %v2121, 1
    %v2123 = vadd.f32 %v2121, %v2122
    %v2124 = vrot.slane %v2105, 4
    %v2125 = vadd.f32 %v2105, %v2124
    %v2126 = vrot.slane %v2125, 2
    %v2127 = vadd.f32 %v2125, %v2126
    %v2128 = vrot.slane %v2127, 1
    %v2129 = vadd.f32 %v2127, %v2128
    %v2130 = vrcp.pop %v2111
    %v2131 = vrcp.pop %v2117
    %v2132 = vrcp.pop %v2123
    %v2133 = vrcp.pop %v2129
    %v2134 = vmul.f32 %v2099, %v2130
    %v2135 = vmul.f32 %v2101, %v2131
    %v2136 = vmul.f32 %v2103, %v2132
    %v2137 = vmul.f32 %v2105, %v2133
    %2138 = vst [vmem:[#allocation6] sm:$0xff] %v2134
    %2139 = vst [vmem:[#allocation6 + $0x8] sm:$0xff] %v2135
    %2140 = vst [vmem:[#allocation6 + $0x10] sm:$0xff] %v2136
    %2141 = vst [vmem:[#allocation6 + $0x18] sm:$0xff] %v2137
    %2143 = vset.pattern.permute.xlu0 0
    %2144 = vperm.xlu0 %2143, %v133
    %v2145 = vpop.permute.xlu0 %2144
    %2148 = vset.pattern.permute.xlu0 0
    %2149 = vperm.xlu0 %2148, %v134
    %v2150 = vpop.permute.xlu0 %2149
    %2153 = vset.pattern.permute.xlu0 0
    %2154 = vperm.xlu0 %2153, %v135
    %v2155 = vpop.permute.xlu0 %2154
    %2158 = vset.pattern.permute.xlu0 0
    %2159 = vperm.xlu0 %2158, %v136
    %v2160 = vpop.permute.xlu0 %2159
    %v2166 = vunpack.c.l.b16 %v129
    %v2167 = vunpack.c.l.b16 %v130
    %v2168 = vunpack.c.l.b16 %v131
    %v2169 = vunpack.c.l.b16 %v132
    %v2170 = vpack.c.b16 %v2167, %v2166
    %v2171 = vpack.c.b16 %v2169, %v2168
    %v2173 = vsel %vm777, %v2170, 0
    %v2176 = vsel %vm777, %v2171, 0
    %2178 = vmatprep.subr.bf16.mxu0 0
    %2179 = vmatpush1.bf16.msra.mxu0 0
    %2180 = vmatprep.subr.bf16.mxu0 0
    %2181 = vmatpush1.bf16.msra.mxu0 0
    %2182 = vmatprep.subr.bf16.mxu0 0
    %2183 = vmatpush1.bf16.msra.mxu0 0
    %2184 = vmatprep.subr.bf16.mxu0 0
    %2185 = vmatpush1.bf16.msra.mxu0 0
    %2186 = vmatprep.subr.bf16.mxu0 0
    %2187 = vmatpush1.bf16.msra.mxu0 0
    %2188 = vmatprep.subr.bf16.mxu0 0
    %2189 = vmatpush1.bf16.msra.mxu0 0
    %2190 = vmatprep.subr.bf16.mxu0 %v1971
    %2191 = vmatpush1.bf16.msra.mxu0 %v1970
    %2192 = vmatprep.subr.bf16.mxu0 %v1967
    %2193 = vmatpush1.bf16.msra.mxu0 %v1966
    %2194 = vmatprep.subr.bf16.mxu0 0
    %2195 = vmatpush2.bf16.msra.mxu0 0
    %2196 = vmatprep.subr.bf16.mxu0 0
    %2197 = vmatpush2.bf16.msra.mxu0 0
    %2198 = vmatprep.subr.bf16.mxu0 0
    %2199 = vmatpush2.bf16.msra.mxu0 0
    %2200 = vmatprep.subr.bf16.mxu0 0
    %2201 = vmatpush2.bf16.msra.mxu0 0
    %2202 = vmatprep.subr.bf16.mxu0 0
    %2203 = vmatpush2.bf16.msra.mxu0 0
    %2204 = vmatprep.subr.bf16.mxu0 0
    %2205 = vmatpush2.bf16.msra.mxu0 0
    %2206 = vmatprep.subr.bf16.mxu0 0
    %2207 = vmatpush2.bf16.msra.mxu0 0
    %2208 = vmatprep.subr.bf16.mxu0 0
    %2209 = vmatpush2.bf16.msra.mxu0 0
    %2210 = vmatprep.mubr.bf16.mxu0 0
    %2211 = vmatmul.mubr.bf16.gmra.mxu0 %v2173
    %v2212 = vpop.f32.mrf.mxu0
    %v2213 = vadd.f32 %v2145, %v2212
    %v2214 = vpop.f32.mrf.mxu0
    %v2215 = vadd.f32 %v2145, %v2214
    %v2216 = vpop.f32.mrf.mxu0
    %v2217 = vadd.f32 %v2150, %v2216
    %v2218 = vpop.f32.mrf.mxu0
    %v2219 = vadd.f32 %v2150, %v2218
    %2220 = vmatprep.mubr.bf16.mxu0 0
    %2221 = vmatmul.mubr.bf16.gmra.mxu0 %v2176
    %v2222 = vpop.f32.mrf.mxu0
    %v2223 = vadd.f32 %v2155, %v2222
    %v2224 = vpop.f32.mrf.mxu0
    %v2225 = vadd.f32 %v2155, %v2224
    %v2226 = vpop.f32.mrf.mxu0
    %v2227 = vadd.f32 %v2160, %v2226
    %v2228 = vpop.f32.mrf.mxu0
    %v2229 = vadd.f32 %v2160, %v2228
    %2230 = vdwg.mxu0
    %2231 = vmatprep.subr.bf16.mxu0 0
    %2232 = vmatpush1.bf16.msra.mxu0 0
    %2233 = vmatprep.subr.bf16.mxu0 0
    %2234 = vmatpush1.bf16.msra.mxu0 0
    %2235 = vmatprep.subr.bf16.mxu0 0
    %2236 = vmatpush1.bf16.msra.mxu0 0
    %2237 = vmatprep.subr.bf16.mxu0 0
    %2238 = vmatpush1.bf16.msra.mxu0 0
    %2239 = vmatprep.subr.bf16.mxu0 0
    %2240 = vmatpush1.bf16.msra.mxu0 0
    %2241 = vmatprep.subr.bf16.mxu0 0
    %2242 = vmatpush1.bf16.msra.mxu0 0
    %2243 = vmatprep.subr.bf16.mxu0 %v1973
    %2244 = vmatpush1.bf16.msra.mxu0 %v1972
    %2245 = vmatprep.subr.bf16.mxu0 %v1969
    %2246 = vmatpush1.bf16.msra.mxu0 %v1968
    %2247 = vmatprep.subr.bf16.mxu0 0
    %2248 = vmatpush2.bf16.msra.mxu0 0
    %2249 = vmatprep.subr.bf16.mxu0 0
    %2250 = vmatpush2.bf16.msra.mxu0 0
    %2251 = vmatprep.subr.bf16.mxu0 0
    %2252 = vmatpush2.bf16.msra.mxu0 0
    %2253 = vmatprep.subr.bf16.mxu0 0
    %2254 = vmatpush2.bf16.msra.mxu0 0
    %2255 = vmatprep.subr.bf16.mxu0 0
    %2256 = vmatpush2.bf16.msra.mxu0 0
    %2257 = vmatprep.subr.bf16.mxu0 0
    %2258 = vmatpush2.bf16.msra.mxu0 0
    %2259 = vmatprep.subr.bf16.mxu0 0
    %2260 = vmatpush2.bf16.msra.mxu0 0
    %2261 = vmatprep.subr.bf16.mxu0 0
    %2262 = vmatpush2.bf16.msra.mxu0 0
    %2263 = vmatprep.mubr.bf16.mxu0 0
    %2264 = vmatmul.mubr.bf16.gmra.mxu0 %v2173
    %v2265 = vpop.f32.mrf.mxu0
    %v2266 = vadd.f32 %v2145, %v2265
    %v2267 = vpop.f32.mrf.mxu0
    %v2268 = vadd.f32 %v2145, %v2267
    %v2269 = vpop.f32.mrf.mxu0
    %v2270 = vadd.f32 %v2150, %v2269
    %v2271 = vpop.f32.mrf.mxu0
    %v2272 = vadd.f32 %v2150, %v2271
    %2273 = vmatprep.mubr.bf16.mxu0 0
    %2274 = vmatmul.mubr.bf16.gmra.mxu0 %v2176
    %v2275 = vpop.f32.mrf.mxu0
    %v2276 = vadd.f32 %v2155, %v2275
    %v2277 = vpop.f32.mrf.mxu0
    %v2278 = vadd.f32 %v2155, %v2277
    %v2279 = vpop.f32.mrf.mxu0
    %v2280 = vadd.f32 %v2160, %v2279
    %v2281 = vpop.f32.mrf.mxu0
    %v2282 = vadd.f32 %v2160, %v2281
    %2283 = vdwg.mxu0
    %v2284 = vmax.f32 %v2213, 0.0
    %v2285 = vmax.f32 %v2215, 0.0
    %v2286 = vmax.f32 %v2266, 0.0
    %v2287 = vmax.f32 %v2268, 0.0
    %v2288 = vmax.f32 %v2217, 0.0
    %v2289 = vmax.f32 %v2219, 0.0
    %v2290 = vmax.f32 %v2270, 0.0
    %v2291 = vmax.f32 %v2272, 0.0
    %v2292 = vmax.f32 %v2223, 0.0
    %v2293 = vmax.f32 %v2225, 0.0
    %v2294 = vmax.f32 %v2276, 0.0
    %v2295 = vmax.f32 %v2278, 0.0
    %v2296 = vmax.f32 %v2227, 0.0
    %v2297 = vmax.f32 %v2229, 0.0
    %v2298 = vmax.f32 %v2280, 0.0
    %v2299 = vmax.f32 %v2282, 0.0
    %v2300 = vpack.c.bf16 %v2288, %v2284
    %v2301 = vpack.c.bf16 %v2289, %v2285
    %v2302 = vpack.c.bf16 %v2290, %v2286
    %v2303 = vpack.c.bf16 %v2291, %v2287
    %v2304 = vpack.c.bf16 %v2296, %v2292
    %v2305 = vpack.c.bf16 %v2297, %v2293
    %v2306 = vpack.c.bf16 %v2298, %v2294
    %v2307 = vpack.c.bf16 %v2299, %v2295
    %2309 = vset.pattern.permute.xlu0 0
    %2310 = vperm.xlu0 %2309, %v138
    %v2311 = vpop.permute.xlu0 %2310
    %v2314 = vsel %vm777, %v137, 0
    %2316 = vmatprep.subr.bf16.mxu0 0
    %2317 = vmatpush1.bf16.msra.mxu0 0
    %2318 = vmatprep.subr.bf16.mxu0 0
    %2319 = vmatpush1.bf16.msra.mxu0 0
    %2320 = vmatprep.subr.bf16.mxu0 0
    %2321 = vmatpush1.bf16.msra.mxu0 0
    %2322 = vmatprep.subr.bf16.mxu0 0
    %2323 = vmatpush1.bf16.msra.mxu0 0
    %2324 = vmatprep.subr.bf16.mxu0 0
    %2325 = vmatpush1.bf16.msra.mxu0 0
    %2326 = vmatprep.subr.bf16.mxu0 0
    %2327 = vmatpush1.bf16.msra.mxu0 0
    %2328 = vmatprep.subr.bf16.mxu0 %v2305
    %2329 = vmatpush1.bf16.msra.mxu0 %v2304
    %2330 = vmatprep.subr.bf16.mxu0 %v2301
    %2331 = vmatpush1.bf16.msra.mxu0 %v2300
    %2332 = vmatprep.subr.bf16.mxu0 0
    %2333 = vmatpush2.bf16.msra.mxu0 0
    %2334 = vmatprep.subr.bf16.mxu0 0
    %2335 = vmatpush2.bf16.msra.mxu0 0
    %2336 = vmatprep.subr.bf16.mxu0 0
    %2337 = vmatpush2.bf16.msra.mxu0 0
    %2338 = vmatprep.subr.bf16.mxu0 0
    %2339 = vmatpush2.bf16.msra.mxu0 0
    %2340 = vmatprep.subr.bf16.mxu0 0
    %2341 = vmatpush2.bf16.msra.mxu0 0
    %2342 = vmatprep.subr.bf16.mxu0 0
    %2343 = vmatpush2.bf16.msra.mxu0 0
    %2344 = vmatprep.subr.bf16.mxu0 0
    %2345 = vmatpush2.bf16.msra.mxu0 0
    %2346 = vmatprep.subr.bf16.mxu0 0
    %2347 = vmatpush2.bf16.msra.mxu0 0
    %2348 = vmatprep.mubr.bf16.mxu0 0
    %2349 = vmatmul.mubr.bf16.gmra.mxu0 %v2314
    %v2350 = vpop.f32.mrf.mxu0
    %v2351 = vadd.f32 %v2311, %v2350
    %v2352 = vpop.f32.mrf.mxu0
    %v2353 = vadd.f32 %v2311, %v2352
    %v2354 = vpop.f32.mrf.mxu0
    %v2355 = vpop.f32.mrf.mxu0
    %2356 = vdwg.mxu0
    %2357 = vmatprep.subr.bf16.mxu0 0
    %2358 = vmatpush1.bf16.msra.mxu0 0
    %2359 = vmatprep.subr.bf16.mxu0 0
    %2360 = vmatpush1.bf16.msra.mxu0 0
    %2361 = vmatprep.subr.bf16.mxu0 0
    %2362 = vmatpush1.bf16.msra.mxu0 0
    %2363 = vmatprep.subr.bf16.mxu0 0
    %2364 = vmatpush1.bf16.msra.mxu0 0
    %2365 = vmatprep.subr.bf16.mxu0 0
    %2366 = vmatpush1.bf16.msra.mxu0 0
    %2367 = vmatprep.subr.bf16.mxu0 0
    %2368 = vmatpush1.bf16.msra.mxu0 0
    %2369 = vmatprep.subr.bf16.mxu0 %v2307
    %2370 = vmatpush1.bf16.msra.mxu0 %v2306
    %2371 = vmatprep.subr.bf16.mxu0 %v2303
    %2372 = vmatpush1.bf16.msra.mxu0 %v2302
    %2373 = vmatprep.subr.bf16.mxu0 0
    %2374 = vmatpush2.bf16.msra.mxu0 0
    %2375 = vmatprep.subr.bf16.mxu0 0
    %2376 = vmatpush2.bf16.msra.mxu0 0
    %2377 = vmatprep.subr.bf16.mxu0 0
    %2378 = vmatpush2.bf16.msra.mxu0 0
    %2379 = vmatprep.subr.bf16.mxu0 0
    %2380 = vmatpush2.bf16.msra.mxu0 0
    %2381 = vmatprep.subr.bf16.mxu0 0
    %2382 = vmatpush2.bf16.msra.mxu0 0
    %2383 = vmatprep.subr.bf16.mxu0 0
    %2384 = vmatpush2.bf16.msra.mxu0 0
    %2385 = vmatprep.subr.bf16.mxu0 0
    %2386 = vmatpush2.bf16.msra.mxu0 0
    %2387 = vmatprep.subr.bf16.mxu0 0
    %2388 = vmatpush2.bf16.msra.mxu0 0
    %2389 = vmatprep.mubr.bf16.mxu0 0
    %2390 = vmatmul.mubr.bf16.gmra.mxu0 %v2314
    %v2391 = vpop.f32.mrf.mxu0
    %v2392 = vadd.f32 %v2311, %v2391
    %v2393 = vpop.f32.mrf.mxu0
    %v2394 = vadd.f32 %v2311, %v2393
    %v2395 = vpop.f32.mrf.mxu0
    %v2396 = vpop.f32.mrf.mxu0
    %2397 = vdwg.mxu0
    %2398 = vst [vmem:[#allocation7] sm:$0xff] %v2351
    %2399 = vst [vmem:[#allocation7 + $0x8] sm:$0xff] %v2353
    %2400 = vst [vmem:[#allocation7 + $0x10] sm:$0xff] %v2392
    %2401 = vst [vmem:[#allocation7 + $0x18] sm:$0xff] %v2394
    %v2402 = vpack.c.bf16 %v2134, %v2134
    %v2403 = vpack.c.bf16 %v2135, %v2135
    %v2404 = vpack.c.bf16 %v2136, %v2136
    %v2405 = vpack.c.bf16 %v2137, %v2137
    %v2406 = vld [vmem:[%s13] sm:$0xf]
    %v2407 = vld [vmem:[%s13 + $0x4] sm:$0xf]
    %v2408 = vld [vmem:[%s13 + $0x8] sm:$0xf]
    %v2409 = vld [vmem:[%s13 + $0xc] sm:$0xf]
    %v2410 = vld [vmem:[%s14] sm:$0xff]
    %v2411 = vld [vmem:[%s14 + $0x8] sm:$0xff]
    %v2412 = vld [vmem:[%s14 + $0x10] sm:$0xff]
    %v2413 = vld [vmem:[%s14 + $0x18] sm:$0xff]
    %2415 = vset.pattern.permute.xlu0 0
    %2416 = vperm.xlu0 %2415, %v2410
    %v2417 = vpop.permute.xlu0 %2416
    %2420 = vset.pattern.permute.xlu0 0
    %2421 = vperm.xlu0 %2420, %v2411
    %v2422 = vpop.permute.xlu0 %2421
    %2425 = vset.pattern.permute.xlu0 0
    %2426 = vperm.xlu0 %2425, %v2412
    %v2427 = vpop.permute.xlu0 %2426
    %2430 = vset.pattern.permute.xlu0 0
    %2431 = vperm.xlu0 %2430, %v2413
    %v2432 = vpop.permute.xlu0 %2431
    %v2438 = vunpack.c.l.b16 %v2406
    %v2439 = vunpack.c.l.b16 %v2407
    %v2440 = vunpack.c.l.b16 %v2408
    %v2441 = vunpack.c.l.b16 %v2409
    %v2442 = vpack.c.b16 %v2439, %v2438
    %v2443 = vpack.c.b16 %v2441, %v2440
    %vm2444 = vcmask 64512
    %v2446 = vsel %vm2444, %v2442, 0
    %v2449 = vsel %vm2444, %v2443, 0
    %vm2451 = vcmask 1043456
    %v2453 = vsel %vm2451, %v2402, 0
    %v2456 = vsel %vm2451, %v2403, 0
    %v2459 = vsel %vm2451, %v2404, 0
    %v2462 = vsel %vm2451, %v2405, 0
    %2464 = vmatprep.subr.bf16.mxu0 0
    %2465 = vmatpush1.bf16.msra.mxu0 0
    %2466 = vmatprep.subr.bf16.mxu0 0
    %2467 = vmatpush1.bf16.msra.mxu0 0
    %2468 = vmatprep.subr.bf16.mxu0 0
    %2469 = vmatpush1.bf16.msra.mxu0 0
    %2470 = vmatprep.subr.bf16.mxu0 0
    %2471 = vmatpush1.bf16.msra.mxu0 0
    %2472 = vmatprep.subr.bf16.mxu0 0
    %2473 = vmatpush1.bf16.msra.mxu0 0
    %2474 = vmatprep.subr.bf16.mxu0 0
    %2475 = vmatpush1.bf16.msra.mxu0 0
    %2476 = vmatprep.subr.bf16.mxu0 0
    %2477 = vmatpush1.bf16.msra.mxu0 0
    %2478 = vmatprep.subr.bf16.mxu0 %v2456
    %2479 = vmatpush1.bf16.msra.mxu0 %v2453
    %2480 = vmatprep.subr.bf16.mxu0 0
    %2481 = vmatpush2.bf16.msra.mxu0 0
    %2482 = vmatprep.subr.bf16.mxu0 0
    %2483 = vmatpush2.bf16.msra.mxu0 0
    %2484 = vmatprep.subr.bf16.mxu0 0
    %2485 = vmatpush2.bf16.msra.mxu0 0
    %2486 = vmatprep.subr.bf16.mxu0 0
    %2487 = vmatpush2.bf16.msra.mxu0 0
    %2488 = vmatprep.subr.bf16.mxu0 0
    %2489 = vmatpush2.bf16.msra.mxu0 0
    %2490 = vmatprep.subr.bf16.mxu0 0
    %2491 = vmatpush2.bf16.msra.mxu0 0
    %2492 = vmatprep.subr.bf16.mxu0 0
    %2493 = vmatpush2.bf16.msra.mxu0 0
    %2494 = vmatprep.subr.bf16.mxu0 0
    %2495 = vmatpush2.bf16.msra.mxu0 0
    %2496 = vmatprep.mubr.bf16.mxu0 0
    %2497 = vmatmul.mubr.bf16.gmra.mxu0 %v2446
    %v2498 = vpop.f32.mrf.mxu0
    %v2499 = vadd.f32 %v2417, %v2498
    %v2500 = vpop.f32.mrf.mxu0
    %v2501 = vadd.f32 %v2417, %v2500
    %v2502 = vpop.f32.mrf.mxu0
    %v2503 = vadd.f32 %v2422, %v2502
    %v2504 = vpop.f32.mrf.mxu0
    %v2505 = vadd.f32 %v2422, %v2504
    %2506 = vmatprep.mubr.bf16.mxu0 0
    %2507 = vmatmul.mubr.bf16.gmra.mxu0 %v2449
    %v2508 = vpop.f32.mrf.mxu0
    %v2509 = vadd.f32 %v2427, %v2508
    %v2510 = vpop.f32.mrf.mxu0
    %v2511 = vadd.f32 %v2427, %v2510
    %v2512 = vpop.f32.mrf.mxu0
    %v2513 = vadd.f32 %v2432, %v2512
    %v2514 = vpop.f32.mrf.mxu0
    %v2515 = vadd.f32 %v2432, %v2514
    %2516 = vdwg.mxu0
    %2517 = vmatprep.subr.bf16.mxu0 0
    %2518 = vmatpush1.bf16.msra.mxu0 0
    %2519 = vmatprep.subr.bf16.mxu0 0
    %2520 = vmatpush1.bf16.msra.mxu0 0
    %2521 = vmatprep.subr.bf16.mxu0 0
    %2522 = vmatpush1.bf16.msra.mxu0 0
    %2523 = vmatprep.subr.bf16.mxu0 0
    %2524 = vmatpush1.bf16.msra.mxu0 0
    %2525 = vmatprep.subr.bf16.mxu0 0
    %2526 = vmatpush1.bf16.msra.mxu0 0
    %2527 = vmatprep.subr.bf16.mxu0 0
    %2528 = vmatpush1.bf16.msra.mxu0 0
    %2529 = vmatprep.subr.bf16.mxu0 0
    %2530 = vmatpush1.bf16.msra.mxu0 0
    %2531 = vmatprep.subr.bf16.mxu0 %v2462
    %2532 = vmatpush1.bf16.msra.mxu0 %v2459
    %2533 = vmatprep.subr.bf16.mxu0 0
    %2534 = vmatpush2.bf16.msra.mxu0 0
    %2535 = vmatprep.subr.bf16.mxu0 0
    %2536 = vmatpush2.bf16.msra.mxu0 0
    %2537 = vmatprep.subr.bf16.mxu0 0
    %2538 = vmatpush2.bf16.msra.mxu0 0
    %2539 = vmatprep.subr.bf16.mxu0 0
    %2540 = vmatpush2.bf16.msra.mxu0 0
    %2541 = vmatprep.subr.bf16.mxu0 0
    %2542 = vmatpush2.bf16.msra.mxu0 0
    %2543 = vmatprep.subr.bf16.mxu0 0
    %2544 = vmatpush2.bf16.msra.mxu0 0
    %2545 = vmatprep.subr.bf16.mxu0 0
    %2546 = vmatpush2.bf16.msra.mxu0 0
    %2547 = vmatprep.subr.bf16.mxu0 0
    %2548 = vmatpush2.bf16.msra.mxu0 0
    %2549 = vmatprep.mubr.bf16.mxu0 0
    %2550 = vmatmul.mubr.bf16.gmra.mxu0 %v2446
    %v2551 = vpop.f32.mrf.mxu0
    %v2552 = vadd.f32 %v2417, %v2551
    %v2553 = vpop.f32.mrf.mxu0
    %v2554 = vadd.f32 %v2417, %v2553
    %v2555 = vpop.f32.mrf.mxu0
    %v2556 = vadd.f32 %v2422, %v2555
    %v2557 = vpop.f32.mrf.mxu0
    %v2558 = vadd.f32 %v2422, %v2557
    %2559 = vmatprep.mubr.bf16.mxu0 0
    %2560 = vmatmul.mubr.bf16.gmra.mxu0 %v2449
    %v2561 = vpop.f32.mrf.mxu0
    %v2562 = vadd.f32 %v2427, %v2561
    %v2563 = vpop.f32.mrf.mxu0
    %v2564 = vadd.f32 %v2427, %v2563
    %v2565 = vpop.f32.mrf.mxu0
    %v2566 = vadd.f32 %v2432, %v2565
    %v2567 = vpop.f32.mrf.mxu0
    %v2568 = vadd.f32 %v2432, %v2567
    %2569 = vdwg.mxu0
    %2570 = vrot.lane.b32.xlu0 %v2499, 1
    %v2571 = vpop.permute.xlu0 %2570
    %2572 = vrot.lane.b32.xlu0 %v2503, 1
    %v2573 = vpop.permute.xlu0 %2572
    %2574 = vrot.lane.b32.xlu0 %v2509, 1
    %v2575 = vpop.permute.xlu0 %2574
    %2576 = vrot.lane.b32.xlu0 %v2513, 1
    %v2577 = vpop.permute.xlu0 %2576
    %2578 = vrot.lane.b32.xlu0 %v2501, 1
    %v2579 = vpop.permute.xlu0 %2578
    %2580 = vrot.lane.b32.xlu0 %v2505, 1
    %v2581 = vpop.permute.xlu0 %2580
    %2582 = vrot.lane.b32.xlu0 %v2511, 1
    %v2583 = vpop.permute.xlu0 %2582
    %2584 = vrot.lane.b32.xlu0 %v2515, 1
    %v2585 = vpop.permute.xlu0 %2584
    %2586 = vrot.lane.b32.xlu0 %v2552, 1
    %v2587 = vpop.permute.xlu0 %2586
    %2588 = vrot.lane.b32.xlu0 %v2556, 1
    %v2589 = vpop.permute.xlu0 %2588
    %2590 = vrot.lane.b32.xlu0 %v2562, 1
    %v2591 = vpop.permute.xlu0 %2590
    %2592 = vrot.lane.b32.xlu0 %v2566, 1
    %v2593 = vpop.permute.xlu0 %2592
    %2594 = vrot.lane.b32.xlu0 %v2554, 1
    %v2595 = vpop.permute.xlu0 %2594
    %2596 = vrot.lane.b32.xlu0 %v2558, 1
    %v2597 = vpop.permute.xlu0 %2596
    %2598 = vrot.lane.b32.xlu0 %v2564, 1
    %v2599 = vpop.permute.xlu0 %2598
    %2600 = vrot.lane.b32.xlu0 %v2568, 1
    %v2601 = vpop.permute.xlu0 %2600
    %v2602 = vsel %vm422, %v2587, %v2595
    %v2603 = vsel %vm422, %v2589, %v2597
    %v2604 = vsel %vm422, %v2591, %v2599
    %v2605 = vsel %vm422, %v2593, %v2601
    %v2606 = vsel %vm422, %v2579, %v2587
    %v2607 = vsel %vm422, %v2581, %v2589
    %v2608 = vsel %vm422, %v2583, %v2591
    %v2609 = vsel %vm422, %v2585, %v2593
    %v2610 = vsel %vm422, %v2571, %v2579
    %v2611 = vsel %vm422, %v2573, %v2581
    %v2612 = vsel %vm422, %v2575, %v2583
    %v2613 = vsel %vm422, %v2577, %v2585
    %v2614 = vsel %vm422, %v2595, %v2571
    %v2615 = vsel %vm422, %v2597, %v2573
    %v2616 = vsel %vm422, %v2599, %v2575
    %v2617 = vsel %vm422, %v2601, %v2577
    %v2618 = vsel %vm443, %v2614, 0.0
    %v2619 = vsel %vm444, %v2610, 0.0
    %v2620 = vsel %vm445, %v2606, 0.0
    %v2621 = vsel %vm446, %v2602, 0.0
    %v2622 = vsel %vm443, %v2615, 0.0
    %v2623 = vsel %vm444, %v2611, 0.0
    %v2624 = vsel %vm445, %v2607, 0.0
    %v2625 = vsel %vm446, %v2603, 0.0
    %v2626 = vsel %vm443, %v2616, 0.0
    %v2627 = vsel %vm444, %v2612, 0.0
    %v2628 = vsel %vm445, %v2608, 0.0
    %v2629 = vsel %vm446, %v2604, 0.0
    %v2630 = vsel %vm443, %v2617, 0.0
    %v2631 = vsel %vm444, %v2613, 0.0
    %v2632 = vsel %vm445, %v2609, 0.0
    %v2633 = vsel %vm446, %v2605, 0.0
    %2634 = vrot.lane.b32.xlu0 %v2499, 127
    %v2635 = vpop.permute.xlu0 %2634
    %2636 = vrot.lane.b32.xlu0 %v2503, 127
    %v2637 = vpop.permute.xlu0 %2636
    %2638 = vrot.lane.b32.xlu0 %v2509, 127
    %v2639 = vpop.permute.xlu0 %2638
    %2640 = vrot.lane.b32.xlu0 %v2513, 127
    %v2641 = vpop.permute.xlu0 %2640
    %2642 = vrot.lane.b32.xlu0 %v2501, 127
    %v2643 = vpop.permute.xlu0 %2642
    %2644 = vrot.lane.b32.xlu0 %v2505, 127
    %v2645 = vpop.permute.xlu0 %2644
    %2646 = vrot.lane.b32.xlu0 %v2511, 127
    %v2647 = vpop.permute.xlu0 %2646
    %2648 = vrot.lane.b32.xlu0 %v2515, 127
    %v2649 = vpop.permute.xlu0 %2648
    %2650 = vrot.lane.b32.xlu0 %v2552, 127
    %v2651 = vpop.permute.xlu0 %2650
    %2652 = vrot.lane.b32.xlu0 %v2556, 127
    %v2653 = vpop.permute.xlu0 %2652
    %2654 = vrot.lane.b32.xlu0 %v2562, 127
    %v2655 = vpop.permute.xlu0 %2654
    %2656 = vrot.lane.b32.xlu0 %v2566, 127
    %v2657 = vpop.permute.xlu0 %2656
    %2658 = vrot.lane.b32.xlu0 %v2554, 127
    %v2659 = vpop.permute.xlu0 %2658
    %2660 = vrot.lane.b32.xlu0 %v2558, 127
    %v2661 = vpop.permute.xlu0 %2660
    %2662 = vrot.lane.b32.xlu0 %v2564, 127
    %v2663 = vpop.permute.xlu0 %2662
    %2664 = vrot.lane.b32.xlu0 %v2568, 127
    %v2665 = vpop.permute.xlu0 %2664
    %v2666 = vsel %vm499, %v2651, %v2659
    %v2667 = vsel %vm499, %v2653, %v2661
    %v2668 = vsel %vm499, %v2655, %v2663
    %v2669 = vsel %vm499, %v2657, %v2665
    %v2670 = vsel %vm499, %v2643, %v2651
    %v2671 = vsel %vm499, %v2645, %v2653
    %v2672 = vsel %vm499, %v2647, %v2655
    %v2673 = vsel %vm499, %v2649, %v2657
    %v2674 = vsel %vm499, %v2635, %v2643
    %v2675 = vsel %vm499, %v2637, %v2645
    %v2676 = vsel %vm499, %v2639, %v2647
    %v2677 = vsel %vm499, %v2641, %v2649
    %v2678 = vsel %vm499, %v2659, %v2635
    %v2679 = vsel %vm499, %v2661, %v2637
    %v2680 = vsel %vm499, %v2663, %v2639
    %v2681 = vsel %vm499, %v2665, %v2641
    %v2682 = vsel %vm520, %v2674, 0.0
    %v2683 = vsel %vm521, %v2670, 0.0
    %v2684 = vsel %vm522, %v2666, 0.0
    %v2685 = vsel %vm523, %v2678, 0.0
    %v2686 = vsel %vm520, %v2675, 0.0
    %v2687 = vsel %vm521, %v2671, 0.0
    %v2688 = vsel %vm522, %v2667, 0.0
    %v2689 = vsel %vm523, %v2679, 0.0
    %v2690 = vsel %vm520, %v2676, 0.0
    %v2691 = vsel %vm521, %v2672, 0.0
    %v2692 = vsel %vm522, %v2668, 0.0
    %v2693 = vsel %vm523, %v2680, 0.0
    %v2694 = vsel %vm520, %v2677, 0.0
    %v2695 = vsel %vm521, %v2673, 0.0
    %v2696 = vsel %vm522, %v2669, 0.0
    %v2697 = vsel %vm523, %v2681, 0.0
    %v2698 = vpack.c.bf16 %v2622, %v2618
    %v2699 = vpack.c.bf16 %v2623, %v2619
    %v2700 = vpack.c.bf16 %v2624, %v2620
    %v2701 = vpack.c.bf16 %v2625, %v2621
    %v2702 = vpack.c.bf16 %v2630, %v2626
    %v2703 = vpack.c.bf16 %v2631, %v2627
    %v2704 = vpack.c.bf16 %v2632, %v2628
    %v2705 = vpack.c.bf16 %v2633, %v2629
    %v2706 = vpack.c.bf16 %v2503, %v2499
    %v2707 = vpack.c.bf16 %v2505, %v2501
    %v2708 = vpack.c.bf16 %v2556, %v2552
    %v2709 = vpack.c.bf16 %v2558, %v2554
    %v2710 = vpack.c.bf16 %v2513, %v2509
    %v2711 = vpack.c.bf16 %v2515, %v2511
    %v2712 = vpack.c.bf16 %v2566, %v2562
    %v2713 = vpack.c.bf16 %v2568, %v2564
    %v2714 = vpack.c.bf16 %v2686, %v2682
    %v2715 = vpack.c.bf16 %v2687, %v2683
    %v2716 = vpack.c.bf16 %v2688, %v2684
    %v2717 = vpack.c.bf16 %v2689, %v2685
    %v2718 = vpack.c.bf16 %v2694, %v2690
    %v2719 = vpack.c.bf16 %v2695, %v2691
    %v2720 = vpack.c.bf16 %v2696, %v2692
    %v2721 = vpack.c.bf16 %v2697, %v2693
    %v2722 = vld [vmem:[%s15] sm:$0xf]
    %v2723 = vld [vmem:[%s15 + $0x4] sm:$0xf]
    %v2724 = vld [vmem:[%s15 + $0x8] sm:$0xf]
    %v2725 = vld [vmem:[%s15 + $0xc] sm:$0xf]
    %v2726 = vld [vmem:[%s16] sm:$0xff]
    %v2727 = vld [vmem:[%s16 + $0x8] sm:$0xff]
    %v2728 = vld [vmem:[%s16 + $0x10] sm:$0xff]
    %v2729 = vld [vmem:[%s16 + $0x18] sm:$0xff]
    %2731 = vset.pattern.permute.xlu0 0
    %2732 = vperm.xlu0 %2731, %v2726
    %v2733 = vpop.permute.xlu0 %2732
    %2736 = vset.pattern.permute.xlu0 0
    %2737 = vperm.xlu0 %2736, %v2727
    %v2738 = vpop.permute.xlu0 %2737
    %2741 = vset.pattern.permute.xlu0 0
    %2742 = vperm.xlu0 %2741, %v2728
    %v2743 = vpop.permute.xlu0 %2742
    %2746 = vset.pattern.permute.xlu0 0
    %2747 = vperm.xlu0 %2746, %v2729
    %v2748 = vpop.permute.xlu0 %2747
    %v2754 = vunpack.c.l.b16 %v2722
    %v2755 = vunpack.c.l.b16 %v2723
    %v2756 = vunpack.c.l.b16 %v2724
    %v2757 = vunpack.c.l.b16 %v2725
    %v2758 = vpack.c.b16 %v2755, %v2754
    %v2759 = vpack.c.b16 %v2757, %v2756
    %v2761 = vsel %vm602, %v2758, 0
    %v2764 = vsel %vm602, %v2759, 0
    %2766 = vmatprep.subr.bf16.mxu0 0
    %2767 = vmatpush1.bf16.msra.mxu0 0
    %2768 = vmatprep.subr.bf16.mxu0 0
    %2769 = vmatpush1.bf16.msra.mxu0 0
    %2770 = vmatprep.subr.bf16.mxu0 %v2719
    %2771 = vmatpush1.bf16.msra.mxu0 %v2718
    %2772 = vmatprep.subr.bf16.mxu0 %v2715
    %2773 = vmatpush1.bf16.msra.mxu0 %v2714
    %2774 = vmatprep.subr.bf16.mxu0 %v2711
    %2775 = vmatpush1.bf16.msra.mxu0 %v2710
    %2776 = vmatprep.subr.bf16.mxu0 %v2707
    %2777 = vmatpush1.bf16.msra.mxu0 %v2706
    %2778 = vmatprep.subr.bf16.mxu0 %v2703
    %2779 = vmatpush1.bf16.msra.mxu0 %v2702
    %2780 = vmatprep.subr.bf16.mxu0 %v2699
    %2781 = vmatpush1.bf16.msra.mxu0 %v2698
    %2782 = vmatprep.subr.bf16.mxu0 0
    %2783 = vmatpush2.bf16.msra.mxu0 0
    %2784 = vmatprep.subr.bf16.mxu0 0
    %2785 = vmatpush2.bf16.msra.mxu0 0
    %2786 = vmatprep.subr.bf16.mxu0 0
    %2787 = vmatpush2.bf16.msra.mxu0 0
    %2788 = vmatprep.subr.bf16.mxu0 0
    %2789 = vmatpush2.bf16.msra.mxu0 0
    %2790 = vmatprep.subr.bf16.mxu0 0
    %2791 = vmatpush2.bf16.msra.mxu0 0
    %2792 = vmatprep.subr.bf16.mxu0 0
    %2793 = vmatpush2.bf16.msra.mxu0 0
    %2794 = vmatprep.subr.bf16.mxu0 0
    %2795 = vmatpush2.bf16.msra.mxu0 0
    %2796 = vmatprep.subr.bf16.mxu0 0
    %2797 = vmatpush2.bf16.msra.mxu0 0
    %2798 = vmatprep.mubr.bf16.mxu0 0
    %2799 = vmatmul.mubr.bf16.gmra.mxu0 %v2761
    %v2800 = vpop.f32.mrf.mxu0
    %v2801 = vadd.f32 %v2733, %v2800
    %v2802 = vpop.f32.mrf.mxu0
    %v2803 = vadd.f32 %v2733, %v2802
    %v2804 = vpop.f32.mrf.mxu0
    %v2805 = vadd.f32 %v2738, %v2804
    %v2806 = vpop.f32.mrf.mxu0
    %v2807 = vadd.f32 %v2738, %v2806
    %2808 = vmatprep.mubr.bf16.mxu0 0
    %2809 = vmatmul.mubr.bf16.gmra.mxu0 %v2764
    %v2810 = vpop.f32.mrf.mxu0
    %v2811 = vadd.f32 %v2743, %v2810
    %v2812 = vpop.f32.mrf.mxu0
    %v2813 = vadd.f32 %v2743, %v2812
    %v2814 = vpop.f32.mrf.mxu0
    %v2815 = vadd.f32 %v2748, %v2814
    %v2816 = vpop.f32.mrf.mxu0
    %v2817 = vadd.f32 %v2748, %v2816
    %2818 = vdwg.mxu0
    %2819 = vmatprep.subr.bf16.mxu0 0
    %2820 = vmatpush1.bf16.msra.mxu0 0
    %2821 = vmatprep.subr.bf16.mxu0 0
    %2822 = vmatpush1.bf16.msra.mxu0 0
    %2823 = vmatprep.subr.bf16.mxu0 %v2721
    %2824 = vmatpush1.bf16.msra.mxu0 %v2720
    %2825 = vmatprep.subr.bf16.mxu0 %v2717
    %2826 = vmatpush1.bf16.msra.mxu0 %v2716
    %2827 = vmatprep.subr.bf16.mxu0 %v2713
    %2828 = vmatpush1.bf16.msra.mxu0 %v2712
    %2829 = vmatprep.subr.bf16.mxu0 %v2709
    %2830 = vmatpush1.bf16.msra.mxu0 %v2708
    %2831 = vmatprep.subr.bf16.mxu0 %v2705
    %2832 = vmatpush1.bf16.msra.mxu0 %v2704
    %2833 = vmatprep.subr.bf16.mxu0 %v2701
    %2834 = vmatpush1.bf16.msra.mxu0 %v2700
    %2835 = vmatprep.subr.bf16.mxu0 0
    %2836 = vmatpush2.bf16.msra.mxu0 0
    %2837 = vmatprep.subr.bf16.mxu0 0
    %2838 = vmatpush2.bf16.msra.mxu0 0
    %2839 = vmatprep.subr.bf16.mxu0 0
    %2840 = vmatpush2.bf16.msra.mxu0 0
    %2841 = vmatprep.subr.bf16.mxu0 0
    %2842 = vmatpush2.bf16.msra.mxu0 0
    %2843 = vmatprep.subr.bf16.mxu0 0
    %2844 = vmatpush2.bf16.msra.mxu0 0
    %2845 = vmatprep.subr.bf16.mxu0 0
    %2846 = vmatpush2.bf16.msra.mxu0 0
    %2847 = vmatprep.subr.bf16.mxu0 0
    %2848 = vmatpush2.bf16.msra.mxu0 0
    %2849 = vmatprep.subr.bf16.mxu0 0
    %2850 = vmatpush2.bf16.msra.mxu0 0
    %2851 = vmatprep.mubr.bf16.mxu0 0
    %2852 = vmatmul.mubr.bf16.gmra.mxu0 %v2761
    %v2853 = vpop.f32.mrf.mxu0
    %v2854 = vadd.f32 %v2733, %v2853
    %v2855 = vpop.f32.mrf.mxu0
    %v2856 = vadd.f32 %v2733, %v2855
    %v2857 = vpop.f32.mrf.mxu0
    %v2858 = vadd.f32 %v2738, %v2857
    %v2859 = vpop.f32.mrf.mxu0
    %v2860 = vadd.f32 %v2738, %v2859
    %2861 = vmatprep.mubr.bf16.mxu0 0
    %2862 = vmatmul.mubr.bf16.gmra.mxu0 %v2764
    %v2863 = vpop.f32.mrf.mxu0
    %v2864 = vadd.f32 %v2743, %v2863
    %v2865 = vpop.f32.mrf.mxu0
    %v2866 = vadd.f32 %v2743, %v2865
    %v2867 = vpop.f32.mrf.mxu0
    %v2868 = vadd.f32 %v2748, %v2867
    %v2869 = vpop.f32.mrf.mxu0
    %v2870 = vadd.f32 %v2748, %v2869
    %2871 = vdwg.mxu0
    %v2872 = vmax.f32 %v2801, 0.0
    %v2873 = vmax.f32 %v2803, 0.0
    %v2874 = vmax.f32 %v2854, 0.0
    %v2875 = vmax.f32 %v2856, 0.0
    %v2876 = vmax.f32 %v2805, 0.0
    %v2877 = vmax.f32 %v2807, 0.0
    %v2878 = vmax.f32 %v2858, 0.0
    %v2879 = vmax.f32 %v2860, 0.0
    %v2880 = vmax.f32 %v2811, 0.0
    %v2881 = vmax.f32 %v2813, 0.0
    %v2882 = vmax.f32 %v2864, 0.0
    %v2883 = vmax.f32 %v2866, 0.0
    %v2884 = vmax.f32 %v2815, 0.0
    %v2885 = vmax.f32 %v2817, 0.0
    %v2886 = vmax.f32 %v2868, 0.0
    %v2887 = vmax.f32 %v2870, 0.0
    %v2888 = vld [vmem:[%s17] sm:$0xf]
    %v2889 = vld [vmem:[%s17 + $0x4] sm:$0xf]
    %v2890 = vld [vmem:[%s17 + $0x8] sm:$0xf]
    %v2891 = vld [vmem:[%s17 + $0xc] sm:$0xf]
    %v2892 = vpack.c.bf16 %v2876, %v2872
    %v2893 = vpack.c.bf16 %v2877, %v2873
    %v2894 = vpack.c.bf16 %v2878, %v2874
    %v2895 = vpack.c.bf16 %v2879, %v2875
    %v2896 = vpack.c.bf16 %v2884, %v2880
    %v2897 = vpack.c.bf16 %v2885, %v2881
    %v2898 = vpack.c.bf16 %v2886, %v2882
    %v2899 = vpack.c.bf16 %v2887, %v2883
    %v2900 = vld [vmem:[%s18] sm:$0xff]
    %v2901 = vld [vmem:[%s18 + $0x8] sm:$0xff]
    %v2902 = vld [vmem:[%s18 + $0x10] sm:$0xff]
    %v2903 = vld [vmem:[%s18 + $0x18] sm:$0xff]
    %2905 = vset.pattern.permute.xlu0 0
    %2906 = vperm.xlu0 %2905, %v2900
    %v2907 = vpop.permute.xlu0 %2906
    %2910 = vset.pattern.permute.xlu0 0
    %2911 = vperm.xlu0 %2910, %v2901
    %v2912 = vpop.permute.xlu0 %2911
    %2915 = vset.pattern.permute.xlu0 0
    %2916 = vperm.xlu0 %2915, %v2902
    %v2917 = vpop.permute.xlu0 %2916
    %2920 = vset.pattern.permute.xlu0 0
    %2921 = vperm.xlu0 %2920, %v2903
    %v2922 = vpop.permute.xlu0 %2921
    %v2928 = vunpack.c.l.b16 %v2888
    %v2929 = vunpack.c.l.b16 %v2889
    %v2930 = vunpack.c.l.b16 %v2890
    %v2931 = vunpack.c.l.b16 %v2891
    %v2932 = vpack.c.b16 %v2929, %v2928
    %v2933 = vpack.c.b16 %v2931, %v2930
    %v2935 = vsel %vm777, %v2932, 0
    %v2938 = vsel %vm777, %v2933, 0
    %2940 = vmatprep.subr.bf16.mxu0 0
    %2941 = vmatpush1.bf16.msra.mxu0 0
    %2942 = vmatprep.subr.bf16.mxu0 0
    %2943 = vmatpush1.bf16.msra.mxu0 0
    %2944 = vmatprep.subr.bf16.mxu0 0
    %2945 = vmatpush1.bf16.msra.mxu0 0
    %2946 = vmatprep.subr.bf16.mxu0 0
    %2947 = vmatpush1.bf16.msra.mxu0 0
    %2948 = vmatprep.subr.bf16.mxu0 0
    %2949 = vmatpush1.bf16.msra.mxu0 0
    %2950 = vmatprep.subr.bf16.mxu0 0
    %2951 = vmatpush1.bf16.msra.mxu0 0
    %2952 = vmatprep.subr.bf16.mxu0 %v2897
    %2953 = vmatpush1.bf16.msra.mxu0 %v2896
    %2954 = vmatprep.subr.bf16.mxu0 %v2893
    %2955 = vmatpush1.bf16.msra.mxu0 %v2892
    %2956 = vmatprep.subr.bf16.mxu0 0
    %2957 = vmatpush2.bf16.msra.mxu0 0
    %2958 = vmatprep.subr.bf16.mxu0 0
    %2959 = vmatpush2.bf16.msra.mxu0 0
    %2960 = vmatprep.subr.bf16.mxu0 0
    %2961 = vmatpush2.bf16.msra.mxu0 0
    %2962 = vmatprep.subr.bf16.mxu0 0
    %2963 = vmatpush2.bf16.msra.mxu0 0
    %2964 = vmatprep.subr.bf16.mxu0 0
    %2965 = vmatpush2.bf16.msra.mxu0 0
    %2966 = vmatprep.subr.bf16.mxu0 0
    %2967 = vmatpush2.bf16.msra.mxu0 0
    %2968 = vmatprep.subr.bf16.mxu0 0
    %2969 = vmatpush2.bf16.msra.mxu0 0
    %2970 = vmatprep.subr.bf16.mxu0 0
    %2971 = vmatpush2.bf16.msra.mxu0 0
    %2972 = vmatprep.mubr.bf16.mxu0 0
    %2973 = vmatmul.mubr.bf16.gmra.mxu0 %v2935
    %v2974 = vpop.f32.mrf.mxu0
    %v2975 = vadd.f32 %v2907, %v2974
    %v2976 = vpop.f32.mrf.mxu0
    %v2977 = vadd.f32 %v2907, %v2976
    %v2978 = vpop.f32.mrf.mxu0
    %v2979 = vadd.f32 %v2912, %v2978
    %v2980 = vpop.f32.mrf.mxu0
    %v2981 = vadd.f32 %v2912, %v2980
    %2982 = vmatprep.mubr.bf16.mxu0 0
    %2983 = vmatmul.mubr.bf16.gmra.mxu0 %v2938
    %v2984 = vpop.f32.mrf.mxu0
    %v2985 = vadd.f32 %v2917, %v2984
    %v2986 = vpop.f32.mrf.mxu0
    %v2987 = vadd.f32 %v2917, %v2986
    %v2988 = vpop.f32.mrf.mxu0
    %v2989 = vadd.f32 %v2922, %v2988
    %v2990 = vpop.f32.mrf.mxu0
    %v2991 = vadd.f32 %v2922, %v2990
    %2992 = vdwg.mxu0
    %2993 = vmatprep.subr.bf16.mxu0 0
    %2994 = vmatpush1.bf16.msra.mxu0 0
    %2995 = vmatprep.subr.bf16.mxu0 0
    %2996 = vmatpush1.bf16.msra.mxu0 0
    %2997 = vmatprep.subr.bf16.mxu0 0
    %2998 = vmatpush1.bf16.msra.mxu0 0
    %2999 = vmatprep.subr.bf16.mxu0 0
    %3000 = vmatpush1.bf16.msra.mxu0 0
    %3001 = vmatprep.subr.bf16.mxu0 0
    %3002 = vmatpush1.bf16.msra.mxu0 0
    %3003 = vmatprep.subr.bf16.mxu0 0
    %3004 = vmatpush1.bf16.msra.mxu0 0
    %3005 = vmatprep.subr.bf16.mxu0 %v2899
    %3006 = vmatpush1.bf16.msra.mxu0 %v2898
    %3007 = vmatprep.subr.bf16.mxu0 %v2895
    %3008 = vmatpush1.bf16.msra.mxu0 %v2894
    %3009 = vmatprep.subr.bf16.mxu0 0
    %3010 = vmatpush2.bf16.msra.mxu0 0
    %3011 = vmatprep.subr.bf16.mxu0 0
    %3012 = vmatpush2.bf16.msra.mxu0 0
    %3013 = vmatprep.subr.bf16.mxu0 0
    %3014 = vmatpush2.bf16.msra.mxu0 0
    %3015 = vmatprep.subr.bf16.mxu0 0
    %3016 = vmatpush2.bf16.msra.mxu0 0
    %3017 = vmatprep.subr.bf16.mxu0 0
    %3018 = vmatpush2.bf16.msra.mxu0 0
    %3019 = vmatprep.subr.bf16.mxu0 0
    %3020 = vmatpush2.bf16.msra.mxu0 0
    %3021 = vmatprep.subr.bf16.mxu0 0
    %3022 = vmatpush2.bf16.msra.mxu0 0
    %3023 = vmatprep.subr.bf16.mxu0 0
    %3024 = vmatpush2.bf16.msra.mxu0 0
    %3025 = vmatprep.mubr.bf16.mxu0 0
    %3026 = vmatmul.mubr.bf16.gmra.mxu0 %v2935
    %v3027 = vpop.f32.mrf.mxu0
    %v3028 = vadd.f32 %v2907, %v3027
    %v3029 = vpop.f32.mrf.mxu0
    %v3030 = vadd.f32 %v2907, %v3029
    %v3031 = vpop.f32.mrf.mxu0
    %v3032 = vadd.f32 %v2912, %v3031
    %v3033 = vpop.f32.mrf.mxu0
    %v3034 = vadd.f32 %v2912, %v3033
    %3035 = vmatprep.mubr.bf16.mxu0 0
    %3036 = vmatmul.mubr.bf16.gmra.mxu0 %v2938
    %v3037 = vpop.f32.mrf.mxu0
    %v3038 = vadd.f32 %v2917, %v3037
    %v3039 = vpop.f32.mrf.mxu0
    %v3040 = vadd.f32 %v2917, %v3039
    %v3041 = vpop.f32.mrf.mxu0
    %v3042 = vadd.f32 %v2922, %v3041
    %v3043 = vpop.f32.mrf.mxu0
    %v3044 = vadd.f32 %v2922, %v3043
    %3045 = vdwg.mxu0
    %v3046 = vadd.f32 %v2499, %v2975
    %v3047 = vadd.f32 %v2501, %v2977
    %v3048 = vadd.f32 %v2552, %v3028
    %v3049 = vadd.f32 %v2554, %v3030
    %v3050 = vadd.f32 %v2503, %v2979
    %v3051 = vadd.f32 %v2505, %v2981
    %v3052 = vadd.f32 %v2556, %v3032
    %v3053 = vadd.f32 %v2558, %v3034
    %v3054 = vadd.f32 %v2509, %v2985
    %v3055 = vadd.f32 %v2511, %v2987
    %v3056 = vadd.f32 %v2562, %v3038
    %v3057 = vadd.f32 %v2564, %v3040
    %v3058 = vadd.f32 %v2513, %v2989
    %v3059 = vadd.f32 %v2515, %v2991
    %v3060 = vadd.f32 %v2566, %v3042
    %v3061 = vadd.f32 %v2568, %v3044
    %3062 = vrot.lane.b32.xlu0 %v3046, 2
    %v3063 = vpop.permute.xlu0 %3062
    %3064 = vrot.lane.b32.xlu0 %v3050, 2
    %v3065 = vpop.permute.xlu0 %3064
    %3066 = vrot.lane.b32.xlu0 %v3054, 2
    %v3067 = vpop.permute.xlu0 %3066
    %3068 = vrot.lane.b32.xlu0 %v3058, 2
    %v3069 = vpop.permute.xlu0 %3068
    %3070 = vrot.lane.b32.xlu0 %v3047, 2
    %v3071 = vpop.permute.xlu0 %3070
    %3072 = vrot.lane.b32.xlu0 %v3051, 2
    %v3073 = vpop.permute.xlu0 %3072
    %3074 = vrot.lane.b32.xlu0 %v3055, 2
    %v3075 = vpop.permute.xlu0 %3074
    %3076 = vrot.lane.b32.xlu0 %v3059, 2
    %v3077 = vpop.permute.xlu0 %3076
    %3078 = vrot.lane.b32.xlu0 %v3048, 2
    %v3079 = vpop.permute.xlu0 %3078
    %3080 = vrot.lane.b32.xlu0 %v3052, 2
    %v3081 = vpop.permute.xlu0 %3080
    %3082 = vrot.lane.b32.xlu0 %v3056, 2
    %v3083 = vpop.permute.xlu0 %3082
    %3084 = vrot.lane.b32.xlu0 %v3060, 2
    %v3085 = vpop.permute.xlu0 %3084
    %3086 = vrot.lane.b32.xlu0 %v3049, 2
    %v3087 = vpop.permute.xlu0 %3086
    %3088 = vrot.lane.b32.xlu0 %v3053, 2
    %v3089 = vpop.permute.xlu0 %3088
    %3090 = vrot.lane.b32.xlu0 %v3057, 2
    %v3091 = vpop.permute.xlu0 %3090
    %3092 = vrot.lane.b32.xlu0 %v3061, 2
    %v3093 = vpop.permute.xlu0 %3092
    %v3094 = vsel %vm942, %v3079, %v3087
    %v3095 = vsel %vm942, %v3081, %v3089
    %v3096 = vsel %vm942, %v3083, %v3091
    %v3097 = vsel %vm942, %v3085, %v3093
    %v3098 = vsel %vm942, %v3071, %v3079
    %v3099 = vsel %vm942, %v3073, %v3081
    %v3100 = vsel %vm942, %v3075, %v3083
    %v3101 = vsel %vm942, %v3077, %v3085
    %v3102 = vsel %vm942, %v3063, %v3071
    %v3103 = vsel %vm942, %v3065, %v3073
    %v3104 = vsel %vm942, %v3067, %v3075
    %v3105 = vsel %vm942, %v3069, %v3077
    %v3106 = vsel %vm942, %v3087, %v3063
    %v3107 = vsel %vm942, %v3089, %v3065
    %v3108 = vsel %vm942, %v3091, %v3067
    %v3109 = vsel %vm942, %v3093, %v3069
    %v3110 = vsel %vm963, %v3106, 0.0
    %v3111 = vsel %vm964, %v3102, 0.0
    %v3112 = vsel %vm965, %v3098, 0.0
    %v3113 = vsel %vm966, %v3094, 0.0
    %v3114 = vsel %vm963, %v3107, 0.0
    %v3115 = vsel %vm964, %v3103, 0.0
    %v3116 = vsel %vm965, %v3099, 0.0
    %v3117 = vsel %vm966, %v3095, 0.0
    %v3118 = vsel %vm963, %v3108, 0.0
    %v3119 = vsel %vm964, %v3104, 0.0
    %v3120 = vsel %vm965, %v3100, 0.0
    %v3121 = vsel %vm966, %v3096, 0.0
    %v3122 = vsel %vm963, %v3109, 0.0
    %v3123 = vsel %vm964, %v3105, 0.0
    %v3124 = vsel %vm965, %v3101, 0.0
    %v3125 = vsel %vm966, %v3097, 0.0
    %3126 = vrot.lane.b32.xlu0 %v3046, 126
    %v3127 = vpop.permute.xlu0 %3126
    %3128 = vrot.lane.b32.xlu0 %v3050, 126
    %v3129 = vpop.permute.xlu0 %3128
    %3130 = vrot.lane.b32.xlu0 %v3054, 126
    %v3131 = vpop.permute.xlu0 %3130
    %3132 = vrot.lane.b32.xlu0 %v3058, 126
    %v3133 = vpop.permute.xlu0 %3132
    %3134 = vrot.lane.b32.xlu0 %v3047, 126
    %v3135 = vpop.permute.xlu0 %3134
    %3136 = vrot.lane.b32.xlu0 %v3051, 126
    %v3137 = vpop.permute.xlu0 %3136
    %3138 = vrot.lane.b32.xlu0 %v3055, 126
    %v3139 = vpop.permute.xlu0 %3138
    %3140 = vrot.lane.b32.xlu0 %v3059, 126
    %v3141 = vpop.permute.xlu0 %3140
    %3142 = vrot.lane.b32.xlu0 %v3048, 126
    %v3143 = vpop.permute.xlu0 %3142
    %3144 = vrot.lane.b32.xlu0 %v3052, 126
    %v3145 = vpop.permute.xlu0 %3144
    %3146 = vrot.lane.b32.xlu0 %v3056, 126
    %v3147 = vpop.permute.xlu0 %3146
    %3148 = vrot.lane.b32.xlu0 %v3060, 126
    %v3149 = vpop.permute.xlu0 %3148
    %3150 = vrot.lane.b32.xlu0 %v3049, 126
    %v3151 = vpop.permute.xlu0 %3150
    %3152 = vrot.lane.b32.xlu0 %v3053, 126
    %v3153 = vpop.permute.xlu0 %3152
    %3154 = vrot.lane.b32.xlu0 %v3057, 126
    %v3155 = vpop.permute.xlu0 %3154
    %3156 = vrot.lane.b32.xlu0 %v3061, 126
    %v3157 = vpop.permute.xlu0 %3156
    %v3158 = vsel %vm1019, %v3143, %v3151
    %v3159 = vsel %vm1019, %v3145, %v3153
    %v3160 = vsel %vm1019, %v3147, %v3155
    %v3161 = vsel %vm1019, %v3149, %v3157
    %v3162 = vsel %vm1019, %v3135, %v3143
    %v3163 = vsel %vm1019, %v3137, %v3145
    %v3164 = vsel %vm1019, %v3139, %v3147
    %v3165 = vsel %vm1019, %v3141, %v3149
    %v3166 = vsel %vm1019, %v3127, %v3135
    %v3167 = vsel %vm1019, %v3129, %v3137
    %v3168 = vsel %vm1019, %v3131, %v3139
    %v3169 = vsel %vm1019, %v3133, %v3141
    %v3170 = vsel %vm1019, %v3151, %v3127
    %v3171 = vsel %vm1019, %v3153, %v3129
    %v3172 = vsel %vm1019, %v3155, %v3131
    %v3173 = vsel %vm1019, %v3157, %v3133
    %v3174 = vsel %vm1040, %v3166, 0.0
    %v3175 = vsel %vm1041, %v3162, 0.0
    %v3176 = vsel %vm1042, %v3158, 0.0
    %v3177 = vsel %vm1043, %v3170, 0.0
    %v3178 = vsel %vm1040, %v3167, 0.0
    %v3179 = vsel %vm1041, %v3163, 0.0
    %v3180 = vsel %vm1042, %v3159, 0.0
    %v3181 = vsel %vm1043, %v3171, 0.0
    %v3182 = vsel %vm1040, %v3168, 0.0
    %v3183 = vsel %vm1041, %v3164, 0.0
    %v3184 = vsel %vm1042, %v3160, 0.0
    %v3185 = vsel %vm1043, %v3172, 0.0
    %v3186 = vsel %vm1040, %v3169, 0.0
    %v3187 = vsel %vm1041, %v3165, 0.0
    %v3188 = vsel %vm1042, %v3161, 0.0
    %v3189 = vsel %vm1043, %v3173, 0.0
    %v3190 = vpack.c.bf16 %v3114, %v3110
    %v3191 = vpack.c.bf16 %v3115, %v3111
    %v3192 = vpack.c.bf16 %v3116, %v3112
    %v3193 = vpack.c.bf16 %v3117, %v3113
    %v3194 = vpack.c.bf16 %v3122, %v3118
    %v3195 = vpack.c.bf16 %v3123, %v3119
    %v3196 = vpack.c.bf16 %v3124, %v3120
    %v3197 = vpack.c.bf16 %v3125, %v3121
    %v3198 = vpack.c.bf16 %v3050, %v3046
    %v3199 = vpack.c.bf16 %v3051, %v3047
    %v3200 = vpack.c.bf16 %v3052, %v3048
    %v3201 = vpack.c.bf16 %v3053, %v3049
    %v3202 = vpack.c.bf16 %v3058, %v3054
    %v3203 = vpack.c.bf16 %v3059, %v3055
    %v3204 = vpack.c.bf16 %v3060, %v3056
    %v3205 = vpack.c.bf16 %v3061, %v3057
    %v3206 = vpack.c.bf16 %v3178, %v3174
    %v3207 = vpack.c.bf16 %v3179, %v3175
    %v3208 = vpack.c.bf16 %v3180, %v3176
    %v3209 = vpack.c.bf16 %v3181, %v3177
    %v3210 = vpack.c.bf16 %v3186, %v3182
    %v3211 = vpack.c.bf16 %v3187, %v3183
    %v3212 = vpack.c.bf16 %v3188, %v3184
    %v3213 = vpack.c.bf16 %v3189, %v3185
    %s3214 = scalar_lea.vmem %s15, 16
    %v3215 = vld [vmem:[%s3214] sm:$0xf]
    %v3216 = vld [vmem:[%s3214 + $0x4] sm:$0xf]
    %v3217 = vld [vmem:[%s3214 + $0x8] sm:$0xf]
    %v3218 = vld [vmem:[%s3214 + $0xc] sm:$0xf]
    %s3219 = scalar_lea.vmem %s16, 32
    %v3220 = vld [vmem:[%s3219] sm:$0xff]
    %v3221 = vld [vmem:[%s3219 + $0x8] sm:$0xff]
    %v3222 = vld [vmem:[%s3219 + $0x10] sm:$0xff]
    %v3223 = vld [vmem:[%s3219 + $0x18] sm:$0xff]
    %3225 = vset.pattern.permute.xlu0 0
    %3226 = vperm.xlu0 %3225, %v3220
    %v3227 = vpop.permute.xlu0 %3226
    %3230 = vset.pattern.permute.xlu0 0
    %3231 = vperm.xlu0 %3230, %v3221
    %v3232 = vpop.permute.xlu0 %3231
    %3235 = vset.pattern.permute.xlu0 0
    %3236 = vperm.xlu0 %3235, %v3222
    %v3237 = vpop.permute.xlu0 %3236
    %3240 = vset.pattern.permute.xlu0 0
    %3241 = vperm.xlu0 %3240, %v3223
    %v3242 = vpop.permute.xlu0 %3241
    %v3248 = vunpack.c.l.b16 %v3215
    %v3249 = vunpack.c.l.b16 %v3216
    %v3250 = vunpack.c.l.b16 %v3217
    %v3251 = vunpack.c.l.b16 %v3218
    %v3252 = vpack.c.b16 %v3249, %v3248
    %v3253 = vpack.c.b16 %v3251, %v3250
    %v3255 = vsel %vm602, %v3252, 0
    %v3258 = vsel %vm602, %v3253, 0
    %3260 = vmatprep.subr.bf16.mxu0 0
    %3261 = vmatpush1.bf16.msra.mxu0 0
    %3262 = vmatprep.subr.bf16.mxu0 0
    %3263 = vmatpush1.bf16.msra.mxu0 0
    %3264 = vmatprep.subr.bf16.mxu0 %v3211
    %3265 = vmatpush1.bf16.msra.mxu0 %v3210
    %3266 = vmatprep.subr.bf16.mxu0 %v3207
    %3267 = vmatpush1.bf16.msra.mxu0 %v3206
    %3268 = vmatprep.subr.bf16.mxu0 %v3203
    %3269 = vmatpush1.bf16.msra.mxu0 %v3202
    %3270 = vmatprep.subr.bf16.mxu0 %v3199
    %3271 = vmatpush1.bf16.msra.mxu0 %v3198
    %3272 = vmatprep.subr.bf16.mxu0 %v3195
    %3273 = vmatpush1.bf16.msra.mxu0 %v3194
    %3274 = vmatprep.subr.bf16.mxu0 %v3191
    %3275 = vmatpush1.bf16.msra.mxu0 %v3190
    %3276 = vmatprep.subr.bf16.mxu0 0
    %3277 = vmatpush2.bf16.msra.mxu0 0
    %3278 = vmatprep.subr.bf16.mxu0 0
    %3279 = vmatpush2.bf16.msra.mxu0 0
    %3280 = vmatprep.subr.bf16.mxu0 0
    %3281 = vmatpush2.bf16.msra.mxu0 0
    %3282 = vmatprep.subr.bf16.mxu0 0
    %3283 = vmatpush2.bf16.msra.mxu0 0
    %3284 = vmatprep.subr.bf16.mxu0 0
    %3285 = vmatpush2.bf16.msra.mxu0 0
    %3286 = vmatprep.subr.bf16.mxu0 0
    %3287 = vmatpush2.bf16.msra.mxu0 0
    %3288 = vmatprep.subr.bf16.mxu0 0
    %3289 = vmatpush2.bf16.msra.mxu0 0
    %3290 = vmatprep.subr.bf16.mxu0 0
    %3291 = vmatpush2.bf16.msra.mxu0 0
    %3292 = vmatprep.mubr.bf16.mxu0 0
    %3293 = vmatmul.mubr.bf16.gmra.mxu0 %v3255
    %v3294 = vpop.f32.mrf.mxu0
    %v3295 = vadd.f32 %v3227, %v3294
    %v3296 = vpop.f32.mrf.mxu0
    %v3297 = vadd.f32 %v3227, %v3296
    %v3298 = vpop.f32.mrf.mxu0
    %v3299 = vadd.f32 %v3232, %v3298
    %v3300 = vpop.f32.mrf.mxu0
    %v3301 = vadd.f32 %v3232, %v3300
    %3302 = vmatprep.mubr.bf16.mxu0 0
    %3303 = vmatmul.mubr.bf16.gmra.mxu0 %v3258
    %v3304 = vpop.f32.mrf.mxu0
    %v3305 = vadd.f32 %v3237, %v3304
    %v3306 = vpop.f32.mrf.mxu0
    %v3307 = vadd.f32 %v3237, %v3306
    %v3308 = vpop.f32.mrf.mxu0
    %v3309 = vadd.f32 %v3242, %v3308
    %v3310 = vpop.f32.mrf.mxu0
    %v3311 = vadd.f32 %v3242, %v3310
    %3312 = vdwg.mxu0
    %3313 = vmatprep.subr.bf16.mxu0 0
    %3314 = vmatpush1.bf16.msra.mxu0 0
    %3315 = vmatprep.subr.bf16.mxu0 0
    %3316 = vmatpush1.bf16.msra.mxu0 0
    %3317 = vmatprep.subr.bf16.mxu0 %v3213
    %3318 = vmatpush1.bf16.msra.mxu0 %v3212
    %3319 = vmatprep.subr.bf16.mxu0 %v3209
    %3320 = vmatpush1.bf16.msra.mxu0 %v3208
    %3321 = vmatprep.subr.bf16.mxu0 %v3205
    %3322 = vmatpush1.bf16.msra.mxu0 %v3204
    %3323 = vmatprep.subr.bf16.mxu0 %v3201
    %3324 = vmatpush1.bf16.msra.mxu0 %v3200
    %3325 = vmatprep.subr.bf16.mxu0 %v3197
    %3326 = vmatpush1.bf16.msra.mxu0 %v3196
    %3327 = vmatprep.subr.bf16.mxu0 %v3193
    %3328 = vmatpush1.bf16.msra.mxu0 %v3192
    %3329 = vmatprep.subr.bf16.mxu0 0
    %3330 = vmatpush2.bf16.msra.mxu0 0
    %3331 = vmatprep.subr.bf16.mxu0 0
    %3332 = vmatpush2.bf16.msra.mxu0 0
    %3333 = vmatprep.subr.bf16.mxu0 0
    %3334 = vmatpush2.bf16.msra.mxu0 0
    %3335 = vmatprep.subr.bf16.mxu0 0
    %3336 = vmatpush2.bf16.msra.mxu0 0
    %3337 = vmatprep.subr.bf16.mxu0 0
    %3338 = vmatpush2.bf16.msra.mxu0 0
    %3339 = vmatprep.subr.bf16.mxu0 0
    %3340 = vmatpush2.bf16.msra.mxu0 0
    %3341 = vmatprep.subr.bf16.mxu0 0
    %3342 = vmatpush2.bf16.msra.mxu0 0
    %3343 = vmatprep.subr.bf16.mxu0 0
    %3344 = vmatpush2.bf16.msra.mxu0 0
    %3345 = vmatprep.mubr.bf16.mxu0 0
    %3346 = vmatmul.mubr.bf16.gmra.mxu0 %v3255
    %v3347 = vpop.f32.mrf.mxu0
    %v3348 = vadd.f32 %v3227, %v3347
    %v3349 = vpop.f32.mrf.mxu0
    %v3350 = vadd.f32 %v3227, %v3349
    %v3351 = vpop.f32.mrf.mxu0
    %v3352 = vadd.f32 %v3232, %v3351
    %v3353 = vpop.f32.mrf.mxu0
    %v3354 = vadd.f32 %v3232, %v3353
    %3355 = vmatprep.mubr.bf16.mxu0 0
    %3356 = vmatmul.mubr.bf16.gmra.mxu0 %v3258
    %v3357 = vpop.f32.mrf.mxu0
    %v3358 = vadd.f32 %v3237, %v3357
    %v3359 = vpop.f32.mrf.mxu0
    %v3360 = vadd.f32 %v3237, %v3359
    %v3361 = vpop.f32.mrf.mxu0
    %v3362 = vadd.f32 %v3242, %v3361
    %v3363 = vpop.f32.mrf.mxu0
    %v3364 = vadd.f32 %v3242, %v3363
    %3365 = vdwg.mxu0
    %v3366 = vmax.f32 %v3295, 0.0
    %v3367 = vmax.f32 %v3297, 0.0
    %v3368 = vmax.f32 %v3348, 0.0
    %v3369 = vmax.f32 %v3350, 0.0
    %v3370 = vmax.f32 %v3299, 0.0
    %v3371 = vmax.f32 %v3301, 0.0
    %v3372 = vmax.f32 %v3352, 0.0
    %v3373 = vmax.f32 %v3354, 0.0
    %v3374 = vmax.f32 %v3305, 0.0
    %v3375 = vmax.f32 %v3307, 0.0
    %v3376 = vmax.f32 %v3358, 0.0
    %v3377 = vmax.f32 %v3360, 0.0
    %v3378 = vmax.f32 %v3309, 0.0
    %v3379 = vmax.f32 %v3311, 0.0
    %v3380 = vmax.f32 %v3362, 0.0
    %v3381 = vmax.f32 %v3364, 0.0
    %s3382 = scalar_lea.vmem %s17, 16
    %v3383 = vld [vmem:[%s3382] sm:$0xf]
    %v3384 = vld [vmem:[%s3382 + $0x4] sm:$0xf]
    %v3385 = vld [vmem:[%s3382 + $0x8] sm:$0xf]
    %v3386 = vld [vmem:[%s3382 + $0xc] sm:$0xf]
    %v3387 = vpack.c.bf16 %v3370, %v3366
    %v3388 = vpack.c.bf16 %v3371, %v3367
    %v3389 = vpack.c.bf16 %v3372, %v3368
    %v3390 = vpack.c.bf16 %v3373, %v3369
    %v3391 = vpack.c.bf16 %v3378, %v3374
    %v3392 = vpack.c.bf16 %v3379, %v3375
    %v3393 = vpack.c.bf16 %v3380, %v3376
    %v3394 = vpack.c.bf16 %v3381, %v3377
    %s3395 = scalar_lea.vmem %s18, 32
    %v3396 = vld [vmem:[%s3395] sm:$0xff]
    %v3397 = vld [vmem:[%s3395 + $0x8] sm:$0xff]
    %v3398 = vld [vmem:[%s3395 + $0x10] sm:$0xff]
    %v3399 = vld [vmem:[%s3395 + $0x18] sm:$0xff]
    %3401 = vset.pattern.permute.xlu0 0
    %3402 = vperm.xlu0 %3401, %v3396
    %v3403 = vpop.permute.xlu0 %3402
    %3406 = vset.pattern.permute.xlu0 0
    %3407 = vperm.xlu0 %3406, %v3397
    %v3408 = vpop.permute.xlu0 %3407
    %3411 = vset.pattern.permute.xlu0 0
    %3412 = vperm.xlu0 %3411, %v3398
    %v3413 = vpop.permute.xlu0 %3412
    %3416 = vset.pattern.permute.xlu0 0
    %3417 = vperm.xlu0 %3416, %v3399
    %v3418 = vpop.permute.xlu0 %3417
    %v3424 = vunpack.c.l.b16 %v3383
    %v3425 = vunpack.c.l.b16 %v3384
    %v3426 = vunpack.c.l.b16 %v3385
    %v3427 = vunpack.c.l.b16 %v3386
    %v3428 = vpack.c.b16 %v3425, %v3424
    %v3429 = vpack.c.b16 %v3427, %v3426
    %v3431 = vsel %vm777, %v3428, 0
    %v3434 = vsel %vm777, %v3429, 0
    %3436 = vmatprep.subr.bf16.mxu0 0
    %3437 = vmatpush1.bf16.msra.mxu0 0
    %3438 = vmatprep.subr.bf16.mxu0 0
    %3439 = vmatpush1.bf16.msra.mxu0 0
    %3440 = vmatprep.subr.bf16.mxu0 0
    %3441 = vmatpush1.bf16.msra.mxu0 0
    %3442 = vmatprep.subr.bf16.mxu0 0
    %3443 = vmatpush1.bf16.msra.mxu0 0
    %3444 = vmatprep.subr.bf16.mxu0 0
    %3445 = vmatpush1.bf16.msra.mxu0 0
    %3446 = vmatprep.subr.bf16.mxu0 0
    %3447 = vmatpush1.bf16.msra.mxu0 0
    %3448 = vmatprep.subr.bf16.mxu0 %v3392
    %3449 = vmatpush1.bf16.msra.mxu0 %v3391
    %3450 = vmatprep.subr.bf16.mxu0 %v3388
    %3451 = vmatpush1.bf16.msra.mxu0 %v3387
    %3452 = vmatprep.subr.bf16.mxu0 0
    %3453 = vmatpush2.bf16.msra.mxu0 0
    %3454 = vmatprep.subr.bf16.mxu0 0
    %3455 = vmatpush2.bf16.msra.mxu0 0
    %3456 = vmatprep.subr.bf16.mxu0 0
    %3457 = vmatpush2.bf16.msra.mxu0 0
    %3458 = vmatprep.subr.bf16.mxu0 0
    %3459 = vmatpush2.bf16.msra.mxu0 0
    %3460 = vmatprep.subr.bf16.mxu0 0
    %3461 = vmatpush2.bf16.msra.mxu0 0
    %3462 = vmatprep.subr.bf16.mxu0 0
    %3463 = vmatpush2.bf16.msra.mxu0 0
    %3464 = vmatprep.subr.bf16.mxu0 0
    %3465 = vmatpush2.bf16.msra.mxu0 0
    %3466 = vmatprep.subr.bf16.mxu0 0
    %3467 = vmatpush2.bf16.msra.mxu0 0
    %3468 = vmatprep.mubr.bf16.mxu0 0
    %3469 = vmatmul.mubr.bf16.gmra.mxu0 %v3431
    %v3470 = vpop.f32.mrf.mxu0
    %v3471 = vadd.f32 %v3403, %v3470
    %v3472 = vpop.f32.mrf.mxu0
    %v3473 = vadd.f32 %v3403, %v3472
    %v3474 = vpop.f32.mrf.mxu0
    %v3475 = vadd.f32 %v3408, %v3474
    %v3476 = vpop.f32.mrf.mxu0
    %v3477 = vadd.f32 %v3408, %v3476
    %3478 = vmatprep.mubr.bf16.mxu0 0
    %3479 = vmatmul.mubr.bf16.gmra.mxu0 %v3434
    %v3480 = vpop.f32.mrf.mxu0
    %v3481 = vadd.f32 %v3413, %v3480
    %v3482 = vpop.f32.mrf.mxu0
    %v3483 = vadd.f32 %v3413, %v3482
    %v3484 = vpop.f32.mrf.mxu0
    %v3485 = vadd.f32 %v3418, %v3484
    %v3486 = vpop.f32.mrf.mxu0
    %v3487 = vadd.f32 %v3418, %v3486
    %3488 = vdwg.mxu0
    %3489 = vmatprep.subr.bf16.mxu0 0
    %3490 = vmatpush1.bf16.msra.mxu0 0
    %3491 = vmatprep.subr.bf16.mxu0 0
    %3492 = vmatpush1.bf16.msra.mxu0 0
    %3493 = vmatprep.subr.bf16.mxu0 0
    %3494 = vmatpush1.bf16.msra.mxu0 0
    %3495 = vmatprep.subr.bf16.mxu0 0
    %3496 = vmatpush1.bf16.msra.mxu0 0
    %3497 = vmatprep.subr.bf16.mxu0 0
    %3498 = vmatpush1.bf16.msra.mxu0 0
    %3499 = vmatprep.subr.bf16.mxu0 0
    %3500 = vmatpush1.bf16.msra.mxu0 0
    %3501 = vmatprep.subr.bf16.mxu0 %v3394
    %3502 = vmatpush1.bf16.msra.mxu0 %v3393
    %3503 = vmatprep.subr.bf16.mxu0 %v3390
    %3504 = vmatpush1.bf16.msra.mxu0 %v3389
    %3505 = vmatprep.subr.bf16.mxu0 0
    %3506 = vmatpush2.bf16.msra.mxu0 0
    %3507 = vmatprep.subr.bf16.mxu0 0
    %3508 = vmatpush2.bf16.msra.mxu0 0
    %3509 = vmatprep.subr.bf16.mxu0 0
    %3510 = vmatpush2.bf16.msra.mxu0 0
    %3511 = vmatprep.subr.bf16.mxu0 0
    %3512 = vmatpush2.bf16.msra.mxu0 0
    %3513 = vmatprep.subr.bf16.mxu0 0
    %3514 = vmatpush2.bf16.msra.mxu0 0
    %3515 = vmatprep.subr.bf16.mxu0 0
    %3516 = vmatpush2.bf16.msra.mxu0 0
    %3517 = vmatprep.subr.bf16.mxu0 0
    %3518 = vmatpush2.bf16.msra.mxu0 0
    %3519 = vmatprep.subr.bf16.mxu0 0
    %3520 = vmatpush2.bf16.msra.mxu0 0
    %3521 = vmatprep.mubr.bf16.mxu0 0
    %3522 = vmatmul.mubr.bf16.gmra.mxu0 %v3431
    %v3523 = vpop.f32.mrf.mxu0
    %v3524 = vadd.f32 %v3403, %v3523
    %v3525 = vpop.f32.mrf.mxu0
    %v3526 = vadd.f32 %v3403, %v3525
    %v3527 = vpop.f32.mrf.mxu0
    %v3528 = vadd.f32 %v3408, %v3527
    %v3529 = vpop.f32.mrf.mxu0
    %v3530 = vadd.f32 %v3408, %v3529
    %3531 = vmatprep.mubr.bf16.mxu0 0
    %3532 = vmatmul.mubr.bf16.gmra.mxu0 %v3434
    %v3533 = vpop.f32.mrf.mxu0
    %v3534 = vadd.f32 %v3413, %v3533
    %v3535 = vpop.f32.mrf.mxu0
    %v3536 = vadd.f32 %v3413, %v3535
    %v3537 = vpop.f32.mrf.mxu0
    %v3538 = vadd.f32 %v3418, %v3537
    %v3539 = vpop.f32.mrf.mxu0
    %v3540 = vadd.f32 %v3418, %v3539
    %3541 = vdwg.mxu0
    %v3542 = vadd.f32 %v3046, %v3471
    %v3543 = vadd.f32 %v3047, %v3473
    %v3544 = vadd.f32 %v3048, %v3524
    %v3545 = vadd.f32 %v3049, %v3526
    %v3546 = vadd.f32 %v3050, %v3475
    %v3547 = vadd.f32 %v3051, %v3477
    %v3548 = vadd.f32 %v3052, %v3528
    %v3549 = vadd.f32 %v3053, %v3530
    %v3550 = vadd.f32 %v3054, %v3481
    %v3551 = vadd.f32 %v3055, %v3483
    %v3552 = vadd.f32 %v3056, %v3534
    %v3553 = vadd.f32 %v3057, %v3536
    %v3554 = vadd.f32 %v3058, %v3485
    %v3555 = vadd.f32 %v3059, %v3487
    %v3556 = vadd.f32 %v3060, %v3538
    %v3557 = vadd.f32 %v3061, %v3540
    %3558 = vrot.lane.b32.xlu0 %v3542, 4
    %v3559 = vpop.permute.xlu0 %3558
    %3560 = vrot.lane.b32.xlu0 %v3546, 4
    %v3561 = vpop.permute.xlu0 %3560
    %3562 = vrot.lane.b32.xlu0 %v3550, 4
    %v3563 = vpop.permute.xlu0 %3562
    %3564 = vrot.lane.b32.xlu0 %v3554, 4
    %v3565 = vpop.permute.xlu0 %3564
    %3566 = vrot.lane.b32.xlu0 %v3543, 4
    %v3567 = vpop.permute.xlu0 %3566
    %3568 = vrot.lane.b32.xlu0 %v3547, 4
    %v3569 = vpop.permute.xlu0 %3568
    %3570 = vrot.lane.b32.xlu0 %v3551, 4
    %v3571 = vpop.permute.xlu0 %3570
    %3572 = vrot.lane.b32.xlu0 %v3555, 4
    %v3573 = vpop.permute.xlu0 %3572
    %3574 = vrot.lane.b32.xlu0 %v3544, 4
    %v3575 = vpop.permute.xlu0 %3574
    %3576 = vrot.lane.b32.xlu0 %v3548, 4
    %v3577 = vpop.permute.xlu0 %3576
    %3578 = vrot.lane.b32.xlu0 %v3552, 4
    %v3579 = vpop.permute.xlu0 %3578
    %3580 = vrot.lane.b32.xlu0 %v3556, 4
    %v3581 = vpop.permute.xlu0 %3580
    %3582 = vrot.lane.b32.xlu0 %v3545, 4
    %v3583 = vpop.permute.xlu0 %3582
    %3584 = vrot.lane.b32.xlu0 %v3549, 4
    %v3585 = vpop.permute.xlu0 %3584
    %3586 = vrot.lane.b32.xlu0 %v3553, 4
    %v3587 = vpop.permute.xlu0 %3586
    %3588 = vrot.lane.b32.xlu0 %v3557, 4
    %v3589 = vpop.permute.xlu0 %3588
    %v3590 = vsel %vm1464, %v3575, %v3583
    %v3591 = vsel %vm1464, %v3577, %v3585
    %v3592 = vsel %vm1464, %v3579, %v3587
    %v3593 = vsel %vm1464, %v3581, %v3589
    %v3594 = vsel %vm1464, %v3567, %v3575
    %v3595 = vsel %vm1464, %v3569, %v3577
    %v3596 = vsel %vm1464, %v3571, %v3579
    %v3597 = vsel %vm1464, %v3573, %v3581
    %v3598 = vsel %vm1464, %v3559, %v3567
    %v3599 = vsel %vm1464, %v3561, %v3569
    %v3600 = vsel %vm1464, %v3563, %v3571
    %v3601 = vsel %vm1464, %v3565, %v3573
    %v3602 = vsel %vm1464, %v3583, %v3559
    %v3603 = vsel %vm1464, %v3585, %v3561
    %v3604 = vsel %vm1464, %v3587, %v3563
    %v3605 = vsel %vm1464, %v3589, %v3565
    %v3606 = vsel %vm1485, %v3602, 0.0
    %v3607 = vsel %vm1486, %v3598, 0.0
    %v3608 = vsel %vm1487, %v3594, 0.0
    %v3609 = vsel %vm1488, %v3590, 0.0
    %v3610 = vsel %vm1485, %v3603, 0.0
    %v3611 = vsel %vm1486, %v3599, 0.0
    %v3612 = vsel %vm1487, %v3595, 0.0
    %v3613 = vsel %vm1488, %v3591, 0.0
    %v3614 = vsel %vm1485, %v3604, 0.0
    %v3615 = vsel %vm1486, %v3600, 0.0
    %v3616 = vsel %vm1487, %v3596, 0.0
    %v3617 = vsel %vm1488, %v3592, 0.0
    %v3618 = vsel %vm1485, %v3605, 0.0
    %v3619 = vsel %vm1486, %v3601, 0.0
    %v3620 = vsel %vm1487, %v3597, 0.0
    %v3621 = vsel %vm1488, %v3593, 0.0
    %3622 = vrot.lane.b32.xlu0 %v3542, 124
    %v3623 = vpop.permute.xlu0 %3622
    %3624 = vrot.lane.b32.xlu0 %v3546, 124
    %v3625 = vpop.permute.xlu0 %3624
    %3626 = vrot.lane.b32.xlu0 %v3550, 124
    %v3627 = vpop.permute.xlu0 %3626
    %3628 = vrot.lane.b32.xlu0 %v3554, 124
    %v3629 = vpop.permute.xlu0 %3628
    %3630 = vrot.lane.b32.xlu0 %v3543, 124
    %v3631 = vpop.permute.xlu0 %3630
    %3632 = vrot.lane.b32.xlu0 %v3547, 124
    %v3633 = vpop.permute.xlu0 %3632
    %3634 = vrot.lane.b32.xlu0 %v3551, 124
    %v3635 = vpop.permute.xlu0 %3634
    %3636 = vrot.lane.b32.xlu0 %v3555, 124
    %v3637 = vpop.permute.xlu0 %3636
    %3638 = vrot.lane.b32.xlu0 %v3544, 124
    %v3639 = vpop.permute.xlu0 %3638
    %3640 = vrot.lane.b32.xlu0 %v3548, 124
    %v3641 = vpop.permute.xlu0 %3640
    %3642 = vrot.lane.b32.xlu0 %v3552, 124
    %v3643 = vpop.permute.xlu0 %3642
    %3644 = vrot.lane.b32.xlu0 %v3556, 124
    %v3645 = vpop.permute.xlu0 %3644
    %3646 = vrot.lane.b32.xlu0 %v3545, 124
    %v3647 = vpop.permute.xlu0 %3646
    %3648 = vrot.lane.b32.xlu0 %v3549, 124
    %v3649 = vpop.permute.xlu0 %3648
    %3650 = vrot.lane.b32.xlu0 %v3553, 124
    %v3651 = vpop.permute.xlu0 %3650
    %3652 = vrot.lane.b32.xlu0 %v3557, 124
    %v3653 = vpop.permute.xlu0 %3652
    %v3654 = vsel %vm1541, %v3639, %v3647
    %v3655 = vsel %vm1541, %v3641, %v3649
    %v3656 = vsel %vm1541, %v3643, %v3651
    %v3657 = vsel %vm1541, %v3645, %v3653
    %v3658 = vsel %vm1541, %v3631, %v3639
    %v3659 = vsel %vm1541, %v3633, %v3641
    %v3660 = vsel %vm1541, %v3635, %v3643
    %v3661 = vsel %vm1541, %v3637, %v3645
    %v3662 = vsel %vm1541, %v3623, %v3631
    %v3663 = vsel %vm1541, %v3625, %v3633
    %v3664 = vsel %vm1541, %v3627, %v3635
    %v3665 = vsel %vm1541, %v3629, %v3637
    %v3666 = vsel %vm1541, %v3647, %v3623
    %v3667 = vsel %vm1541, %v3649, %v3625
    %v3668 = vsel %vm1541, %v3651, %v3627
    %v3669 = vsel %vm1541, %v3653, %v3629
    %v3670 = vsel %vm1562, %v3662, 0.0
    %v3671 = vsel %vm1563, %v3658, 0.0
    %v3672 = vsel %vm1564, %v3654, 0.0
    %v3673 = vsel %vm1565, %v3666, 0.0
    %v3674 = vsel %vm1562, %v3663, 0.0
    %v3675 = vsel %vm1563, %v3659, 0.0
    %v3676 = vsel %vm1564, %v3655, 0.0
    %v3677 = vsel %vm1565, %v3667, 0.0
    %v3678 = vsel %vm1562, %v3664, 0.0
    %v3679 = vsel %vm1563, %v3660, 0.0
    %v3680 = vsel %vm1564, %v3656, 0.0
    %v3681 = vsel %vm1565, %v3668, 0.0
    %v3682 = vsel %vm1562, %v3665, 0.0
    %v3683 = vsel %vm1563, %v3661, 0.0
    %v3684 = vsel %vm1564, %v3657, 0.0
    %v3685 = vsel %vm1565, %v3669, 0.0
    %v3686 = vpack.c.bf16 %v3610, %v3606
    %v3687 = vpack.c.bf16 %v3611, %v3607
    %v3688 = vpack.c.bf16 %v3612, %v3608
    %v3689 = vpack.c.bf16 %v3613, %v3609
    %v3690 = vpack.c.bf16 %v3618, %v3614
    %v3691 = vpack.c.bf16 %v3619, %v3615
    %v3692 = vpack.c.bf16 %v3620, %v3616
    %v3693 = vpack.c.bf16 %v3621, %v3617
    %v3694 = vpack.c.bf16 %v3546, %v3542
    %v3695 = vpack.c.bf16 %v3547, %v3543
    %v3696 = vpack.c.bf16 %v3548, %v3544
    %v3697 = vpack.c.bf16 %v3549, %v3545
    %v3698 = vpack.c.bf16 %v3554, %v3550
    %v3699 = vpack.c.bf16 %v3555, %v3551
    %v3700 = vpack.c.bf16 %v3556, %v3552
    %v3701 = vpack.c.bf16 %v3557, %v3553
    %v3702 = vpack.c.bf16 %v3674, %v3670
    %v3703 = vpack.c.bf16 %v3675, %v3671
    %v3704 = vpack.c.bf16 %v3676, %v3672
    %v3705 = vpack.c.bf16 %v3677, %v3673
    %v3706 = vpack.c.bf16 %v3682, %v3678
    %v3707 = vpack.c.bf16 %v3683, %v3679
    %v3708 = vpack.c.bf16 %v3684, %v3680
    %v3709 = vpack.c.bf16 %v3685, %v3681
    %s3710 = scalar_lea.vmem %s15, 32
    %v3711 = vld [vmem:[%s3710] sm:$0xf]
    %v3712 = vld [vmem:[%s3710 + $0x4] sm:$0xf]
    %v3713 = vld [vmem:[%s3710 + $0x8] sm:$0xf]
    %v3714 = vld [vmem:[%s3710 + $0xc] sm:$0xf]
    %s3715 = scalar_lea.vmem %s16, 64
    %v3716 = vld [vmem:[%s3715] sm:$0xff]
    %v3717 = vld [vmem:[%s3715 + $0x8] sm:$0xff]
    %v3718 = vld [vmem:[%s3715 + $0x10] sm:$0xff]
    %v3719 = vld [vmem:[%s3715 + $0x18] sm:$0xff]
    %3721 = vset.pattern.permute.xlu0 0
    %3722 = vperm.xlu0 %3721, %v3716
    %v3723 = vpop.permute.xlu0 %3722
    %3726 = vset.pattern.permute.xlu0 0
    %3727 = vperm.xlu0 %3726, %v3717
    %v3728 = vpop.permute.xlu0 %3727
    %3731 = vset.pattern.permute.xlu0 0
    %3732 = vperm.xlu0 %3731, %v3718
    %v3733 = vpop.permute.xlu0 %3732
    %3736 = vset.pattern.permute.xlu0 0
    %3737 = vperm.xlu0 %3736, %v3719
    %v3738 = vpop.permute.xlu0 %3737
    %v3744 = vunpack.c.l.b16 %v3711
    %v3745 = vunpack.c.l.b16 %v3712
    %v3746 = vunpack.c.l.b16 %v3713
    %v3747 = vunpack.c.l.b16 %v3714
    %v3748 = vpack.c.b16 %v3745, %v3744
    %v3749 = vpack.c.b16 %v3747, %v3746
    %v3751 = vsel %vm602, %v3748, 0
    %v3754 = vsel %vm602, %v3749, 0
    %3756 = vmatprep.subr.bf16.mxu0 0
    %3757 = vmatpush1.bf16.msra.mxu0 0
    %3758 = vmatprep.subr.bf16.mxu0 0
    %3759 = vmatpush1.bf16.msra.mxu0 0
    %3760 = vmatprep.subr.bf16.mxu0 %v3707
    %3761 = vmatpush1.bf16.msra.mxu0 %v3706
    %3762 = vmatprep.subr.bf16.mxu0 %v3703
    %3763 = vmatpush1.bf16.msra.mxu0 %v3702
    %3764 = vmatprep.subr.bf16.mxu0 %v3699
    %3765 = vmatpush1.bf16.msra.mxu0 %v3698
    %3766 = vmatprep.subr.bf16.mxu0 %v3695
    %3767 = vmatpush1.bf16.msra.mxu0 %v3694
    %3768 = vmatprep.subr.bf16.mxu0 %v3691
    %3769 = vmatpush1.bf16.msra.mxu0 %v3690
    %3770 = vmatprep.subr.bf16.mxu0 %v3687
    %3771 = vmatpush1.bf16.msra.mxu0 %v3686
    %3772 = vmatprep.subr.bf16.mxu0 0
    %3773 = vmatpush2.bf16.msra.mxu0 0
    %3774 = vmatprep.subr.bf16.mxu0 0
    %3775 = vmatpush2.bf16.msra.mxu0 0
    %3776 = vmatprep.subr.bf16.mxu0 0
    %3777 = vmatpush2.bf16.msra.mxu0 0
    %3778 = vmatprep.subr.bf16.mxu0 0
    %3779 = vmatpush2.bf16.msra.mxu0 0
    %3780 = vmatprep.subr.bf16.mxu0 0
    %3781 = vmatpush2.bf16.msra.mxu0 0
    %3782 = vmatprep.subr.bf16.mxu0 0
    %3783 = vmatpush2.bf16.msra.mxu0 0
    %3784 = vmatprep.subr.bf16.mxu0 0
    %3785 = vmatpush2.bf16.msra.mxu0 0
    %3786 = vmatprep.subr.bf16.mxu0 0
    %3787 = vmatpush2.bf16.msra.mxu0 0
    %3788 = vmatprep.mubr.bf16.mxu0 0
    %3789 = vmatmul.mubr.bf16.gmra.mxu0 %v3751
    %v3790 = vpop.f32.mrf.mxu0
    %v3791 = vadd.f32 %v3723, %v3790
    %v3792 = vpop.f32.mrf.mxu0
    %v3793 = vadd.f32 %v3723, %v3792
    %v3794 = vpop.f32.mrf.mxu0
    %v3795 = vadd.f32 %v3728, %v3794
    %v3796 = vpop.f32.mrf.mxu0
    %v3797 = vadd.f32 %v3728, %v3796
    %3798 = vmatprep.mubr.bf16.mxu0 0
    %3799 = vmatmul.mubr.bf16.gmra.mxu0 %v3754
    %v3800 = vpop.f32.mrf.mxu0
    %v3801 = vadd.f32 %v3733, %v3800
    %v3802 = vpop.f32.mrf.mxu0
    %v3803 = vadd.f32 %v3733, %v3802
    %v3804 = vpop.f32.mrf.mxu0
    %v3805 = vadd.f32 %v3738, %v3804
    %v3806 = vpop.f32.mrf.mxu0
    %v3807 = vadd.f32 %v3738, %v3806
    %3808 = vdwg.mxu0
    %3809 = vmatprep.subr.bf16.mxu0 0
    %3810 = vmatpush1.bf16.msra.mxu0 0
    %3811 = vmatprep.subr.bf16.mxu0 0
    %3812 = vmatpush1.bf16.msra.mxu0 0
    %3813 = vmatprep.subr.bf16.mxu0 %v3709
    %3814 = vmatpush1.bf16.msra.mxu0 %v3708
    %3815 = vmatprep.subr.bf16.mxu0 %v3705
    %3816 = vmatpush1.bf16.msra.mxu0 %v3704
    %3817 = vmatprep.subr.bf16.mxu0 %v3701
    %3818 = vmatpush1.bf16.msra.mxu0 %v3700
    %3819 = vmatprep.subr.bf16.mxu0 %v3697
    %3820 = vmatpush1.bf16.msra.mxu0 %v3696
    %3821 = vmatprep.subr.bf16.mxu0 %v3693
    %3822 = vmatpush1.bf16.msra.mxu0 %v3692
    %3823 = vmatprep.subr.bf16.mxu0 %v3689
    %3824 = vmatpush1.bf16.msra.mxu0 %v3688
    %3825 = vmatprep.subr.bf16.mxu0 0
    %3826 = vmatpush2.bf16.msra.mxu0 0
    %3827 = vmatprep.subr.bf16.mxu0 0
    %3828 = vmatpush2.bf16.msra.mxu0 0
    %3829 = vmatprep.subr.bf16.mxu0 0
    %3830 = vmatpush2.bf16.msra.mxu0 0
    %3831 = vmatprep.subr.bf16.mxu0 0
    %3832 = vmatpush2.bf16.msra.mxu0 0
    %3833 = vmatprep.subr.bf16.mxu0 0
    %3834 = vmatpush2.bf16.msra.mxu0 0
    %3835 = vmatprep.subr.bf16.mxu0 0
    %3836 = vmatpush2.bf16.msra.mxu0 0
    %3837 = vmatprep.subr.bf16.mxu0 0
    %3838 = vmatpush2.bf16.msra.mxu0 0
    %3839 = vmatprep.subr.bf16.mxu0 0
    %3840 = vmatpush2.bf16.msra.mxu0 0
    %3841 = vmatprep.mubr.bf16.mxu0 0
    %3842 = vmatmul.mubr.bf16.gmra.mxu0 %v3751
    %v3843 = vpop.f32.mrf.mxu0
    %v3844 = vadd.f32 %v3723, %v3843
    %v3845 = vpop.f32.mrf.mxu0
    %v3846 = vadd.f32 %v3723, %v3845
    %v3847 = vpop.f32.mrf.mxu0
    %v3848 = vadd.f32 %v3728, %v3847
    %v3849 = vpop.f32.mrf.mxu0
    %v3850 = vadd.f32 %v3728, %v3849
    %3851 = vmatprep.mubr.bf16.mxu0 0
    %3852 = vmatmul.mubr.bf16.gmra.mxu0 %v3754
    %v3853 = vpop.f32.mrf.mxu0
    %v3854 = vadd.f32 %v3733, %v3853
    %v3855 = vpop.f32.mrf.mxu0
    %v3856 = vadd.f32 %v3733, %v3855
    %v3857 = vpop.f32.mrf.mxu0
    %v3858 = vadd.f32 %v3738, %v3857
    %v3859 = vpop.f32.mrf.mxu0
    %v3860 = vadd.f32 %v3738, %v3859
    %3861 = vdwg.mxu0
    %v3862 = vmax.f32 %v3791, 0.0
    %v3863 = vmax.f32 %v3793, 0.0
    %v3864 = vmax.f32 %v3844, 0.0
    %v3865 = vmax.f32 %v3846, 0.0
    %v3866 = vmax.f32 %v3795, 0.0
    %v3867 = vmax.f32 %v3797, 0.0
    %v3868 = vmax.f32 %v3848, 0.0
    %v3869 = vmax.f32 %v3850, 0.0
    %v3870 = vmax.f32 %v3801, 0.0
    %v3871 = vmax.f32 %v3803, 0.0
    %v3872 = vmax.f32 %v3854, 0.0
    %v3873 = vmax.f32 %v3856, 0.0
    %v3874 = vmax.f32 %v3805, 0.0
    %v3875 = vmax.f32 %v3807, 0.0
    %v3876 = vmax.f32 %v3858, 0.0
    %v3877 = vmax.f32 %v3860, 0.0
    %s3878 = scalar_lea.vmem %s17, 32
    %v3879 = vld [vmem:[%s3878] sm:$0xf]
    %v3880 = vld [vmem:[%s3878 + $0x4] sm:$0xf]
    %v3881 = vld [vmem:[%s3878 + $0x8] sm:$0xf]
    %v3882 = vld [vmem:[%s3878 + $0xc] sm:$0xf]
    %v3883 = vpack.c.bf16 %v3866, %v3862
    %v3884 = vpack.c.bf16 %v3867, %v3863
    %v3885 = vpack.c.bf16 %v3868, %v3864
    %v3886 = vpack.c.bf16 %v3869, %v3865
    %v3887 = vpack.c.bf16 %v3874, %v3870
    %v3888 = vpack.c.bf16 %v3875, %v3871
    %v3889 = vpack.c.bf16 %v3876, %v3872
    %v3890 = vpack.c.bf16 %v3877, %v3873
    %s3891 = scalar_lea.vmem %s18, 64
    %v3892 = vld [vmem:[%s3891] sm:$0xff]
    %v3893 = vld [vmem:[%s3891 + $0x8] sm:$0xff]
    %v3894 = vld [vmem:[%s3891 + $0x10] sm:$0xff]
    %v3895 = vld [vmem:[%s3891 + $0x18] sm:$0xff]
    %3897 = vset.pattern.permute.xlu0 0
    %3898 = vperm.xlu0 %3897, %v3892
    %v3899 = vpop.permute.xlu0 %3898
    %3902 = vset.pattern.permute.xlu0 0
    %3903 = vperm.xlu0 %3902, %v3893
    %v3904 = vpop.permute.xlu0 %3903
    %3907 = vset.pattern.permute.xlu0 0
    %3908 = vperm.xlu0 %3907, %v3894
    %v3909 = vpop.permute.xlu0 %3908
    %3912 = vset.pattern.permute.xlu0 0
    %3913 = vperm.xlu0 %3912, %v3895
    %v3914 = vpop.permute.xlu0 %3913
    %v3920 = vunpack.c.l.b16 %v3879
    %v3921 = vunpack.c.l.b16 %v3880
    %v3922 = vunpack.c.l.b16 %v3881
    %v3923 = vunpack.c.l.b16 %v3882
    %v3924 = vpack.c.b16 %v3921, %v3920
    %v3925 = vpack.c.b16 %v3923, %v3922
    %v3927 = vsel %vm777, %v3924, 0
    %v3930 = vsel %vm777, %v3925, 0
    %3932 = vmatprep.subr.bf16.mxu0 0
    %3933 = vmatpush1.bf16.msra.mxu0 0
    %3934 = vmatprep.subr.bf16.mxu0 0
    %3935 = vmatpush1.bf16.msra.mxu0 0
    %3936 = vmatprep.subr.bf16.mxu0 0
    %3937 = vmatpush1.bf16.msra.mxu0 0
    %3938 = vmatprep.subr.bf16.mxu0 0
    %3939 = vmatpush1.bf16.msra.mxu0 0
    %3940 = vmatprep.subr.bf16.mxu0 0
    %3941 = vmatpush1.bf16.msra.mxu0 0
    %3942 = vmatprep.subr.bf16.mxu0 0
    %3943 = vmatpush1.bf16.msra.mxu0 0
    %3944 = vmatprep.subr.bf16.mxu0 %v3888
    %3945 = vmatpush1.bf16.msra.mxu0 %v3887
    %3946 = vmatprep.subr.bf16.mxu0 %v3884
    %3947 = vmatpush1.bf16.msra.mxu0 %v3883
    %3948 = vmatprep.subr.bf16.mxu0 0
    %3949 = vmatpush2.bf16.msra.mxu0 0
    %3950 = vmatprep.subr.bf16.mxu0 0
    %3951 = vmatpush2.bf16.msra.mxu0 0
    %3952 = vmatprep.subr.bf16.mxu0 0
    %3953 = vmatpush2.bf16.msra.mxu0 0
    %3954 = vmatprep.subr.bf16.mxu0 0
    %3955 = vmatpush2.bf16.msra.mxu0 0
    %3956 = vmatprep.subr.bf16.mxu0 0
    %3957 = vmatpush2.bf16.msra.mxu0 0
    %3958 = vmatprep.subr.bf16.mxu0 0
    %3959 = vmatpush2.bf16.msra.mxu0 0
    %3960 = vmatprep.subr.bf16.mxu0 0
    %3961 = vmatpush2.bf16.msra.mxu0 0
    %3962 = vmatprep.subr.bf16.mxu0 0
    %3963 = vmatpush2.bf16.msra.mxu0 0
    %3964 = vmatprep.mubr.bf16.mxu0 0
    %3965 = vmatmul.mubr.bf16.gmra.mxu0 %v3927
    %v3966 = vpop.f32.mrf.mxu0
    %v3967 = vadd.f32 %v3899, %v3966
    %v3968 = vpop.f32.mrf.mxu0
    %v3969 = vadd.f32 %v3899, %v3968
    %v3970 = vpop.f32.mrf.mxu0
    %v3971 = vadd.f32 %v3904, %v3970
    %v3972 = vpop.f32.mrf.mxu0
    %v3973 = vadd.f32 %v3904, %v3972
    %3974 = vmatprep.mubr.bf16.mxu0 0
    %3975 = vmatmul.mubr.bf16.gmra.mxu0 %v3930
    %v3976 = vpop.f32.mrf.mxu0
    %v3977 = vadd.f32 %v3909, %v3976
    %v3978 = vpop.f32.mrf.mxu0
    %v3979 = vadd.f32 %v3909, %v3978
    %v3980 = vpop.f32.mrf.mxu0
    %v3981 = vadd.f32 %v3914, %v3980
    %v3982 = vpop.f32.mrf.mxu0
    %v3983 = vadd.f32 %v3914, %v3982
    %3984 = vdwg.mxu0
    %3985 = vmatprep.subr.bf16.mxu0 0
    %3986 = vmatpush1.bf16.msra.mxu0 0
    %3987 = vmatprep.subr.bf16.mxu0 0
    %3988 = vmatpush1.bf16.msra.mxu0 0
    %3989 = vmatprep.subr.bf16.mxu0 0
    %3990 = vmatpush1.bf16.msra.mxu0 0
    %3991 = vmatprep.subr.bf16.mxu0 0
    %3992 = vmatpush1.bf16.msra.mxu0 0
    %3993 = vmatprep.subr.bf16.mxu0 0
    %3994 = vmatpush1.bf16.msra.mxu0 0
    %3995 = vmatprep.subr.bf16.mxu0 0
    %3996 = vmatpush1.bf16.msra.mxu0 0
    %3997 = vmatprep.subr.bf16.mxu0 %v3890
    %3998 = vmatpush1.bf16.msra.mxu0 %v3889
    %3999 = vmatprep.subr.bf16.mxu0 %v3886
    %4000 = vmatpush1.bf16.msra.mxu0 %v3885
    %4001 = vmatprep.subr.bf16.mxu0 0
    %4002 = vmatpush2.bf16.msra.mxu0 0
    %4003 = vmatprep.subr.bf16.mxu0 0
    %4004 = vmatpush2.bf16.msra.mxu0 0
    %4005 = vmatprep.subr.bf16.mxu0 0
    %4006 = vmatpush2.bf16.msra.mxu0 0
    %4007 = vmatprep.subr.bf16.mxu0 0
    %4008 = vmatpush2.bf16.msra.mxu0 0
    %4009 = vmatprep.subr.bf16.mxu0 0
    %4010 = vmatpush2.bf16.msra.mxu0 0
    %4011 = vmatprep.subr.bf16.mxu0 0
    %4012 = vmatpush2.bf16.msra.mxu0 0
    %4013 = vmatprep.subr.bf16.mxu0 0
    %4014 = vmatpush2.bf16.msra.mxu0 0
    %4015 = vmatprep.subr.bf16.mxu0 0
    %4016 = vmatpush2.bf16.msra.mxu0 0
    %4017 = vmatprep.mubr.bf16.mxu0 0
    %4018 = vmatmul.mubr.bf16.gmra.mxu0 %v3927
    %v4019 = vpop.f32.mrf.mxu0
    %v4020 = vadd.f32 %v3899, %v4019
    %v4021 = vpop.f32.mrf.mxu0
    %v4022 = vadd.f32 %v3899, %v4021
    %v4023 = vpop.f32.mrf.mxu0
    %v4024 = vadd.f32 %v3904, %v4023
    %v4025 = vpop.f32.mrf.mxu0
    %v4026 = vadd.f32 %v3904, %v4025
    %4027 = vmatprep.mubr.bf16.mxu0 0
    %4028 = vmatmul.mubr.bf16.gmra.mxu0 %v3930
    %v4029 = vpop.f32.mrf.mxu0
    %v4030 = vadd.f32 %v3909, %v4029
    %v4031 = vpop.f32.mrf.mxu0
    %v4032 = vadd.f32 %v3909, %v4031
    %v4033 = vpop.f32.mrf.mxu0
    %v4034 = vadd.f32 %v3914, %v4033
    %v4035 = vpop.f32.mrf.mxu0
    %v4036 = vadd.f32 %v3914, %v4035
    %4037 = vdwg.mxu0
    %v4038 = vadd.f32 %v3542, %v3967
    %v4039 = vadd.f32 %v3543, %v3969
    %v4040 = vadd.f32 %v3544, %v4020
    %v4041 = vadd.f32 %v3545, %v4022
    %v4042 = vadd.f32 %v3546, %v3971
    %v4043 = vadd.f32 %v3547, %v3973
    %v4044 = vadd.f32 %v3548, %v4024
    %v4045 = vadd.f32 %v3549, %v4026
    %v4046 = vadd.f32 %v3550, %v3977
    %v4047 = vadd.f32 %v3551, %v3979
    %v4048 = vadd.f32 %v3552, %v4030
    %v4049 = vadd.f32 %v3553, %v4032
    %v4050 = vadd.f32 %v3554, %v3981
    %v4051 = vadd.f32 %v3555, %v3983
    %v4052 = vadd.f32 %v3556, %v4034
    %v4053 = vadd.f32 %v3557, %v4036
    %s4054 = scalar_lea.vmem [#allocation2], 128
    %4055 = vst [vmem:[%s4054] sm:$0xff] %v4038
    %4056 = vst [vmem:[%s4054 + $0x8] sm:$0xff] %v4039
    %4057 = vst [vmem:[%s4054 + $0x10] sm:$0xff] %v4040
    %4058 = vst [vmem:[%s4054 + $0x18] sm:$0xff] %v4041
    %4059 = vst [vmem:[%s4054 + $0x20] sm:$0xff] %v4042
    %4060 = vst [vmem:[%s4054 + $0x28] sm:$0xff] %v4043
    %4061 = vst [vmem:[%s4054 + $0x30] sm:$0xff] %v4044
    %4062 = vst [vmem:[%s4054 + $0x38] sm:$0xff] %v4045
    %4063 = vst [vmem:[%s4054 + $0x40] sm:$0xff] %v4046
    %4064 = vst [vmem:[%s4054 + $0x48] sm:$0xff] %v4047
    %4065 = vst [vmem:[%s4054 + $0x50] sm:$0xff] %v4048
    %4066 = vst [vmem:[%s4054 + $0x58] sm:$0xff] %v4049
    %4067 = vst [vmem:[%s4054 + $0x60] sm:$0xff] %v4050
    %4068 = vst [vmem:[%s4054 + $0x68] sm:$0xff] %v4051
    %4069 = vst [vmem:[%s4054 + $0x70] sm:$0xff] %v4052
    %4070 = vst [vmem:[%s4054 + $0x78] sm:$0xff] %v4053
    %v4071 = vpack.c.bf16 %v4042, %v4038
    %v4072 = vpack.c.bf16 %v4043, %v4039
    %v4073 = vpack.c.bf16 %v4044, %v4040
    %v4074 = vpack.c.bf16 %v4045, %v4041
    %v4075 = vpack.c.bf16 %v4050, %v4046
    %v4076 = vpack.c.bf16 %v4051, %v4047
    %v4077 = vpack.c.bf16 %v4052, %v4048
    %v4078 = vpack.c.bf16 %v4053, %v4049
    %v4079 = vld [vmem:[%s19] sm:$0xf]
    %v4080 = vld [vmem:[%s20] sm:$0xff]
    %4082 = vset.pattern.permute.xlu0 0
    %4083 = vperm.xlu0 %4082, %v4080
    %v4084 = vpop.permute.xlu0 %4083
    %v4087 = vsel %vm777, %v4079, 0
    %4089 = vmatprep.subr.bf16.mxu0 0
    %4090 = vmatpush1.bf16.msra.mxu0 0
    %4091 = vmatprep.subr.bf16.mxu0 0
    %4092 = vmatpush1.bf16.msra.mxu0 0
    %4093 = vmatprep.subr.bf16.mxu0 0
    %4094 = vmatpush1.bf16.msra.mxu0 0
    %4095 = vmatprep.subr.bf16.mxu0 0
    %4096 = vmatpush1.bf16.msra.mxu0 0
    %4097 = vmatprep.subr.bf16.mxu0 0
    %4098 = vmatpush1.bf16.msra.mxu0 0
    %4099 = vmatprep.subr.bf16.mxu0 0
    %4100 = vmatpush1.bf16.msra.mxu0 0
    %4101 = vmatprep.subr.bf16.mxu0 %v4076
    %4102 = vmatpush1.bf16.msra.mxu0 %v4075
    %4103 = vmatprep.subr.bf16.mxu0 %v4072
    %4104 = vmatpush1.bf16.msra.mxu0 %v4071
    %4105 = vmatprep.subr.bf16.mxu0 0
    %4106 = vmatpush2.bf16.msra.mxu0 0
    %4107 = vmatprep.subr.bf16.mxu0 0
    %4108 = vmatpush2.bf16.msra.mxu0 0
    %4109 = vmatprep.subr.bf16.mxu0 0
    %4110 = vmatpush2.bf16.msra.mxu0 0
    %4111 = vmatprep.subr.bf16.mxu0 0
    %4112 = vmatpush2.bf16.msra.mxu0 0
    %4113 = vmatprep.subr.bf16.mxu0 0
    %4114 = vmatpush2.bf16.msra.mxu0 0
    %4115 = vmatprep.subr.bf16.mxu0 0
    %4116 = vmatpush2.bf16.msra.mxu0 0
    %4117 = vmatprep.subr.bf16.mxu0 0
    %4118 = vmatpush2.bf16.msra.mxu0 0
    %4119 = vmatprep.subr.bf16.mxu0 0
    %4120 = vmatpush2.bf16.msra.mxu0 0
    %4121 = vmatprep.mubr.bf16.mxu0 0
    %4122 = vmatmul.mubr.bf16.gmra.mxu0 %v4087
    %v4123 = vpop.f32.mrf.mxu0
    %v4124 = vadd.f32 %v4084, %v4123
    %v4125 = vpop.f32.mrf.mxu0
    %v4126 = vadd.f32 %v4084, %v4125
    %v4127 = vpop.f32.mrf.mxu0
    %v4128 = vpop.f32.mrf.mxu0
    %4129 = vdwg.mxu0
    %4130 = vmatprep.subr.bf16.mxu0 0
    %4131 = vmatpush1.bf16.msra.mxu0 0
    %4132 = vmatprep.subr.bf16.mxu0 0
    %4133 = vmatpush1.bf16.msra.mxu0 0
    %4134 = vmatprep.subr.bf16.mxu0 0
    %4135 = vmatpush1.bf16.msra.mxu0 0
    %4136 = vmatprep.subr.bf16.mxu0 0
    %4137 = vmatpush1.bf16.msra.mxu0 0
    %4138 = vmatprep.subr.bf16.mxu0 0
    %4139 = vmatpush1.bf16.msra.mxu0 0
    %4140 = vmatprep.subr.bf16.mxu0 0
    %4141 = vmatpush1.bf16.msra.mxu0 0
    %4142 = vmatprep.subr.bf16.mxu0 %v4078
    %4143 = vmatpush1.bf16.msra.mxu0 %v4077
    %4144 = vmatprep.subr.bf16.mxu0 %v4074
    %4145 = vmatpush1.bf16.msra.mxu0 %v4073
    %4146 = vmatprep.subr.bf16.mxu0 0
    %4147 = vmatpush2.bf16.msra.mxu0 0
    %4148 = vmatprep.subr.bf16.mxu0 0
    %4149 = vmatpush2.bf16.msra.mxu0 0
    %4150 = vmatprep.subr.bf16.mxu0 0
    %4151 = vmatpush2.bf16.msra.mxu0 0
    %4152 = vmatprep.subr.bf16.mxu0 0
    %4153 = vmatpush2.bf16.msra.mxu0 0
    %4154 = vmatprep.subr.bf16.mxu0 0
    %4155 = vmatpush2.bf16.msra.mxu0 0
    %4156 = vmatprep.subr.bf16.mxu0 0
    %4157 = vmatpush2.bf16.msra.mxu0 0
    %4158 = vmatprep.subr.bf16.mxu0 0
    %4159 = vmatpush2.bf16.msra.mxu0 0
    %4160 = vmatprep.subr.bf16.mxu0 0
    %4161 = vmatpush2.bf16.msra.mxu0 0
    %4162 = vmatprep.mubr.bf16.mxu0 0
    %4163 = vmatmul.mubr.bf16.gmra.mxu0 %v4087
    %v4164 = vpop.f32.mrf.mxu0
    %v4165 = vadd.f32 %v4084, %v4164
    %v4166 = vpop.f32.mrf.mxu0
    %v4167 = vadd.f32 %v4084, %v4166
    %v4168 = vpop.f32.mrf.mxu0
    %v4169 = vpop.f32.mrf.mxu0
    %4170 = vdwg.mxu0
    %s4171 = scalar_lea.vmem [#allocation4], 32
    %4172 = vst [vmem:[%s4171] sm:$0xff] %v4124
    %4173 = vst [vmem:[%s4171 + $0x8] sm:$0xff] %v4126
    %4174 = vst [vmem:[%s4171 + $0x10] sm:$0xff] %v4165
    %4175 = vst [vmem:[%s4171 + $0x18] sm:$0xff] %v4167
    %v4176 = vrot.slane %v4124, 4
    %v4177 = vmax.f32 %v4124, %v4176
    %v4178 = vrot.slane %v4177, 2
    %v4179 = vmax.f32 %v4177, %v4178
    %v4180 = vrot.slane %v4179, 1
    %v4181 = vmax.f32 %v4179, %v4180
    %v4182 = vrot.slane %v4126, 4
    %v4183 = vmax.f32 %v4126, %v4182
    %v4184 = vrot.slane %v4183, 2
    %v4185 = vmax.f32 %v4183, %v4184
    %v4186 = vrot.slane %v4185, 1
    %v4187 = vmax.f32 %v4185, %v4186
    %v4188 = vrot.slane %v4165, 4
    %v4189 = vmax.f32 %v4165, %v4188
    %v4190 = vrot.slane %v4189, 2
    %v4191 = vmax.f32 %v4189, %v4190
    %v4192 = vrot.slane %v4191, 1
    %v4193 = vmax.f32 %v4191, %v4192
    %v4194 = vrot.slane %v4167, 4
    %v4195 = vmax.f32 %v4167, %v4194
    %v4196 = vrot.slane %v4195, 2
    %v4197 = vmax.f32 %v4195, %v4196
    %v4198 = vrot.slane %v4197, 1
    %v4199 = vmax.f32 %v4197, %v4198
    %v4200 = vsub.f32 %v4124, %v4181
    %v4201 = vsub.f32 %v4126, %v4187
    %v4202 = vsub.f32 %v4165, %v4193
    %v4203 = vsub.f32 %v4167, %v4199
    %v4204 = vmul.f32 %v4200, 1.442695
    %v4205 = vpow.pop %v4204
    %v4206 = vmul.f32 %v4201, 1.442695
    %v4207 = vpow.pop %v4206
    %v4208 = vmul.f32 %v4202, 1.442695
    %v4209 = vpow.pop %v4208
    %v4210 = vmul.f32 %v4203, 1.442695
    %v4211 = vpow.pop %v4210
    %v4212 = vrot.slane %v4205, 4
    %v4213 = vadd.f32 %v4205, %v4212
    %v4214 = vrot.slane %v4213, 2
    %v4215 = vadd.f32 %v4213, %v4214
    %v4216 = vrot.slane %v4215, 1
    %v4217 = vadd.f32 %v4215, %v4216
    %v4218 = vrot.slane %v4207, 4
    %v4219 = vadd.f32 %v4207, %v4218
    %v4220 = vrot.slane %v4219, 2
    %v4221 = vadd.f32 %v4219, %v4220
    %v4222 = vrot.slane %v4221, 1
    %v4223 = vadd.f32 %v4221, %v4222
    %v4224 = vrot.slane %v4209, 4
    %v4225 = vadd.f32 %v4209, %v4224
    %v4226 = vrot.slane %v4225, 2
    %v4227 = vadd.f32 %v4225, %v4226
    %v4228 = vrot.slane %v4227, 1
    %v4229 = vadd.f32 %v4227, %v4228
    %v4230 = vrot.slane %v4211, 4
    %v4231 = vadd.f32 %v4211, %v4230
    %v4232 = vrot.slane %v4231, 2
    %v4233 = vadd.f32 %v4231, %v4232
    %v4234 = vrot.slane %v4233, 1
    %v4235 = vadd.f32 %v4233, %v4234
    %v4236 = vrcp.pop %v4217
    %v4237 = vrcp.pop %v4223
    %v4238 = vrcp.pop %v4229
    %v4239 = vrcp.pop %v4235
    %v4240 = vmul.f32 %v4205, %v4236
    %v4241 = vmul.f32 %v4207, %v4237
    %v4242 = vmul.f32 %v4209, %v4238
    %v4243 = vmul.f32 %v4211, %v4239
    %s4244 = scalar_lea.vmem [#allocation6], 32
    %4245 = vst [vmem:[%s4244] sm:$0xff] %v4240
    %4246 = vst [vmem:[%s4244 + $0x8] sm:$0xff] %v4241
    %4247 = vst [vmem:[%s4244 + $0x10] sm:$0xff] %v4242
    %4248 = vst [vmem:[%s4244 + $0x18] sm:$0xff] %v4243
    %4249 = vmatprep.subr.bf16.mxu0 0
    %4250 = vmatpush1.bf16.msra.mxu0 0
    %4251 = vmatprep.subr.bf16.mxu0 0
    %4252 = vmatpush1.bf16.msra.mxu0 0
    %4253 = vmatprep.subr.bf16.mxu0 0
    %4254 = vmatpush1.bf16.msra.mxu0 0
    %4255 = vmatprep.subr.bf16.mxu0 0
    %4256 = vmatpush1.bf16.msra.mxu0 0
    %4257 = vmatprep.subr.bf16.mxu0 0
    %4258 = vmatpush1.bf16.msra.mxu0 0
    %4259 = vmatprep.subr.bf16.mxu0 0
    %4260 = vmatpush1.bf16.msra.mxu0 0
    %4261 = vmatprep.subr.bf16.mxu0 %v4076
    %4262 = vmatpush1.bf16.msra.mxu0 %v4075
    %4263 = vmatprep.subr.bf16.mxu0 %v4072
    %4264 = vmatpush1.bf16.msra.mxu0 %v4071
    %4265 = vmatprep.subr.bf16.mxu0 0
    %4266 = vmatpush2.bf16.msra.mxu0 0
    %4267 = vmatprep.subr.bf16.mxu0 0
    %4268 = vmatpush2.bf16.msra.mxu0 0
    %4269 = vmatprep.subr.bf16.mxu0 0
    %4270 = vmatpush2.bf16.msra.mxu0 0
    %4271 = vmatprep.subr.bf16.mxu0 0
    %4272 = vmatpush2.bf16.msra.mxu0 0
    %4273 = vmatprep.subr.bf16.mxu0 0
    %4274 = vmatpush2.bf16.msra.mxu0 0
    %4275 = vmatprep.subr.bf16.mxu0 0
    %4276 = vmatpush2.bf16.msra.mxu0 0
    %4277 = vmatprep.subr.bf16.mxu0 0
    %4278 = vmatpush2.bf16.msra.mxu0 0
    %4279 = vmatprep.subr.bf16.mxu0 0
    %4280 = vmatpush2.bf16.msra.mxu0 0
    %4281 = vmatprep.mubr.bf16.mxu0 0
    %4282 = vmatmul.mubr.bf16.gmra.mxu0 %v2173
    %v4283 = vpop.f32.mrf.mxu0
    %v4284 = vadd.f32 %v2145, %v4283
    %v4285 = vpop.f32.mrf.mxu0
    %v4286 = vadd.f32 %v2145, %v4285
    %v4287 = vpop.f32.mrf.mxu0
    %v4288 = vadd.f32 %v2150, %v4287
    %v4289 = vpop.f32.mrf.mxu0
    %v4290 = vadd.f32 %v2150, %v4289
    %4291 = vmatprep.mubr.bf16.mxu0 0
    %4292 = vmatmul.mubr.bf16.gmra.mxu0 %v2176
    %v4293 = vpop.f32.mrf.mxu0
    %v4294 = vadd.f32 %v2155, %v4293
    %v4295 = vpop.f32.mrf.mxu0
    %v4296 = vadd.f32 %v2155, %v4295
    %v4297 = vpop.f32.mrf.mxu0
    %v4298 = vadd.f32 %v2160, %v4297
    %v4299 = vpop.f32.mrf.mxu0
    %v4300 = vadd.f32 %v2160, %v4299
    %4301 = vdwg.mxu0
    %4302 = vmatprep.subr.bf16.mxu0 0
    %4303 = vmatpush1.bf16.msra.mxu0 0
    %4304 = vmatprep.subr.bf16.mxu0 0
    %4305 = vmatpush1.bf16.msra.mxu0 0
    %4306 = vmatprep.subr.bf16.mxu0 0
    %4307 = vmatpush1.bf16.msra.mxu0 0
    %4308 = vmatprep.subr.bf16.mxu0 0
    %4309 = vmatpush1.bf16.msra.mxu0 0
    %4310 = vmatprep.subr.bf16.mxu0 0
    %4311 = vmatpush1.bf16.msra.mxu0 0
    %4312 = vmatprep.subr.bf16.mxu0 0
    %4313 = vmatpush1.bf16.msra.mxu0 0
    %4314 = vmatprep.subr.bf16.mxu0 %v4078
    %4315 = vmatpush1.bf16.msra.mxu0 %v4077
    %4316 = vmatprep.subr.bf16.mxu0 %v4074
    %4317 = vmatpush1.bf16.msra.mxu0 %v4073
    %4318 = vmatprep.subr.bf16.mxu0 0
    %4319 = vmatpush2.bf16.msra.mxu0 0
    %4320 = vmatprep.subr.bf16.mxu0 0
    %4321 = vmatpush2.bf16.msra.mxu0 0
    %4322 = vmatprep.subr.bf16.mxu0 0
    %4323 = vmatpush2.bf16.msra.mxu0 0
    %4324 = vmatprep.subr.bf16.mxu0 0
    %4325 = vmatpush2.bf16.msra.mxu0 0
    %4326 = vmatprep.subr.bf16.mxu0 0
    %4327 = vmatpush2.bf16.msra.mxu0 0
    %4328 = vmatprep.subr.bf16.mxu0 0
    %4329 = vmatpush2.bf16.msra.mxu0 0
    %4330 = vmatprep.subr.bf16.mxu0 0
    %4331 = vmatpush2.bf16.msra.mxu0 0
    %4332 = vmatprep.subr.bf16.mxu0 0
    %4333 = vmatpush2.bf16.msra.mxu0 0
    %4334 = vmatprep.mubr.bf16.mxu0 0
    %4335 = vmatmul.mubr.bf16.gmra.mxu0 %v2173
    %v4336 = vpop.f32.mrf.mxu0
    %v4337 = vadd.f32 %v2145, %v4336
    %v4338 = vpop.f32.mrf.mxu0
    %v4339 = vadd.f32 %v2145, %v4338
    %v4340 = vpop.f32.mrf.mxu0
    %v4341 = vadd.f32 %v2150, %v4340
    %v4342 = vpop.f32.mrf.mxu0
    %v4343 = vadd.f32 %v2150, %v4342
    %4344 = vmatprep.mubr.bf16.mxu0 0
    %4345 = vmatmul.mubr.bf16.gmra.mxu0 %v2176
    %v4346 = vpop.f32.mrf.mxu0
    %v4347 = vadd.f32 %v2155, %v4346
    %v4348 = vpop.f32.mrf.mxu0
    %v4349 = vadd.f32 %v2155, %v4348
    %v4350 = vpop.f32.mrf.mxu0
    %v4351 = vadd.f32 %v2160, %v4350
    %v4352 = vpop.f32.mrf.mxu0
    %v4353 = vadd.f32 %v2160, %v4352
    %4354 = vdwg.mxu0
    %v4355 = vmax.f32 %v4284, 0.0
    %v4356 = vmax.f32 %v4286, 0.0
    %v4357 = vmax.f32 %v4337, 0.0
    %v4358 = vmax.f32 %v4339, 0.0
    %v4359 = vmax.f32 %v4288, 0.0
    %v4360 = vmax.f32 %v4290, 0.0
    %v4361 = vmax.f32 %v4341, 0.0
    %v4362 = vmax.f32 %v4343, 0.0
    %v4363 = vmax.f32 %v4294, 0.0
    %v4364 = vmax.f32 %v4296, 0.0
    %v4365 = vmax.f32 %v4347, 0.0
    %v4366 = vmax.f32 %v4349, 0.0
    %v4367 = vmax.f32 %v4298, 0.0
    %v4368 = vmax.f32 %v4300, 0.0
    %v4369 = vmax.f32 %v4351, 0.0
    %v4370 = vmax.f32 %v4353, 0.0
    %v4371 = vpack.c.bf16 %v4359, %v4355
    %v4372 = vpack.c.bf16 %v4360, %v4356
    %v4373 = vpack.c.bf16 %v4361, %v4357
    %v4374 = vpack.c.bf16 %v4362, %v4358
    %v4375 = vpack.c.bf16 %v4367, %v4363
    %v4376 = vpack.c.bf16 %v4368, %v4364
    %v4377 = vpack.c.bf16 %v4369, %v4365
    %v4378 = vpack.c.bf16 %v4370, %v4366
    %4379 = vmatprep.subr.bf16.mxu0 0
    %4380 = vmatpush1.bf16.msra.mxu0 0
    %4381 = vmatprep.subr.bf16.mxu0 0
    %4382 = vmatpush1.bf16.msra.mxu0 0
    %4383 = vmatprep.subr.bf16.mxu0 0
    %4384 = vmatpush1.bf16.msra.mxu0 0
    %4385 = vmatprep.subr.bf16.mxu0 0
    %4386 = vmatpush1.bf16.msra.mxu0 0
    %4387 = vmatprep.subr.bf16.mxu0 0
    %4388 = vmatpush1.bf16.msra.mxu0 0
    %4389 = vmatprep.subr.bf16.mxu0 0
    %4390 = vmatpush1.bf16.msra.mxu0 0
    %4391 = vmatprep.subr.bf16.mxu0 %v4376
    %4392 = vmatpush1.bf16.msra.mxu0 %v4375
    %4393 = vmatprep.subr.bf16.mxu0 %v4372
    %4394 = vmatpush1.bf16.msra.mxu0 %v4371
    %4395 = vmatprep.subr.bf16.mxu0 0
    %4396 = vmatpush2.bf16.msra.mxu0 0
    %4397 = vmatprep.subr.bf16.mxu0 0
    %4398 = vmatpush2.bf16.msra.mxu0 0
    %4399 = vmatprep.subr.bf16.mxu0 0
    %4400 = vmatpush2.bf16.msra.mxu0 0
    %4401 = vmatprep.subr.bf16.mxu0 0
    %4402 = vmatpush2.bf16.msra.mxu0 0
    %4403 = vmatprep.subr.bf16.mxu0 0
    %4404 = vmatpush2.bf16.msra.mxu0 0
    %4405 = vmatprep.subr.bf16.mxu0 0
    %4406 = vmatpush2.bf16.msra.mxu0 0
    %4407 = vmatprep.subr.bf16.mxu0 0
    %4408 = vmatpush2.bf16.msra.mxu0 0
    %4409 = vmatprep.subr.bf16.mxu0 0
    %4410 = vmatpush2.bf16.msra.mxu0 0
    %4411 = vmatprep.mubr.bf16.mxu0 0
    %4412 = vmatmul.mubr.bf16.gmra.mxu0 %v2314
    %v4413 = vpop.f32.mrf.mxu0
    %v4414 = vadd.f32 %v2311, %v4413
    %v4415 = vpop.f32.mrf.mxu0
    %v4416 = vadd.f32 %v2311, %v4415
    %v4417 = vpop.f32.mrf.mxu0
    %v4418 = vpop.f32.mrf.mxu0
    %4419 = vdwg.mxu0
    %4420 = vmatprep.subr.bf16.mxu0 0
    %4421 = vmatpush1.bf16.msra.mxu0 0
    %4422 = vmatprep.subr.bf16.mxu0 0
    %4423 = vmatpush1.bf16.msra.mxu0 0
    %4424 = vmatprep.subr.bf16.mxu0 0
    %4425 = vmatpush1.bf16.msra.mxu0 0
    %4426 = vmatprep.subr.bf16.mxu0 0
    %4427 = vmatpush1.bf16.msra.mxu0 0
    %4428 = vmatprep.subr.bf16.mxu0 0
    %4429 = vmatpush1.bf16.msra.mxu0 0
    %4430 = vmatprep.subr.bf16.mxu0 0
    %4431 = vmatpush1.bf16.msra.mxu0 0
    %4432 = vmatprep.subr.bf16.mxu0 %v4378
    %4433 = vmatpush1.bf16.msra.mxu0 %v4377
    %4434 = vmatprep.subr.bf16.mxu0 %v4374
    %4435 = vmatpush1.bf16.msra.mxu0 %v4373
    %4436 = vmatprep.subr.bf16.mxu0 0
    %4437 = vmatpush2.bf16.msra.mxu0 0
    %4438 = vmatprep.subr.bf16.mxu0 0
    %4439 = vmatpush2.bf16.msra.mxu0 0
    %4440 = vmatprep.subr.bf16.mxu0 0
    %4441 = vmatpush2.bf16.msra.mxu0 0
    %4442 = vmatprep.subr.bf16.mxu0 0
    %4443 = vmatpush2.bf16.msra.mxu0 0
    %4444 = vmatprep.subr.bf16.mxu0 0
    %4445 = vmatpush2.bf16.msra.mxu0 0
    %4446 = vmatprep.subr.bf16.mxu0 0
    %4447 = vmatpush2.bf16.msra.mxu0 0
    %4448 = vmatprep.subr.bf16.mxu0 0
    %4449 = vmatpush2.bf16.msra.mxu0 0
    %4450 = vmatprep.subr.bf16.mxu0 0
    %4451 = vmatpush2.bf16.msra.mxu0 0
    %4452 = vmatprep.mubr.bf16.mxu0 0
    %4453 = vmatmul.mubr.bf16.gmra.mxu0 %v2314
    %v4454 = vpop.f32.mrf.mxu0
    %v4455 = vadd.f32 %v2311, %v4454
    %v4456 = vpop.f32.mrf.mxu0
    %v4457 = vadd.f32 %v2311, %v4456
    %v4458 = vpop.f32.mrf.mxu0
    %v4459 = vpop.f32.mrf.mxu0
    %4460 = vdwg.mxu0
    %s4461 = scalar_lea.vmem [#allocation7], 32
    %4462 = vst [vmem:[%s4461] sm:$0xff] %v4414
    %4463 = vst [vmem:[%s4461 + $0x8] sm:$0xff] %v4416
    %4464 = vst [vmem:[%s4461 + $0x10] sm:$0xff] %v4455
    %4465 = vst [vmem:[%s4461 + $0x18] sm:$0xff] %v4457
    // Predicated region
    $region86: #{tpu_custom_call.1} parent=1 // pred_check
      _
    $region87: #{tpu_custom_call.1} parent=1 // pred_check_branch
      %4467 = sbr.rel (0) target = $region89
    $region88: #{tpu_custom_call.1} parent=1 // pred_region
      %s4469 = ssub.s32 4096, 4096
      %4470 = vsyncadd [#allocation3], %s4469
      %s4471 = sshll.u32 [#allocation2], 4
      %s4472 = int_to_ptr.vmem [resolvable:$true] %s4471
      %4477 = dma.vmem_to_hbm [thread:$0]  %s4472, 4096, %s21, [#allocation3], 512, 512, 32
    $region89: #{tpu_custom_call.1} parent=1 // pred_fallthru
      _
    // Predicated region
    $region90: #{tpu_custom_call.1} parent=1 // pred_check
      _
    $region91: #{tpu_custom_call.1} parent=1 // pred_check_branch
      %4479 = sbr.rel (0) target = $region93
    $region92: #{tpu_custom_call.1} parent=1 // pred_region
      %s4481 = ssub.s32 1024, 1024
      %4482 = vsyncadd [#allocation5], %s4481
      %s4483 = sshll.u32 [#allocation4], 4
      %s4484 = int_to_ptr.vmem [resolvable:$true] %s4483
      %4489 = dma.vmem_to_hbm [thread:$0]  %s4484, 1024, %s22, [#allocation5], 512, 512, 32
    $region93: #{tpu_custom_call.1} parent=1 // pred_fallthru
      _
    // Predicated region
    $region94: #{tpu_custom_call.1} parent=1 // pred_check
      _
    $region95: #{tpu_custom_call.1} parent=1 // pred_check_branch
      %4491 = sbr.rel (0) target = $region97
    $region96: #{tpu_custom_call.1} parent=1 // pred_region
      %s4493 = ssub.s32 1024, 1024
      %4494 = vsyncadd [#allocation5], %s4493
      %s4495 = sshll.u32 [#allocation6], 4
      %s4496 = int_to_ptr.vmem [resolvable:$true] %s4495
      %4501 = dma.vmem_to_hbm [thread:$0]  %s4496, 1024, %s23, [#allocation5], 512, 512, 32
    $region97: #{tpu_custom_call.1} parent=1 // pred_fallthru
      _
    // Predicated region
    $region98: #{tpu_custom_call.1} parent=1 // pred_check
      _
    $region99: #{tpu_custom_call.1} parent=1 // pred_check_branch
      %4503 = sbr.rel (0) target = $region101
    $region100: #{tpu_custom_call.1} parent=1 // pred_region
      %s4505 = ssub.s32 1024, 1024
      %4506 = vsyncadd [#allocation8], %s4505
      %s4507 = sshll.u32 [#allocation7], 4
      %s4508 = int_to_ptr.vmem [resolvable:$true] %s4507
      %4513 = dma.vmem_to_hbm [thread:$0]  %s4508, 1024, %s24, [#allocation8], 512, 512, 32
    $region101: #{tpu_custom_call.1} parent=1 // pred_fallthru
      _
    // Predicated region
    $region102: #{tpu_custom_call.1} parent=1 // pred_check
      _
    $region103: #{tpu_custom_call.1} parent=1 // pred_check_branch
      %4515 = sbr.rel (0) target = $region105
    $region104: #{tpu_custom_call.1} parent=1 // pred_region
      %4516 = dma.done [#allocation3], 4096
    $region105: #{tpu_custom_call.1} parent=1 // pred_fallthru
      _
    // Predicated region
    $region106: #{tpu_custom_call.1} parent=1 // pred_check
      _
    $region107: #{tpu_custom_call.1} parent=1 // pred_check_branch
      %4518 = sbr.rel (0) target = $region109
    $region108: #{tpu_custom_call.1} parent=1 // pred_region
      %4519 = dma.done [#allocation5], 1024
    $region109: #{tpu_custom_call.1} parent=1 // pred_fallthru
      _
    // Predicated region
    $region110: #{tpu_custom_call.1} parent=1 // pred_check
      _
    $region111: #{tpu_custom_call.1} parent=1 // pred_check_branch
      %4521 = sbr.rel (0) target = $region113
    $region112: #{tpu_custom_call.1} parent=1 // pred_region
      %4522 = dma.done [#allocation5], 1024
    $region113: #{tpu_custom_call.1} parent=1 // pred_fallthru
      _
    // Predicated region
    $region114: #{tpu_custom_call.1} parent=1 // pred_check
      _
    $region115: #{tpu_custom_call.1} parent=1 // pred_check_branch
      %4524 = sbr.rel (0) target = $region117
    $region116: #{tpu_custom_call.1} parent=1 // pred_region
      %4525 = dma.done [#allocation8], 1024
    $region117: #{tpu_custom_call.1} parent=1 // pred_fallthru
      _
    %4526 = vsyncpa [#allocation3], 1
    %4527 = vsyncpa [#allocation5], 1
    %4528 = vsyncpa [#allocation8], 1

</llo_original>
